<compile_context>
chip_gen: v6e
topology: v6e:2x2x1
jax: 0.10.0
libtpu: 0.0.40
codegen_flags: <defaults>
</compile_context>

<pallas_src>
import functools
import math

import jax
import jax.numpy as jnp
from jax import lax
from jax.experimental import pallas as pl
from jax.experimental.pallas import tpu as pltpu


def _layer_norm(v, w, b, eps=1e-5):
    mu = jnp.mean(v, axis=-1, keepdims=True)
    var = jnp.mean((v - mu) ** 2, axis=-1, keepdims=True)
    return (v - mu) * lax.rsqrt(var + eps) * w + b


def _encoder_kernel(eot_ref,                       # scalar-prefetch: (B,) EOT positions (SMEM)
                    x_ref, pos_ref,                # prompts block, positional embedding
                    ln1w, ln1b, wqkv, bqkv, wo, bo,
                    ln2w, ln2b, w1, b1, w2, b2,    # stacked per-layer weights (leading dim = 1)
                    lnfw, lnfb, proj,              # ln_final + text_projection
                    o_ref,                         # (block_b, E) output
                    acc_ref,                       # (block_b, S, D) f32 resident residual stream
                    *, n_head):
    l = pl.program_id(1)
    n_layers = pl.num_programs(1)
    bt, S, D = acc_ref.shape
    hd = D // n_head
    scale = 1.0 / math.sqrt(hd)
    cdt = wqkv.dtype                               # matmul input dtype (bf16); accum stays f32

    # program_id must be bound at the kernel top level, never inside a pl.when body
    # (inside a cond branch it cannot be substituted / lowered on the interpret path).
    b0 = pl.program_id(0) * bt                     # first global batch row of this block

    # ---- first layer step: residual stream = prompts + positional embedding ----
    @pl.when(l == 0)
    def _():
        acc_ref[...] = (x_ref[...].astype(jnp.float32)
                        + pos_ref[...].astype(jnp.float32)[None])

    x = acc_ref[...]                               # (bt, S, D) f32

    # ---- attention branch: LN -> QKV -> per-head causal SDPA -> out-proj ----
    h = _layer_norm(x, ln1w[0], ln1b[0])
    qkv = jnp.dot(h.reshape(bt * S, D).astype(cdt), wqkv[0],
                  preferred_element_type=jnp.float32) + bqkv[0]          # (bt*S, 3D) f32
    qkv = qkv.reshape(bt, S, 3 * D)
    q = qkv[:, :, 0 * D:1 * D] * scale
    k = qkv[:, :, 1 * D:2 * D]
    v = qkv[:, :, 2 * D:3 * D]

    # causal additive mask built in-register (strictly-upper triangle masked)
    rows = lax.broadcasted_iota(jnp.int32, (S, S), 0)
    cols = lax.broadcasted_iota(jnp.int32, (S, S), 1)
    causal = jnp.where(cols <= rows, 0.0, -1e9).astype(jnp.float32)[None]   # (1, S, S)

    wo_t = wo[0]                                   # (D, D) input-major, bf16
    attn = jnp.zeros((bt * S, D), jnp.float32)
    for hh in range(n_head):                       # static unroll; fold head output into the
        sl = slice(hh * hd, (hh + 1) * hd)         # out-projection — no lane-dim concatenate
        s = jnp.einsum('bqd,bkd->bqk',
                       q[:, :, sl].astype(cdt), k[:, :, sl].astype(cdt),
                       preferred_element_type=jnp.float32) + causal
        s = s - jnp.max(s, axis=-1, keepdims=True)
        p = jnp.exp(s)
        p = p * pl.reciprocal(jnp.sum(p, axis=-1, keepdims=True), approx=True)
        oh = jnp.einsum('bqk,bkd->bqd', p.astype(cdt), v[:, :, sl].astype(cdt),
                        preferred_element_type=jnp.float32)              # (bt, S, hd)
        attn = attn + jnp.dot(oh.reshape(bt * S, hd).astype(cdt), wo_t[sl, :],
                              preferred_element_type=jnp.float32)
    x = x + (attn + bo[0]).reshape(bt, S, D)

    # ---- MLP branch: LN -> c_fc -> QuickGELU -> c_proj ----
    h2 = _layer_norm(x, ln2w[0], ln2b[0]).reshape(bt * S, D)
    m1 = jnp.dot(h2.astype(cdt), w1[0], preferred_element_type=jnp.float32) + b1[0]
    m1 = m1 * jax.nn.sigmoid(1.702 * m1)
    m2 = jnp.dot(m1.astype(cdt), w2[0], preferred_element_type=jnp.float32) + b2[0]
    x = x + m2.reshape(bt, S, D)

    acc_ref[...] = x.astype(acc_ref.dtype)         # carry residual stream to next layer

    # ---- last layer step: ln_final + EOT-token gather + text_projection ----
    @pl.when(l == n_layers - 1)
    def _():
        pooled_rows = []
        for bb in range(bt):                       # static unroll over the block's sequences
            idx = eot_ref[b0 + bb]                 # dynamic SMEM scalar read
            sel = lax.broadcasted_iota(jnp.int32, (S, 1), 0) == idx
            pooled_rows.append(jnp.sum(jnp.where(sel, x[bb], 0.0), axis=0, keepdims=True))
        pooled = jnp.concatenate(pooled_rows, axis=0)          # (bt, D), row-wise concat
        pooled = _layer_norm(pooled, lnfw[...], lnfb[...])
        o_ref[...] = jnp.dot(pooled.astype(cdt), proj[...],
                             preferred_element_type=jnp.float32).astype(o_ref.dtype)


def prepare_params(torch_layers, *, pos_emb, lnf_w, lnf_b, text_proj, n_head,
                   compute_dtype=jnp.bfloat16):
    """Stack per-layer PyTorch-layout weights ((out,in), y = x @ W.T) into (L, ...) arrays,
    pre-transposed to input-major, matmul weights cast to the MXU compute dtype."""
    def vec(name):        # (L, 1, N) f32 — biases / LN params stay f32
        return jnp.stack([lyr[name] for lyr in torch_layers], axis=0)[:, None, :] \
                  .astype(jnp.float32)

    def mat_t(name):      # (L, in, out) compute_dtype — pre-transposed on host
        return jnp.stack([lyr[name].T for lyr in torch_layers], axis=0).astype(compute_dtype)

    return dict(
        n_head=n_head,
        pos_emb=pos_emb.astype(jnp.float32),
        ln1_w=vec('ln1_w'), ln1_b=vec('ln1_b'),
        wqkv=mat_t('wqkv'), bqkv=vec('bqkv'),
        wo=mat_t('wo'), bo=vec('bo'),
        ln2_w=vec('ln2_w'), ln2_b=vec('ln2_b'),
        w1=mat_t('w1'), b1=vec('b1'),
        w2=mat_t('w2'), b2=vec('b2'),
        lnf_w=lnf_w.reshape(1, -1).astype(jnp.float32),
        lnf_b=lnf_b.reshape(1, -1).astype(jnp.float32),
        text_proj=text_proj.astype(compute_dtype),
    )


def text_encoder_forward(prompts, tokenized_prompts, params, *, block_b=None):
    B, S, D = prompts.shape
    E = params['text_proj'].shape[-1]
    L = params['wqkv'].shape[0]
    if block_b is None:
        block_b = max(d for d in (8, 4, 2, 1) if B % d == 0)
    assert B % block_b == 0

    eot = jnp.argmax(tokenized_prompts, axis=-1).astype(jnp.int32)

    weight_names = ['ln1_w', 'ln1_b', 'wqkv', 'bqkv', 'wo', 'bo',
                    'ln2_w', 'ln2_b', 'w1', 'b1', 'w2', 'b2']
    stacked = [params[n] for n in weight_names]

    act_map = lambda b, l, eot_ref: (b, 0, 0)
    fix2 = lambda b, l, eot_ref: (0, 0)
    w_map = lambda b, l, eot_ref: (l, 0, 0)        # stream layer l's weights each step

    in_specs = [pl.BlockSpec((block_b, S, D), act_map),          # prompts (per batch block)
                pl.BlockSpec((S, D), fix2)]                      # positional embedding
    in_specs += [pl.BlockSpec((1,) + w.shape[1:], w_map) for w in stacked]
    in_specs += [pl.BlockSpec((1, D), fix2),                     # ln_final weight
                 pl.BlockSpec((1, D), fix2),                     # ln_final bias
                 pl.BlockSpec((D, E), fix2)]                     # text_projection

    kernel = functools.partial(_encoder_kernel, n_head=params['n_head'])

    return pl.pallas_call(
        kernel,
        out_shape=jax.ShapeDtypeStruct((B, E), prompts.dtype),
        grid_spec=pltpu.PrefetchScalarGridSpec(
            num_scalar_prefetch=1,
            grid=(B // block_b, L),                # batch blocks outer, layers inner
            in_specs=in_specs,
            out_specs=pl.BlockSpec((block_b, E), lambda b, l, eot_ref: (b, 0)),
            scratch_shapes=[pltpu.VMEM((block_b, S, D), jnp.float32)]),
        compiler_params=pltpu.CompilerParams(
            dimension_semantics=("parallel", "arbitrary"),
            vmem_limit_bytes=64 * 1024 * 1024),
    )(eot, prompts, params['pos_emb'], *stacked,
      params['lnf_w'], params['lnf_b'], params['text_proj'])


def text_encoder_reference(prompts, tokenized_prompts, params):
    """Pure-JAX reference mirroring the kernel's precision policy (bf16 matmul inputs,
    f32 accumulation / LN / softmax)."""
    x = prompts.astype(jnp.float32) + params['pos_emb'].astype(jnp.float32)[None]
    B, S, D = x.shape
    H = params['n_head']
    hd = D // H
    scale = 1.0 / math.sqrt(hd)
    cdt = params['wqkv'].dtype
    L = params['wqkv'].shape[0]
    mask = jnp.where(jnp.arange(S)[None, :] <= jnp.arange(S)[:, None], 0.0, -1e9)
    mask = mask.astype(jnp.float32)[None]

    for l in range(L):
        h = _layer_norm(x, params['ln1_w'][l], params['ln1_b'][l])
        qkv = jnp.einsum('bsd,de->bse', h.astype(cdt), params['wqkv'][l],
                         preferred_element_type=jnp.float32) + params['bqkv'][l]
        q = qkv[..., :D] * scale
        k = qkv[..., D:2 * D]
        v = qkv[..., 2 * D:]
        attn = jnp.zeros((B, S, D), jnp.float32)
        for hh in range(H):
            sl = slice(hh * hd, (hh + 1) * hd)
            s = jnp.einsum('bqd,bkd->bqk', q[..., sl].astype(cdt), k[..., sl].astype(cdt),
                           preferred_element_type=jnp.float32) + mask
            p = jax.nn.softmax(s, axis=-1)
            oh = jnp.einsum('bqk,bkd->bqd', p.astype(cdt), v[..., sl].astype(cdt),
                            preferred_element_type=jnp.float32)
            attn = attn + jnp.einsum('bqd,de->bqe', oh.astype(cdt),
                                     params['wo'][l][sl, :],
                                     preferred_element_type=jnp.float32)
        x = x + attn + params['bo'][l]

        h2 = _layer_norm(x, params['ln2_w'][l], params['ln2_b'][l])
        m1 = jnp.einsum('bsd,df->bsf', h2.astype(cdt), params['w1'][l],
                        preferred_element_type=jnp.float32) + params['b1'][l]
        m1 = m1 * jax.nn.sigmoid(1.702 * m1)
        m2 = jnp.einsum('bsf,fd->bsd', m1.astype(cdt), params['w2'][l],
                        preferred_element_type=jnp.float32) + params['b2'][l]
        x = x + m2

    eot = jnp.argmax(tokenized_prompts, axis=-1)
    pooled = x[jnp.arange(B), eot]                       # (B, D)
    pooled = _layer_norm(pooled, params['lnf_w'], params['lnf_b'])
    out = jnp.einsum('bd,de->be', pooled.astype(cdt), params['text_proj'],
                     preferred_element_type=jnp.float32)
    return out.astype(prompts.dtype)


if __name__ == "__main__":
    B, S, D, H, L, E = 2, 8, 32, 4, 2, 32   # batch, seq, width, heads, layers, embed_dim
    key = jax.random.PRNGKey(0)
    keys = iter(jax.random.split(key, 64))

    def nrm(shape, scale=0.02):
        return (scale * jax.random.normal(next(keys), shape)).astype(jnp.float32)

    prompts = nrm((B, S, D), 1.0)
    pos_emb = nrm((S, D), 0.01)
    tokens = jax.random.randint(next(keys), (B, S), 1, 100, dtype=jnp.int32)
    eot_pos = jnp.array([5, 7], dtype=jnp.int32)
    tokens = tokens.at[jnp.arange(B), eot_pos].set(49407)   # EOT token id -> argmax target

    # per-layer params in PyTorch layout ((out, in) weights, y = x @ W.T)
    torch_layers = []
    for _ in range(L):
        torch_layers.append(dict(
            ln1_w=jnp.ones((D,), jnp.float32), ln1_b=jnp.zeros((D,), jnp.float32),
            wqkv=nrm((3 * D, D)), bqkv=nrm((3 * D,)),
            wo=nrm((D, D)), bo=nrm((D,)),
            ln2_w=jnp.ones((D,), jnp.float32), ln2_b=jnp.zeros((D,), jnp.float32),
            w1=nrm((4 * D, D)), b1=nrm((4 * D,)),
            w2=nrm((D, 4 * D)), b2=nrm((D,)),
        ))

    params = prepare_params(
        torch_layers, pos_emb=pos_emb,
        lnf_w=jnp.ones((D,), jnp.float32), lnf_b=jnp.zeros((D,), jnp.float32),
        text_proj=nrm((D, E), 1.0 / math.sqrt(D)),
        n_head=H, compute_dtype=jnp.bfloat16)

    out = text_encoder_forward(prompts, tokens, params)
    out = jax.block_until_ready(out)
    assert out.shape == (B, E) and out.dtype == jnp.float32

    ref = text_encoder_reference(prompts, tokens, params)
    err = float(jnp.max(jnp.abs(out - ref)))
    assert err < 5e-2, f"kernel vs reference max abs err {err}"
    print("KERNEL_OK")
</pallas_src>

<mosaic_0001>
module attributes {stable_mosaic.version = 11 : i64} {
  func.func @_encoder_kernel(%arg0: i32, %arg1: i32, %arg2: memref<2xi32, #tpu.memory_space<smem>>, %arg3: memref<2x8x32xf32, #tpu.memory_space<vmem>>, %arg4: memref<8x32xf32, #tpu.memory_space<vmem>>, %arg5: memref<1x1x32xf32, #tpu.memory_space<vmem>>, %arg6: memref<1x1x32xf32, #tpu.memory_space<vmem>>, %arg7: memref<1x32x96xbf16, #tpu.memory_space<vmem>>, %arg8: memref<1x1x96xf32, #tpu.memory_space<vmem>>, %arg9: memref<1x32x32xbf16, #tpu.memory_space<vmem>>, %arg10: memref<1x1x32xf32, #tpu.memory_space<vmem>>, %arg11: memref<1x1x32xf32, #tpu.memory_space<vmem>>, %arg12: memref<1x1x32xf32, #tpu.memory_space<vmem>>, %arg13: memref<1x32x128xbf16, #tpu.memory_space<vmem>>, %arg14: memref<1x1x128xf32, #tpu.memory_space<vmem>>, %arg15: memref<1x128x32xbf16, #tpu.memory_space<vmem>>, %arg16: memref<1x1x32xf32, #tpu.memory_space<vmem>>, %arg17: memref<1x32xf32, #tpu.memory_space<vmem>>, %arg18: memref<1x32xf32, #tpu.memory_space<vmem>>, %arg19: memref<32x32xbf16, #tpu.memory_space<vmem>>, %arg20: memref<2x32xf32, #tpu.memory_space<vmem>>, %arg21: memref<2x8x32xf32, #tpu.memory_space<vmem>>) attributes {dimension_semantics = [#tpu.dimension_semantics<parallel>, #tpu.dimension_semantics<arbitrary>], iteration_bounds = array<i64: 1, 2>, scalar_prefetch = 1 : i64, scratch_operands = 1 : i64, tpu.core_type = #tpu.core_type<tc>, window_params = [{transform_indices = @transform_0, window_bounds = array<i64: 2, 8, 32>}, {pipeline_mode = #tpu.pipeline_mode<synchronous>, transform_indices = @transform_1, window_bounds = array<i64: 8, 32>}, {transform_indices = @transform_2, window_bounds = array<i64: 1, 1, 32>}, {transform_indices = @transform_3, window_bounds = array<i64: 1, 1, 32>}, {transform_indices = @transform_4, window_bounds = array<i64: 1, 32, 96>}, {transform_indices = @transform_5, window_bounds = array<i64: 1, 1, 96>}, {transform_indices = @transform_6, window_bounds = array<i64: 1, 32, 32>}, {transform_indices = @transform_7, window_bounds = array<i64: 1, 1, 32>}, {transform_indices = @transform_8, window_bounds = array<i64: 1, 1, 32>}, {transform_indices = @transform_9, window_bounds = array<i64: 1, 1, 32>}, {transform_indices = @transform_10, window_bounds = array<i64: 1, 32, 128>}, {transform_indices = @transform_11, window_bounds = array<i64: 1, 1, 128>}, {transform_indices = @transform_12, window_bounds = array<i64: 1, 128, 32>}, {transform_indices = @transform_13, window_bounds = array<i64: 1, 1, 32>}, {pipeline_mode = #tpu.pipeline_mode<synchronous>, transform_indices = @transform_14, window_bounds = array<i64: 1, 32>}, {pipeline_mode = #tpu.pipeline_mode<synchronous>, transform_indices = @transform_15, window_bounds = array<i64: 1, 32>}, {pipeline_mode = #tpu.pipeline_mode<synchronous>, transform_indices = @transform_16, window_bounds = array<i64: 32, 32>}, {transform_indices = @transform_17, window_bounds = array<i64: 2, 32>}]} {
    %c2_i32 = arith.constant 2 : i32
    %0 = arith.muli %arg0, %c2_i32 : i32
    %c0_i32 = arith.constant 0 : i32
    %1 = arith.cmpi eq, %arg1, %c0_i32 : i32
    %2 = arith.extui %1 : i1 to i32
    %c0_i32_0 = arith.constant 0 : i32
    %3 = arith.cmpi ne, %2, %c0_i32_0 : i32
    scf.if %3 {
      %c0_81 = arith.constant 0 : index
      %c0_82 = arith.constant 0 : index
      %c0_83 = arith.constant 0 : index
      %227 = vector.load %arg3[%c0_81, %c0_82, %c0_83] : memref<2x8x32xf32, #tpu.memory_space<vmem>>, vector<2x8x32xf32>
      %c0_84 = arith.constant 0 : index
      %c0_85 = arith.constant 0 : index
      %228 = vector.load %arg4[%c0_84, %c0_85] : memref<8x32xf32, #tpu.memory_space<vmem>>, vector<8x32xf32>
      %229 = vector.shape_cast %228 : vector<8x32xf32> to vector<1x8x32xf32>
      %230 = vector.broadcast %229 : vector<1x8x32xf32> to vector<2x8x32xf32>
      %231 = arith.addf %227, %230 : vector<2x8x32xf32>
      %c0_86 = arith.constant 0 : index
      %c0_87 = arith.constant 0 : index
      %c0_88 = arith.constant 0 : index
      %232 = vector.load %arg21[%c0_86, %c0_87, %c0_88] : memref<2x8x32xf32, #tpu.memory_space<vmem>>, vector<2x8x32xf32>
      tpu.vector_store %arg21[%c0_86, %c0_87, %c0_88], %231 {strides = array<i32>} : memref<2x8x32xf32, #tpu.memory_space<vmem>>, vector<2x8x32xf32>,
    } else {
    }
    %c0 = arith.constant 0 : index
    %c0_1 = arith.constant 0 : index
    %c0_2 = arith.constant 0 : index
    %4 = vector.load %arg21[%c0, %c0_1, %c0_2] : memref<2x8x32xf32, #tpu.memory_space<vmem>>, vector<2x8x32xf32>
    %c0_3 = arith.constant 0 : index
    %c0_4 = arith.constant 0 : index
    %c0_5 = arith.constant 0 : index
    %5 = vector.load %arg5[%c0_3, %c0_4, %c0_5] : memref<1x1x32xf32, #tpu.memory_space<vmem>>, vector<1x1x32xf32>
    %6 = vector.shape_cast %5 : vector<1x1x32xf32> to vector<1x32xf32>
    %c0_6 = arith.constant 0 : index
    %c0_7 = arith.constant 0 : index
    %c0_8 = arith.constant 0 : index
    %7 = vector.load %arg6[%c0_6, %c0_7, %c0_8] : memref<1x1x32xf32, #tpu.memory_space<vmem>>, vector<1x1x32xf32>
    %8 = vector.shape_cast %7 : vector<1x1x32xf32> to vector<1x32xf32>
    %cst = arith.constant dense<0.000000e+00> : vector<2x8xf32>
    %9 = vector.multi_reduction <add>, %4, %cst [2] : vector<2x8x32xf32> to vector<2x8xf32>
    %10 = vector.shape_cast %9 : vector<2x8xf32> to vector<2x8x1xf32>
    %cst_9 = arith.constant 3.200000e+01 : f32
    %11 = vector.broadcast %cst_9 : f32 to vector<2x8x1xf32>
    %12 = arith.divf %10, %11 : vector<2x8x1xf32>
    %13 = vector.broadcast %12 : vector<2x8x1xf32> to vector<2x8x32xf32>
    %14 = arith.subf %4, %13 : vector<2x8x32xf32>
    %15 = arith.mulf %14, %14 : vector<2x8x32xf32>
    %cst_10 = arith.constant dense<0.000000e+00> : vector<2x8xf32>
    %16 = vector.multi_reduction <add>, %15, %cst_10 [2] : vector<2x8x32xf32> to vector<2x8xf32>
    %17 = vector.shape_cast %16 : vector<2x8xf32> to vector<2x8x1xf32>
    %cst_11 = arith.constant 3.200000e+01 : f32
    %18 = vector.broadcast %cst_11 : f32 to vector<2x8x1xf32>
    %19 = arith.divf %17, %18 : vector<2x8x1xf32>
    %20 = vector.broadcast %12 : vector<2x8x1xf32> to vector<2x8x32xf32>
    %21 = arith.subf %4, %20 : vector<2x8x32xf32>
    %cst_12 = arith.constant 9.99999974E-6 : f32
    %22 = vector.broadcast %cst_12 : f32 to vector<2x8x1xf32>
    %23 = arith.addf %19, %22 : vector<2x8x1xf32>
    %24 = math.rsqrt %23 : vector<2x8x1xf32>
    %25 = vector.broadcast %24 : vector<2x8x1xf32> to vector<2x8x32xf32>
    %26 = arith.mulf %21, %25 : vector<2x8x32xf32>
    %27 = vector.shape_cast %6 : vector<1x32xf32> to vector<1x1x32xf32>
    %28 = vector.broadcast %27 : vector<1x1x32xf32> to vector<2x8x32xf32>
    %29 = arith.mulf %26, %28 : vector<2x8x32xf32>
    %30 = vector.shape_cast %8 : vector<1x32xf32> to vector<1x1x32xf32>
    %31 = vector.broadcast %30 : vector<1x1x32xf32> to vector<2x8x32xf32>
    %32 = arith.addf %29, %31 : vector<2x8x32xf32>
    %33 = vector.shape_cast %32 : vector<2x8x32xf32> to vector<16x32xf32>
    %34 = arith.truncf %33 : vector<16x32xf32> to vector<16x32xbf16>
    %c0_13 = arith.constant 0 : index
    %c0_14 = arith.constant 0 : index
    %c0_15 = arith.constant 0 : index
    %35 = vector.load %arg7[%c0_13, %c0_14, %c0_15] : memref<1x32x96xbf16, #tpu.memory_space<vmem>>, vector<1x32x96xbf16>
    %36 = vector.shape_cast %35 : vector<1x32x96xbf16> to vector<32x96xbf16>
    %cst_16 = arith.constant dense<0.000000e+00> : vector<16x96xf32>
    %37 = tpu.matmul %34, %36, %cst_16 {dimension_numbers = #tpu.dot_dimension_numbers<[1], [0], [0], [1], [0, 0, 1, 1], [], []>} : vector<16x32xbf16>, vector<32x96xbf16>, vector<16x96xf32> -> vector<16x96xf32>
    %c0_17 = arith.constant 0 : index
    %c0_18 = arith.constant 0 : index
    %c0_19 = arith.constant 0 : index
    %38 = vector.load %arg8[%c0_17, %c0_18, %c0_19] : memref<1x1x96xf32, #tpu.memory_space<vmem>>, vector<1x1x96xf32>
    %39 = vector.shape_cast %38 : vector<1x1x96xf32> to vector<1x96xf32>
    %40 = vector.broadcast %39 : vector<1x96xf32> to vector<16x96xf32>
    %41 = arith.addf %37, %40 : vector<16x96xf32>
    %42 = vector.shape_cast %41 : vector<16x96xf32> to vector<2x8x96xf32>
    %43 = vector.extract_strided_slice %42 {offsets = [0, 0, 0], sizes = [2, 8, 32], strides = [1, 1, 1]} : vector<2x8x96xf32> to vector<2x8x32xf32>
    %cst_20 = arith.constant 0.353553385 : f32
    %44 = vector.broadcast %cst_20 : f32 to vector<2x8x32xf32>
    %45 = arith.mulf %43, %44 : vector<2x8x32xf32>
    %46 = vector.extract_strided_slice %42 {offsets = [0, 0, 32], sizes = [2, 8, 32], strides = [1, 1, 1]} : vector<2x8x96xf32> to vector<2x8x32xf32>
    %47 = vector.extract_strided_slice %42 {offsets = [0, 0, 64], sizes = [2, 8, 32], strides = [1, 1, 1]} : vector<2x8x96xf32> to vector<2x8x32xf32>
    %48 = tpu.iota {dimensions = array<i32: 0>} : vector<8x8xi32>
    %49 = tpu.iota {dimensions = array<i32: 1>} : vector<8x8xi32>
    %50 = arith.cmpi sle, %49, %48 : vector<8x8xi32>
    %cst_21 = arith.constant 0.000000e+00 : f32
    %cst_22 = arith.constant -1.000000e+09 : f32
    %51 = vector.broadcast %cst_21 : f32 to vector<8x8xf32>
    %52 = vector.broadcast %cst_22 : f32 to vector<8x8xf32>
    %53 = arith.select %50, %51, %52 : vector<8x8xi1>, vector<8x8xf32>
    %54 = vector.shape_cast %53 : vector<8x8xf32> to vector<1x8x8xf32>
    %c0_23 = arith.constant 0 : index
    %c0_24 = arith.constant 0 : index
    %c0_25 = arith.constant 0 : index
    %55 = vector.load %arg9[%c0_23, %c0_24, %c0_25] : memref<1x32x32xbf16, #tpu.memory_space<vmem>>, vector<1x32x32xbf16>
    %56 = vector.shape_cast %55 : vector<1x32x32xbf16> to vector<32x32xbf16>
    %cst_26 = arith.constant 0.000000e+00 : f32
    %57 = vector.broadcast %cst_26 : f32 to vector<16x32xf32>
    %58 = vector.extract_strided_slice %45 {offsets = [0, 0, 0], sizes = [2, 8, 8], strides = [1, 1, 1]} : vector<2x8x32xf32> to vector<2x8x8xf32>
    %59 = arith.truncf %58 : vector<2x8x8xf32> to vector<2x8x8xbf16>
    %60 = vector.extract_strided_slice %46 {offsets = [0, 0, 0], sizes = [2, 8, 8], strides = [1, 1, 1]} : vector<2x8x32xf32> to vector<2x8x8xf32>
    %61 = arith.truncf %60 : vector<2x8x8xf32> to vector<2x8x8xbf16>
    "tpu.trace_start"() <{level = 10 : i32, message = "bqd,bkd->bqk"}> : () -> ()
    %cst_27 = arith.constant dense<0.000000e+00> : vector<2x8x8xf32>
    %62 = tpu.matmul %59, %61, %cst_27 {dimension_numbers = #tpu.dot_dimension_numbers<[2], [2], [1], [1], [0, 0, 0, 1, 1, 1], [0], [0]>} : vector<2x8x8xbf16>, vector<2x8x8xbf16>, vector<2x8x8xf32> -> vector<2x8x8xf32>
    "tpu.trace_stop"() : () -> ()
    %63 = vector.broadcast %54 : vector<1x8x8xf32> to vector<2x8x8xf32>
    %64 = arith.addf %62, %63 : vector<2x8x8xf32>
    %cst_28 = arith.constant dense<0xFF800000> : vector<2x8xf32>
    %65 = vector.multi_reduction <maximumf>, %64, %cst_28 [2] : vector<2x8x8xf32> to vector<2x8xf32>
    %66 = vector.shape_cast %65 : vector<2x8xf32> to vector<2x8x1xf32>
    %67 = vector.broadcast %66 : vector<2x8x1xf32> to vector<2x8x8xf32>
    %68 = arith.subf %64, %67 : vector<2x8x8xf32>
    %69 = math.exp %68 : vector<2x8x8xf32>
    %cst_29 = arith.constant dense<0.000000e+00> : vector<2x8xf32>
    %70 = vector.multi_reduction <add>, %69, %cst_29 [2] : vector<2x8x8xf32> to vector<2x8xf32>
    %71 = vector.shape_cast %70 : vector<2x8xf32> to vector<2x8x1xf32>
    %72 = tpu.reciprocal %71 {approx = true} : vector<2x8x1xf32> -> vector<2x8x1xf32>
    %73 = vector.broadcast %72 : vector<2x8x1xf32> to vector<2x8x8xf32>
    %74 = arith.mulf %69, %73 : vector<2x8x8xf32>
    %75 = arith.truncf %74 : vector<2x8x8xf32> to vector<2x8x8xbf16>
    %76 = vector.extract_strided_slice %47 {offsets = [0, 0, 0], sizes = [2, 8, 8], strides = [1, 1, 1]} : vector<2x8x32xf32> to vector<2x8x8xf32>
    %77 = arith.truncf %76 : vector<2x8x8xf32> to vector<2x8x8xbf16>
    "tpu.trace_start"() <{level = 10 : i32, message = "bqk,bkd->bqd"}> : () -> ()
    %cst_30 = arith.constant dense<0.000000e+00> : vector<2x8x8xf32>
    %78 = tpu.matmul %75, %77, %cst_30 {dimension_numbers = #tpu.dot_dimension_numbers<[2], [1], [1], [2], [0, 0, 0, 1, 1, 2], [0], [0]>} : vector<2x8x8xbf16>, vector<2x8x8xbf16>, vector<2x8x8xf32> -> vector<2x8x8xf32>
    "tpu.trace_stop"() : () -> ()
    %79 = vector.shape_cast %78 : vector<2x8x8xf32> to vector<16x8xf32>
    %80 = arith.truncf %79 : vector<16x8xf32> to vector<16x8xbf16>
    %81 = vector.extract_strided_slice %56 {offsets = [0, 0], sizes = [8, 32], strides = [1, 1]} : vector<32x32xbf16> to vector<8x32xbf16>
    %cst_31 = arith.constant dense<0.000000e+00> : vector<16x32xf32>
    %82 = tpu.matmul %80, %81, %cst_31 {dimension_numbers = #tpu.dot_dimension_numbers<[1], [0], [0], [1], [0, 0, 1, 1], [], []>} : vector<16x8xbf16>, vector<8x32xbf16>, vector<16x32xf32> -> vector<16x32xf32>
    %83 = arith.addf %57, %82 : vector<16x32xf32>
    %84 = vector.extract_strided_slice %45 {offsets = [0, 0, 8], sizes = [2, 8, 8], strides = [1, 1, 1]} : vector<2x8x32xf32> to vector<2x8x8xf32>
    %85 = arith.truncf %84 : vector<2x8x8xf32> to vector<2x8x8xbf16>
    %86 = vector.extract_strided_slice %46 {offsets = [0, 0, 8], sizes = [2, 8, 8], strides = [1, 1, 1]} : vector<2x8x32xf32> to vector<2x8x8xf32>
    %87 = arith.truncf %86 : vector<2x8x8xf32> to vector<2x8x8xbf16>
    "tpu.trace_start"() <{level = 10 : i32, message = "bqd,bkd->bqk"}> : () -> ()
    %cst_32 = arith.constant dense<0.000000e+00> : vector<2x8x8xf32>
    %88 = tpu.matmul %85, %87, %cst_32 {dimension_numbers = #tpu.dot_dimension_numbers<[2], [2], [1], [1], [0, 0, 0, 1, 1, 1], [0], [0]>} : vector<2x8x8xbf16>, vector<2x8x8xbf16>, vector<2x8x8xf32> -> vector<2x8x8xf32>
    "tpu.trace_stop"() : () -> ()
    %89 = vector.broadcast %54 : vector<1x8x8xf32> to vector<2x8x8xf32>
    %90 = arith.addf %88, %89 : vector<2x8x8xf32>
    %cst_33 = arith.constant dense<0xFF800000> : vector<2x8xf32>
    %91 = vector.multi_reduction <maximumf>, %90, %cst_33 [2] : vector<2x8x8xf32> to vector<2x8xf32>
    %92 = vector.shape_cast %91 : vector<2x8xf32> to vector<2x8x1xf32>
    %93 = vector.broadcast %92 : vector<2x8x1xf32> to vector<2x8x8xf32>
    %94 = arith.subf %90, %93 : vector<2x8x8xf32>
    %95 = math.exp %94 : vector<2x8x8xf32>
    %cst_34 = arith.constant dense<0.000000e+00> : vector<2x8xf32>
    %96 = vector.multi_reduction <add>, %95, %cst_34 [2] : vector<2x8x8xf32> to vector<2x8xf32>
    %97 = vector.shape_cast %96 : vector<2x8xf32> to vector<2x8x1xf32>
    %98 = tpu.reciprocal %97 {approx = true} : vector<2x8x1xf32> -> vector<2x8x1xf32>
    %99 = vector.broadcast %98 : vector<2x8x1xf32> to vector<2x8x8xf32>
    %100 = arith.mulf %95, %99 : vector<2x8x8xf32>
    %101 = arith.truncf %100 : vector<2x8x8xf32> to vector<2x8x8xbf16>
    %102 = vector.extract_strided_slice %47 {offsets = [0, 0, 8], sizes = [2, 8, 8], strides = [1, 1, 1]} : vector<2x8x32xf32> to vector<2x8x8xf32>
    %103 = arith.truncf %102 : vector<2x8x8xf32> to vector<2x8x8xbf16>
    "tpu.trace_start"() <{level = 10 : i32, message = "bqk,bkd->bqd"}> : () -> ()
    %cst_35 = arith.constant dense<0.000000e+00> : vector<2x8x8xf32>
    %104 = tpu.matmul %101, %103, %cst_35 {dimension_numbers = #tpu.dot_dimension_numbers<[2], [1], [1], [2], [0, 0, 0, 1, 1, 2], [0], [0]>} : vector<2x8x8xbf16>, vector<2x8x8xbf16>, vector<2x8x8xf32> -> vector<2x8x8xf32>
    "tpu.trace_stop"() : () -> ()
    %105 = vector.shape_cast %104 : vector<2x8x8xf32> to vector<16x8xf32>
    %106 = arith.truncf %105 : vector<16x8xf32> to vector<16x8xbf16>
    %107 = vector.extract_strided_slice %56 {offsets = [8, 0], sizes = [8, 32], strides = [1, 1]} : vector<32x32xbf16> to vector<8x32xbf16>
    %cst_36 = arith.constant dense<0.000000e+00> : vector<16x32xf32>
    %108 = tpu.matmul %106, %107, %cst_36 {dimension_numbers = #tpu.dot_dimension_numbers<[1], [0], [0], [1], [0, 0, 1, 1], [], []>} : vector<16x8xbf16>, vector<8x32xbf16>, vector<16x32xf32> -> vector<16x32xf32>
    %109 = arith.addf %83, %108 : vector<16x32xf32>
    %110 = vector.extract_strided_slice %45 {offsets = [0, 0, 16], sizes = [2, 8, 8], strides = [1, 1, 1]} : vector<2x8x32xf32> to vector<2x8x8xf32>
    %111 = arith.truncf %110 : vector<2x8x8xf32> to vector<2x8x8xbf16>
    %112 = vector.extract_strided_slice %46 {offsets = [0, 0, 16], sizes = [2, 8, 8], strides = [1, 1, 1]} : vector<2x8x32xf32> to vector<2x8x8xf32>
    %113 = arith.truncf %112 : vector<2x8x8xf32> to vector<2x8x8xbf16>
    "tpu.trace_start"() <{level = 10 : i32, message = "bqd,bkd->bqk"}> : () -> ()
    %cst_37 = arith.constant dense<0.000000e+00> : vector<2x8x8xf32>
    %114 = tpu.matmul %111, %113, %cst_37 {dimension_numbers = #tpu.dot_dimension_numbers<[2], [2], [1], [1], [0, 0, 0, 1, 1, 1], [0], [0]>} : vector<2x8x8xbf16>, vector<2x8x8xbf16>, vector<2x8x8xf32> -> vector<2x8x8xf32>
    "tpu.trace_stop"() : () -> ()
    %115 = vector.broadcast %54 : vector<1x8x8xf32> to vector<2x8x8xf32>
    %116 = arith.addf %114, %115 : vector<2x8x8xf32>
    %cst_38 = arith.constant dense<0xFF800000> : vector<2x8xf32>
    %117 = vector.multi_reduction <maximumf>, %116, %cst_38 [2] : vector<2x8x8xf32> to vector<2x8xf32>
    %118 = vector.shape_cast %117 : vector<2x8xf32> to vector<2x8x1xf32>
    %119 = vector.broadcast %118 : vector<2x8x1xf32> to vector<2x8x8xf32>
    %120 = arith.subf %116, %119 : vector<2x8x8xf32>
    %121 = math.exp %120 : vector<2x8x8xf32>
    %cst_39 = arith.constant dense<0.000000e+00> : vector<2x8xf32>
    %122 = vector.multi_reduction <add>, %121, %cst_39 [2] : vector<2x8x8xf32> to vector<2x8xf32>
    %123 = vector.shape_cast %122 : vector<2x8xf32> to vector<2x8x1xf32>
    %124 = tpu.reciprocal %123 {approx = true} : vector<2x8x1xf32> -> vector<2x8x1xf32>
    %125 = vector.broadcast %124 : vector<2x8x1xf32> to vector<2x8x8xf32>
    %126 = arith.mulf %121, %125 : vector<2x8x8xf32>
    %127 = arith.truncf %126 : vector<2x8x8xf32> to vector<2x8x8xbf16>
    %128 = vector.extract_strided_slice %47 {offsets = [0, 0, 16], sizes = [2, 8, 8], strides = [1, 1, 1]} : vector<2x8x32xf32> to vector<2x8x8xf32>
    %129 = arith.truncf %128 : vector<2x8x8xf32> to vector<2x8x8xbf16>
    "tpu.trace_start"() <{level = 10 : i32, message = "bqk,bkd->bqd"}> : () -> ()
    %cst_40 = arith.constant dense<0.000000e+00> : vector<2x8x8xf32>
    %130 = tpu.matmul %127, %129, %cst_40 {dimension_numbers = #tpu.dot_dimension_numbers<[2], [1], [1], [2], [0, 0, 0, 1, 1, 2], [0], [0]>} : vector<2x8x8xbf16>, vector<2x8x8xbf16>, vector<2x8x8xf32> -> vector<2x8x8xf32>
    "tpu.trace_stop"() : () -> ()
    %131 = vector.shape_cast %130 : vector<2x8x8xf32> to vector<16x8xf32>
    %132 = arith.truncf %131 : vector<16x8xf32> to vector<16x8xbf16>
    %133 = vector.extract_strided_slice %56 {offsets = [16, 0], sizes = [8, 32], strides = [1, 1]} : vector<32x32xbf16> to vector<8x32xbf16>
    %cst_41 = arith.constant dense<0.000000e+00> : vector<16x32xf32>
    %134 = tpu.matmul %132, %133, %cst_41 {dimension_numbers = #tpu.dot_dimension_numbers<[1], [0], [0], [1], [0, 0, 1, 1], [], []>} : vector<16x8xbf16>, vector<8x32xbf16>, vector<16x32xf32> -> vector<16x32xf32>
    %135 = arith.addf %109, %134 : vector<16x32xf32>
    %136 = vector.extract_strided_slice %45 {offsets = [0, 0, 24], sizes = [2, 8, 8], strides = [1, 1, 1]} : vector<2x8x32xf32> to vector<2x8x8xf32>
    %137 = arith.truncf %136 : vector<2x8x8xf32> to vector<2x8x8xbf16>
    %138 = vector.extract_strided_slice %46 {offsets = [0, 0, 24], sizes = [2, 8, 8], strides = [1, 1, 1]} : vector<2x8x32xf32> to vector<2x8x8xf32>
    %139 = arith.truncf %138 : vector<2x8x8xf32> to vector<2x8x8xbf16>
    "tpu.trace_start"() <{level = 10 : i32, message = "bqd,bkd->bqk"}> : () -> ()
    %cst_42 = arith.constant dense<0.000000e+00> : vector<2x8x8xf32>
    %140 = tpu.matmul %137, %139, %cst_42 {dimension_numbers = #tpu.dot_dimension_numbers<[2], [2], [1], [1], [0, 0, 0, 1, 1, 1], [0], [0]>} : vector<2x8x8xbf16>, vector<2x8x8xbf16>, vector<2x8x8xf32> -> vector<2x8x8xf32>
    "tpu.trace_stop"() : () -> ()
    %141 = vector.broadcast %54 : vector<1x8x8xf32> to vector<2x8x8xf32>
    %142 = arith.addf %140, %141 : vector<2x8x8xf32>
    %cst_43 = arith.constant dense<0xFF800000> : vector<2x8xf32>
    %143 = vector.multi_reduction <maximumf>, %142, %cst_43 [2] : vector<2x8x8xf32> to vector<2x8xf32>
    %144 = vector.shape_cast %143 : vector<2x8xf32> to vector<2x8x1xf32>
    %145 = vector.broadcast %144 : vector<2x8x1xf32> to vector<2x8x8xf32>
    %146 = arith.subf %142, %145 : vector<2x8x8xf32>
    %147 = math.exp %146 : vector<2x8x8xf32>
    %cst_44 = arith.constant dense<0.000000e+00> : vector<2x8xf32>
    %148 = vector.multi_reduction <add>, %147, %cst_44 [2] : vector<2x8x8xf32> to vector<2x8xf32>
    %149 = vector.shape_cast %148 : vector<2x8xf32> to vector<2x8x1xf32>
    %150 = tpu.reciprocal %149 {approx = true} : vector<2x8x1xf32> -> vector<2x8x1xf32>
    %151 = vector.broadcast %150 : vector<2x8x1xf32> to vector<2x8x8xf32>
    %152 = arith.mulf %147, %151 : vector<2x8x8xf32>
    %153 = arith.truncf %152 : vector<2x8x8xf32> to vector<2x8x8xbf16>
    %154 = vector.extract_strided_slice %47 {offsets = [0, 0, 24], sizes = [2, 8, 8], strides = [1, 1, 1]} : vector<2x8x32xf32> to vector<2x8x8xf32>
    %155 = arith.truncf %154 : vector<2x8x8xf32> to vector<2x8x8xbf16>
    "tpu.trace_start"() <{level = 10 : i32, message = "bqk,bkd->bqd"}> : () -> ()
    %cst_45 = arith.constant dense<0.000000e+00> : vector<2x8x8xf32>
    %156 = tpu.matmul %153, %155, %cst_45 {dimension_numbers = #tpu.dot_dimension_numbers<[2], [1], [1], [2], [0, 0, 0, 1, 1, 2], [0], [0]>} : vector<2x8x8xbf16>, vector<2x8x8xbf16>, vector<2x8x8xf32> -> vector<2x8x8xf32>
    "tpu.trace_stop"() : () -> ()
    %157 = vector.shape_cast %156 : vector<2x8x8xf32> to vector<16x8xf32>
    %158 = arith.truncf %157 : vector<16x8xf32> to vector<16x8xbf16>
    %159 = vector.extract_strided_slice %56 {offsets = [24, 0], sizes = [8, 32], strides = [1, 1]} : vector<32x32xbf16> to vector<8x32xbf16>
    %cst_46 = arith.constant dense<0.000000e+00> : vector<16x32xf32>
    %160 = tpu.matmul %158, %159, %cst_46 {dimension_numbers = #tpu.dot_dimension_numbers<[1], [0], [0], [1], [0, 0, 1, 1], [], []>} : vector<16x8xbf16>, vector<8x32xbf16>, vector<16x32xf32> -> vector<16x32xf32>
    %161 = arith.addf %135, %160 : vector<16x32xf32>
    %c0_47 = arith.constant 0 : index
    %c0_48 = arith.constant 0 : index
    %c0_49 = arith.constant 0 : index
    %162 = vector.load %arg10[%c0_47, %c0_48, %c0_49] : memref<1x1x32xf32, #tpu.memory_space<vmem>>, vector<1x1x32xf32>
    %163 = vector.shape_cast %162 : vector<1x1x32xf32> to vector<1x32xf32>
    %164 = vector.broadcast %163 : vector<1x32xf32> to vector<16x32xf32>
    %165 = arith.addf %161, %164 : vector<16x32xf32>
    %166 = vector.shape_cast %165 : vector<16x32xf32> to vector<2x8x32xf32>
    %167 = arith.addf %4, %166 : vector<2x8x32xf32>
    %c0_50 = arith.constant 0 : index
    %c0_51 = arith.constant 0 : index
    %c0_52 = arith.constant 0 : index
    %168 = vector.load %arg11[%c0_50, %c0_51, %c0_52] : memref<1x1x32xf32, #tpu.memory_space<vmem>>, vector<1x1x32xf32>
    %169 = vector.shape_cast %168 : vector<1x1x32xf32> to vector<1x32xf32>
    %c0_53 = arith.constant 0 : index
    %c0_54 = arith.constant 0 : index
    %c0_55 = arith.constant 0 : index
    %170 = vector.load %arg12[%c0_53, %c0_54, %c0_55] : memref<1x1x32xf32, #tpu.memory_space<vmem>>, vector<1x1x32xf32>
    %171 = vector.shape_cast %170 : vector<1x1x32xf32> to vector<1x32xf32>
    %cst_56 = arith.constant dense<0.000000e+00> : vector<2x8xf32>
    %172 = vector.multi_reduction <add>, %167, %cst_56 [2] : vector<2x8x32xf32> to vector<2x8xf32>
    %173 = vector.shape_cast %172 : vector<2x8xf32> to vector<2x8x1xf32>
    %cst_57 = arith.constant 3.200000e+01 : f32
    %174 = vector.broadcast %cst_57 : f32 to vector<2x8x1xf32>
    %175 = arith.divf %173, %174 : vector<2x8x1xf32>
    %176 = vector.broadcast %175 : vector<2x8x1xf32> to vector<2x8x32xf32>
    %177 = arith.subf %167, %176 : vector<2x8x32xf32>
    %178 = arith.mulf %177, %177 : vector<2x8x32xf32>
    %cst_58 = arith.constant dense<0.000000e+00> : vector<2x8xf32>
    %179 = vector.multi_reduction <add>, %178, %cst_58 [2] : vector<2x8x32xf32> to vector<2x8xf32>
    %180 = vector.shape_cast %179 : vector<2x8xf32> to vector<2x8x1xf32>
    %cst_59 = arith.constant 3.200000e+01 : f32
    %181 = vector.broadcast %cst_59 : f32 to vector<2x8x1xf32>
    %182 = arith.divf %180, %181 : vector<2x8x1xf32>
    %183 = vector.broadcast %175 : vector<2x8x1xf32> to vector<2x8x32xf32>
    %184 = arith.subf %167, %183 : vector<2x8x32xf32>
    %cst_60 = arith.constant 9.99999974E-6 : f32
    %185 = vector.broadcast %cst_60 : f32 to vector<2x8x1xf32>
    %186 = arith.addf %182, %185 : vector<2x8x1xf32>
    %187 = math.rsqrt %186 : vector<2x8x1xf32>
    %188 = vector.broadcast %187 : vector<2x8x1xf32> to vector<2x8x32xf32>
    %189 = arith.mulf %184, %188 : vector<2x8x32xf32>
    %190 = vector.shape_cast %169 : vector<1x32xf32> to vector<1x1x32xf32>
    %191 = vector.broadcast %190 : vector<1x1x32xf32> to vector<2x8x32xf32>
    %192 = arith.mulf %189, %191 : vector<2x8x32xf32>
    %193 = vector.shape_cast %171 : vector<1x32xf32> to vector<1x1x32xf32>
    %194 = vector.broadcast %193 : vector<1x1x32xf32> to vector<2x8x32xf32>
    %195 = arith.addf %192, %194 : vector<2x8x32xf32>
    %196 = vector.shape_cast %195 : vector<2x8x32xf32> to vector<16x32xf32>
    %197 = arith.truncf %196 : vector<16x32xf32> to vector<16x32xbf16>
    %c0_61 = arith.constant 0 : index
    %c0_62 = arith.constant 0 : index
    %c0_63 = arith.constant 0 : index
    %198 = vector.load %arg13[%c0_61, %c0_62, %c0_63] : memref<1x32x128xbf16, #tpu.memory_space<vmem>>, vector<1x32x128xbf16>
    %199 = vector.shape_cast %198 : vector<1x32x128xbf16> to vector<32x128xbf16>
    %cst_64 = arith.constant dense<0.000000e+00> : vector<16x128xf32>
    %200 = tpu.matmul %197, %199, %cst_64 {dimension_numbers = #tpu.dot_dimension_numbers<[1], [0], [0], [1], [0, 0, 1, 1], [], []>} : vector<16x32xbf16>, vector<32x128xbf16>, vector<16x128xf32> -> vector<16x128xf32>
    %c0_65 = arith.constant 0 : index
    %c0_66 = arith.constant 0 : index
    %c0_67 = arith.constant 0 : index
    %201 = vector.load %arg14[%c0_65, %c0_66, %c0_67] : memref<1x1x128xf32, #tpu.memory_space<vmem>>, vector<1x1x128xf32>
    %202 = vector.shape_cast %201 : vector<1x1x128xf32> to vector<1x128xf32>
    %203 = vector.broadcast %202 : vector<1x128xf32> to vector<16x128xf32>
    %204 = arith.addf %200, %203 : vector<16x128xf32>
    %cst_68 = arith.constant 1.702000e+00 : f32
    %205 = vector.broadcast %cst_68 : f32 to vector<16x128xf32>
    %206 = arith.mulf %205, %204 : vector<16x128xf32>
    %207 = arith.negf %206 : vector<16x128xf32>
    %208 = math.exp %207 : vector<16x128xf32>
    %cst_69 = arith.constant 1.000000e+00 : f32
    %209 = vector.broadcast %cst_69 : f32 to vector<16x128xf32>
    %210 = arith.addf %209, %208 : vector<16x128xf32>
    %211 = arith.divf %209, %210 : vector<16x128xf32>
    %212 = arith.mulf %204, %211 : vector<16x128xf32>
    %213 = arith.truncf %212 : vector<16x128xf32> to vector<16x128xbf16>
    %c0_70 = arith.constant 0 : index
    %c0_71 = arith.constant 0 : index
    %c0_72 = arith.constant 0 : index
    %214 = vector.load %arg15[%c0_70, %c0_71, %c0_72] : memref<1x128x32xbf16, #tpu.memory_space<vmem>>, vector<1x128x32xbf16>
    %215 = vector.shape_cast %214 : vector<1x128x32xbf16> to vector<128x32xbf16>
    %cst_73 = arith.constant dense<0.000000e+00> : vector<16x32xf32>
    %216 = tpu.matmul %213, %215, %cst_73 {dimension_numbers = #tpu.dot_dimension_numbers<[1], [0], [0], [1], [0, 0, 1, 1], [], []>} : vector<16x128xbf16>, vector<128x32xbf16>, vector<16x32xf32> -> vector<16x32xf32>
    %c0_74 = arith.constant 0 : index
    %c0_75 = arith.constant 0 : index
    %c0_76 = arith.constant 0 : index
    %217 = vector.load %arg16[%c0_74, %c0_75, %c0_76] : memref<1x1x32xf32, #tpu.memory_space<vmem>>, vector<1x1x32xf32>
    %218 = vector.shape_cast %217 : vector<1x1x32xf32> to vector<1x32xf32>
    %219 = vector.broadcast %218 : vector<1x32xf32> to vector<16x32xf32>
    %220 = arith.addf %216, %219 : vector<16x32xf32>
    %221 = vector.shape_cast %220 : vector<16x32xf32> to vector<2x8x32xf32>
    %222 = arith.addf %167, %221 : vector<2x8x32xf32>
    %c0_77 = arith.constant 0 : index
    %c0_78 = arith.constant 0 : index
    %c0_79 = arith.constant 0 : index
    %223 = vector.load %arg21[%c0_77, %c0_78, %c0_79] : memref<2x8x32xf32, #tpu.memory_space<vmem>>, vector<2x8x32xf32>
    tpu.vector_store %arg21[%c0_77, %c0_78, %c0_79], %222 {strides = array<i32>} : memref<2x8x32xf32, #tpu.memory_space<vmem>>, vector<2x8x32xf32>,
    %c1_i32 = arith.constant 1 : i32
    %224 = arith.cmpi eq, %arg1, %c1_i32 : i32
    %225 = arith.extui %224 : i1 to i32
    %c0_i32_80 = arith.constant 0 : i32
    %226 = arith.cmpi ne, %225, %c0_i32_80 : i32
    scf.if %226 {
      %c0_i32_81 = arith.constant 0 : i32
      %227 = arith.addi %0, %c0_i32_81 : i32
      %228 = arith.index_cast %227 : i32 to index
      %229 = memref.load %arg2[%228] : memref<2xi32, #tpu.memory_space<smem>>
      %230 = tpu.iota {dimensions = array<i32: 0>} : vector<8x1xi32>
      %231 = vector.broadcast %229 : i32 to vector<8x1xi32>
      %232 = arith.cmpi eq, %230, %231 : vector<8x1xi32>
      %233 = vector.extract_strided_slice %222 {offsets = [0, 0, 0], sizes = [1, 8, 32], strides = [1, 1, 1]} : vector<2x8x32xf32> to vector<1x8x32xf32>
      %234 = vector.shape_cast %233 : vector<1x8x32xf32> to vector<8x32xf32>
      %cst_82 = arith.constant 0.000000e+00 : f32
      %235 = vector.shape_cast %232 : vector<8x1xi1> to vector<8x1xi1>
      %236 = vector.broadcast %235 : vector<8x1xi1> to vector<8x32xi1>
      %237 = vector.broadcast %cst_82 : f32 to vector<8x32xf32>
      %238 = arith.select %236, %234, %237 : vector<8x32xi1>, vector<8x32xf32>
      %cst_83 = arith.constant dense<0.000000e+00> : vector<32xf32>
      %239 = vector.multi_reduction <add>, %238, %cst_83 [0] : vector<8x32xf32> to vector<32xf32>
      %240 = vector.shape_cast %239 : vector<32xf32> to vector<1x32xf32>
      %c1_i32_84 = arith.constant 1 : i32
      %241 = arith.addi %0, %c1_i32_84 : i32
      %242 = arith.index_cast %241 : i32 to index
      %243 = memref.load %arg2[%242] : memref<2xi32, #tpu.memory_space<smem>>
      %244 = tpu.iota {dimensions = array<i32: 0>} : vector<8x1xi32>
      %245 = vector.broadcast %243 : i32 to vector<8x1xi32>
      %246 = arith.cmpi eq, %244, %245 : vector<8x1xi32>
      %247 = vector.extract_strided_slice %222 {offsets = [1, 0, 0], sizes = [1, 8, 32], strides = [1, 1, 1]} : vector<2x8x32xf32> to vector<1x8x32xf32>
      %248 = vector.shape_cast %247 : vector<1x8x32xf32> to vector<8x32xf32>
      %cst_85 = arith.constant 0.000000e+00 : f32
      %249 = vector.shape_cast %246 : vector<8x1xi1> to vector<8x1xi1>
      %250 = vector.broadcast %249 : vector<8x1xi1> to vector<8x32xi1>
      %251 = vector.broadcast %cst_85 : f32 to vector<8x32xf32>
      %252 = arith.select %250, %248, %251 : vector<8x32xi1>, vector<8x32xf32>
      %cst_86 = arith.constant dense<0.000000e+00> : vector<32xf32>
      %253 = vector.multi_reduction <add>, %252, %cst_86 [0] : vector<8x32xf32> to vector<32xf32>
      %254 = vector.shape_cast %253 : vector<32xf32> to vector<1x32xf32>
      %255 = tpu.concatenate %240, %254 in 0 : vector<1x32xf32>, vector<1x32xf32> -> vector<2x32xf32>
      %c0_87 = arith.constant 0 : index
      %c0_88 = arith.constant 0 : index
      %256 = vector.load %arg17[%c0_87, %c0_88] : memref<1x32xf32, #tpu.memory_space<vmem>>, vector<1x32xf32>
      %c0_89 = arith.constant 0 : index
      %c0_90 = arith.constant 0 : index
      %257 = vector.load %arg18[%c0_89, %c0_90] : memref<1x32xf32, #tpu.memory_space<vmem>>, vector<1x32xf32>
      %cst_91 = arith.constant dense<0.000000e+00> : vector<2xf32>
      %258 = vector.multi_reduction <add>, %255, %cst_91 [1] : vector<2x32xf32> to vector<2xf32>
      %259 = vector.shape_cast %258 : vector<2xf32> to vector<2x1xf32>
      %cst_92 = arith.constant 3.200000e+01 : f32
      %260 = vector.broadcast %cst_92 : f32 to vector<2x1xf32>
      %261 = arith.divf %259, %260 : vector<2x1xf32>
      %262 = vector.broadcast %261 : vector<2x1xf32> to vector<2x32xf32>
      %263 = arith.subf %255, %262 : vector<2x32xf32>
      %264 = arith.mulf %263, %263 : vector<2x32xf32>
      %cst_93 = arith.constant dense<0.000000e+00> : vector<2xf32>
      %265 = vector.multi_reduction <add>, %264, %cst_93 [1] : vector<2x32xf32> to vector<2xf32>
      %266 = vector.shape_cast %265 : vector<2xf32> to vector<2x1xf32>
      %cst_94 = arith.constant 3.200000e+01 : f32
      %267 = vector.broadcast %cst_94 : f32 to vector<2x1xf32>
      %268 = arith.divf %266, %267 : vector<2x1xf32>
      %269 = vector.broadcast %261 : vector<2x1xf32> to vector<2x32xf32>
      %270 = arith.subf %255, %269 : vector<2x32xf32>
      %cst_95 = arith.constant 9.99999974E-6 : f32
      %271 = vector.broadcast %cst_95 : f32 to vector<2x1xf32>
      %272 = arith.addf %268, %271 : vector<2x1xf32>
      %273 = math.rsqrt %272 : vector<2x1xf32>
      %274 = vector.broadcast %273 : vector<2x1xf32> to vector<2x32xf32>
      %275 = arith.mulf %270, %274 : vector<2x32xf32>
      %276 = vector.broadcast %256 : vector<1x32xf32> to vector<2x32xf32>
      %277 = arith.mulf %275, %276 : vector<2x32xf32>
      %278 = vector.broadcast %257 : vector<1x32xf32> to vector<2x32xf32>
      %279 = arith.addf %277, %278 : vector<2x32xf32>
      %280 = arith.truncf %279 : vector<2x32xf32> to vector<2x32xbf16>
      %c0_96 = arith.constant 0 : index
      %c0_97 = arith.constant 0 : index
      %281 = vector.load %arg19[%c0_96, %c0_97] : memref<32x32xbf16, #tpu.memory_space<vmem>>, vector<32x32xbf16>
      %cst_98 = arith.constant dense<0.000000e+00> : vector<2x32xf32>
      %282 = tpu.matmul %280, %281, %cst_98 {dimension_numbers = #tpu.dot_dimension_numbers<[1], [0], [0], [1], [0, 0, 1, 1], [], []>} : vector<2x32xbf16>, vector<32x32xbf16>, vector<2x32xf32> -> vector<2x32xf32>
      %c0_99 = arith.constant 0 : index
      %c0_100 = arith.constant 0 : index
      %283 = vector.load %arg20[%c0_99, %c0_100] : memref<2x32xf32, #tpu.memory_space<vmem>>, vector<2x32xf32>
      tpu.vector_store %arg20[%c0_99, %c0_100], %282 {strides = array<i32>} : memref<2x32xf32, #tpu.memory_space<vmem>>, vector<2x32xf32>,
    } else {
    }
    return
  }
  func.func @transform_0(%arg0: i32, %arg1: i32, %arg2: memref<2xi32, #tpu.memory_space<smem>>) -> (i32, i32, i32) {
    %c0_i32 = arith.constant 0 : i32
    %c0_i32_0 = arith.constant 0 : i32
    %c0_i32_1 = arith.constant 0 : i32
    return %arg0, %c0_i32, %c0_i32_0 : i32, i32, i32
  }
  func.func @transform_1(%arg0: i32, %arg1: i32, %arg2: memref<2xi32, #tpu.memory_space<smem>>) -> (i32, i32) {
    %c0_i32 = arith.constant 0 : i32
    %c0_i32_0 = arith.constant 0 : i32
    %c0_i32_1 = arith.constant 0 : i32
    return %c0_i32, %c0_i32_0 : i32, i32
  }
  func.func @transform_2(%arg0: i32, %arg1: i32, %arg2: memref<2xi32, #tpu.memory_space<smem>>) -> (i32, i32, i32) {
    %c0_i32 = arith.constant 0 : i32
    %c0_i32_0 = arith.constant 0 : i32
    %c0_i32_1 = arith.constant 0 : i32
    return %arg1, %c0_i32, %c0_i32_0 : i32, i32, i32
  }
  func.func @transform_3(%arg0: i32, %arg1: i32, %arg2: memref<2xi32, #tpu.memory_space<smem>>) -> (i32, i32, i32) {
    %c0_i32 = arith.constant 0 : i32
    %c0_i32_0 = arith.constant 0 : i32
    %c0_i32_1 = arith.constant 0 : i32
    return %arg1, %c0_i32, %c0_i32_0 : i32, i32, i32
  }
  func.func @transform_4(%arg0: i32, %arg1: i32, %arg2: memref<2xi32, #tpu.memory_space<smem>>) -> (i32, i32, i32) {
    %c0_i32 = arith.constant 0 : i32
    %c0_i32_0 = arith.constant 0 : i32
    %c0_i32_1 = arith.constant 0 : i32
    return %arg1, %c0_i32, %c0_i32_0 : i32, i32, i32
  }
  func.func @transform_5(%arg0: i32, %arg1: i32, %arg2: memref<2xi32, #tpu.memory_space<smem>>) -> (i32, i32, i32) {
    %c0_i32 = arith.constant 0 : i32
    %c0_i32_0 = arith.constant 0 : i32
    %c0_i32_1 = arith.constant 0 : i32
    return %arg1, %c0_i32, %c0_i32_0 : i32, i32, i32
  }
  func.func @transform_6(%arg0: i32, %arg1: i32, %arg2: memref<2xi32, #tpu.memory_space<smem>>) -> (i32, i32, i32) {
    %c0_i32 = arith.constant 0 : i32
    %c0_i32_0 = arith.constant 0 : i32
    %c0_i32_1 = arith.constant 0 : i32
    return %arg1, %c0_i32, %c0_i32_0 : i32, i32, i32
  }
  func.func @transform_7(%arg0: i32, %arg1: i32, %arg2: memref<2xi32, #tpu.memory_space<smem>>) -> (i32, i32, i32) {
    %c0_i32 = arith.constant 0 : i32
    %c0_i32_0 = arith.constant 0 : i32
    %c0_i32_1 = arith.constant 0 : i32
    return %arg1, %c0_i32, %c0_i32_0 : i32, i32, i32
  }
  func.func @transform_8(%arg0: i32, %arg1: i32, %arg2: memref<2xi32, #tpu.memory_space<smem>>) -> (i32, i32, i32) {
    %c0_i32 = arith.constant 0 : i32
    %c0_i32_0 = arith.constant 0 : i32
    %c0_i32_1 = arith.constant 0 : i32
    return %arg1, %c0_i32, %c0_i32_0 : i32, i32, i32
  }
  func.func @transform_9(%arg0: i32, %arg1: i32, %arg2: memref<2xi32, #tpu.memory_space<smem>>) -> (i32, i32, i32) {
    %c0_i32 = arith.constant 0 : i32
    %c0_i32_0 = arith.constant 0 : i32
    %c0_i32_1 = arith.constant 0 : i32
    return %arg1, %c0_i32, %c0_i32_0 : i32, i32, i32
  }
  func.func @transform_10(%arg0: i32, %arg1: i32, %arg2: memref<2xi32, #tpu.memory_space<smem>>) -> (i32, i32, i32) {
    %c0_i32 = arith.constant 0 : i32
    %c0_i32_0 = arith.constant 0 : i32
    %c0_i32_1 = arith.constant 0 : i32
    return %arg1, %c0_i32, %c0_i32_0 : i32, i32, i32
  }
  func.func @transform_11(%arg0: i32, %arg1: i32, %arg2: memref<2xi32, #tpu.memory_space<smem>>) -> (i32, i32, i32) {
    %c0_i32 = arith.constant 0 : i32
    %c0_i32_0 = arith.constant 0 : i32
    %c0_i32_1 = arith.constant 0 : i32
    return %arg1, %c0_i32, %c0_i32_0 : i32, i32, i32
  }
  func.func @transform_12(%arg0: i32, %arg1: i32, %arg2: memref<2xi32, #tpu.memory_space<smem>>) -> (i32, i32, i32) {
    %c0_i32 = arith.constant 0 : i32
    %c0_i32_0 = arith.constant 0 : i32
    %c0_i32_1 = arith.constant 0 : i32
    return %arg1, %c0_i32, %c0_i32_0 : i32, i32, i32
  }
  func.func @transform_13(%arg0: i32, %arg1: i32, %arg2: memref<2xi32, #tpu.memory_space<smem>>) -> (i32, i32, i32) {
    %c0_i32 = arith.constant 0 : i32
    %c0_i32_0 = arith.constant 0 : i32
    %c0_i32_1 = arith.constant 0 : i32
    return %arg1, %c0_i32, %c0_i32_0 : i32, i32, i32
  }
  func.func @transform_14(%arg0: i32, %arg1: i32, %arg2: memref<2xi32, #tpu.memory_space<smem>>) -> (i32, i32) {
    %c0_i32 = arith.constant 0 : i32
    %c0_i32_0 = arith.constant 0 : i32
    %c0_i32_1 = arith.constant 0 : i32
    return %c0_i32, %c0_i32_0 : i32, i32
  }
  func.func @transform_15(%arg0: i32, %arg1: i32, %arg2: memref<2xi32, #tpu.memory_space<smem>>) -> (i32, i32) {
    %c0_i32 = arith.constant 0 : i32
    %c0_i32_0 = arith.constant 0 : i32
    %c0_i32_1 = arith.constant 0 : i32
    return %c0_i32, %c0_i32_0 : i32, i32
  }
  func.func @transform_16(%arg0: i32, %arg1: i32, %arg2: memref<2xi32, #tpu.memory_space<smem>>) -> (i32, i32) {
    %c0_i32 = arith.constant 0 : i32
    %c0_i32_0 = arith.constant 0 : i32
    %c0_i32_1 = arith.constant 0 : i32
    return %c0_i32, %c0_i32_0 : i32, i32
  }
  func.func @transform_17(%arg0: i32, %arg1: i32, %arg2: memref<2xi32, #tpu.memory_space<smem>>) -> (i32, i32) {
    %c0_i32 = arith.constant 0 : i32
    %c0_i32_0 = arith.constant 0 : i32
    return %arg0, %c0_i32 : i32, i32
  }
}

</mosaic_0001>

<llo_original>
// kernel: tpu_custom_call.1
$region0: #{tpu_custom_call.1}
  #allocation0 [shape = 'u32[]', space=smem, size = 0x4, offset = 0x4, fixed_abs, tag = 'smem constant byte address 0x4 - core index']
  #allocation1 [shape = 'u32[144,128]{1,0:T(1,128)}', space=vmem, size = 0x12000, scoped, tag = 'internal scratch']
  #allocation2 [shape = 'f32[2,8,32]{2,1,0:T(8,128)}', space=vmem, size = 0x2000, scoped, tag = 'scratch operand']
  #allocation3 [shape = 's32[1]{0}', space=sflag, size = 0x4, scoped, tag = 'scoped memory for tpu_custom_call.1']
  #allocation4 [shape = 'u8[512]{0}', space=smem, size = 0x200, scoped, tag = 'prefetched SMEM operand 0']
  %s0 = inlined_call_operand.vmem [shape: s32[2], index: 0, kind: input, shape index: {}]
  %s1 = inlined_call_operand.vmem [shape: f32[2,8,32], index: 1, kind: input, shape index: {}]
  %s2 = inlined_call_operand.vmem [shape: f32[8,32], index: 2, kind: input, shape index: {}]
  %s3 = inlined_call_operand.vmem [shape: f32[2,1,32], index: 3, kind: input, shape index: {}]
  %s4 = inlined_call_operand.vmem [shape: f32[2,1,32], index: 4, kind: input, shape index: {}]
  %s5 = inlined_call_operand.vmem [shape: bf16[2,32,96], index: 5, kind: input, shape index: {}]
  %s6 = inlined_call_operand.vmem [shape: f32[2,1,96], index: 6, kind: input, shape index: {}]
  %s7 = inlined_call_operand.vmem [shape: bf16[2,32,32], index: 7, kind: input, shape index: {}]
  %s8 = inlined_call_operand.vmem [shape: f32[2,1,32], index: 8, kind: input, shape index: {}]
  %s9 = inlined_call_operand.vmem [shape: f32[2,1,32], index: 9, kind: input, shape index: {}]
  %s10 = inlined_call_operand.vmem [shape: f32[2,1,32], index: 10, kind: input, shape index: {}]
  %s11 = inlined_call_operand.vmem [shape: bf16[2,32,128], index: 11, kind: input, shape index: {}]
  %s12 = inlined_call_operand.vmem [shape: f32[2,1,128], index: 12, kind: input, shape index: {}]
  %s13 = inlined_call_operand.vmem [shape: bf16[2,128,32], index: 13, kind: input, shape index: {}]
  %s14 = inlined_call_operand.vmem [shape: f32[2,1,32], index: 14, kind: input, shape index: {}]
  %s15 = inlined_call_operand.vmem [shape: f32[1,32], index: 15, kind: input, shape index: {}]
  %s16 = inlined_call_operand.vmem [shape: f32[1,32], index: 16, kind: input, shape index: {}]
  %s17 = inlined_call_operand.vmem [shape: bf16[32,32], index: 17, kind: input, shape index: {}]
  %s18 = inlined_call_operand.hbm [shape: f32[2,32], index: 18, kind: output, shape index: {}]
  %s19 = sld [smem:[#allocation0]]
  $region109: #{tpu_custom_call.1} parent=0
    _
  %s21 = ssub.s32 1, %s19
  %s22 = scalar_select 0, %s21, %s19
  %s23 = sshll.u32 %s0, 4
  %s24 = int_to_ptr.vmem [resolvable:$true] %s23
  %26 = dma.vmem_to_smem %s24, 16, [#allocation4], [#allocation3]
  %27 = dma.done [#allocation3], 16
  %28 = sfence
  $region1: #{tpu_custom_call.1} parent=0
    #allocation5 [shape = 'u8[1024]{0}', space=vmem, size = 0x400, scoped, tag = 'output window, operand 0, single buffered']
    #allocation6 [shape = 's32[2]{0}', space=sflag, size = 0x8, scoped, tag = 'scoped memory for tpu_custom_call.1']
    %29 = vsyncpa [#allocation6], 0
    loop: start=0, step=1, limit=4
    $region2: #{tpu_custom_call.1} parent=1 // loop_pre_header
      _
    $region3: #{tpu_custom_call.1} parent=1 // loop_header
      %s31 = sphi 0, %s35
      %p32 = scmp.ge.s32.totalorder %s31, 4
      %s38 = sphi 0, %s50
      %s39 = sphi 0, %s46
      %s40 = sphi 0, %s38
      %s41 = sphi 0, %s39
      %s42 = sphi 0, %s40
      %s43 = sphi 0, %s41
      %s53 = sphi 0, %s55
      %s56 = sphi 0, %s53
      %s57 = sphi 0, %s56
      %s73 = sphi 0, %s57
      %s77 = sphi 0, %s77
      %s79 = sphi 0, %s77
      %s80 = sphi 0, %s79
      %s94 = sphi 0, %s80
      %s100 = sphi 0, %s102
      %s103 = sphi 0, %s100
      %s104 = sphi 0, %s103
      %s120 = sphi 0, %s104
      %s126 = sphi 0, %s128
      %s129 = sphi 0, %s126
      %s130 = sphi 0, %s129
      %s146 = sphi 0, %s130
      %s152 = sphi 0, %s154
      %s155 = sphi 0, %s152
      %s156 = sphi 0, %s155
      %s172 = sphi 0, %s156
      %s178 = sphi 0, %s180
      %s181 = sphi 0, %s178
      %s182 = sphi 0, %s181
      %s198 = sphi 0, %s182
      %s204 = sphi 0, %s206
      %s207 = sphi 0, %s204
      %s208 = sphi 0, %s207
      %s224 = sphi 0, %s208
      %s230 = sphi 0, %s232
      %s233 = sphi 0, %s230
      %s234 = sphi 0, %s233
      %s250 = sphi 0, %s234
      %s256 = sphi 0, %s258
      %s259 = sphi 0, %s256
      %s260 = sphi 0, %s259
      %s276 = sphi 0, %s260
      %s282 = sphi 0, %s284
      %s285 = sphi 0, %s282
      %s286 = sphi 0, %s285
      %s302 = sphi 0, %s286
      %s308 = sphi 0, %s310
      %s311 = sphi 0, %s308
      %s312 = sphi 0, %s311
      %s328 = sphi 0, %s312
      %s334 = sphi 0, %s336
      %s337 = sphi 0, %s334
      %s338 = sphi 0, %s337
      %s354 = sphi 0, %s338
      %s360 = sphi 0, %s362
      %s363 = sphi 0, %s360
      %s364 = sphi 0, %s363
      %s380 = sphi 0, %s364
      %s386 = sphi 0, %s388
      %s389 = sphi 0, %s386
      %s390 = sphi 0, %s389
      %s406 = sphi 0, %s390
      %s410 = sphi 0, %s410
      %s412 = sphi 0, %s410
      %s413 = sphi 0, %s412
      %s427 = sphi 0, %s413
      %s431 = sphi 0, %s431
      %s433 = sphi 0, %s431
      %s434 = sphi 0, %s433
      %s448 = sphi 0, %s434
      %s452 = sphi 0, %s452
      %s454 = sphi 0, %s452
      %s455 = sphi 0, %s454
      %s469 = sphi 0, %s455
      %s475 = sphi 0, %s477
      %s478 = sphi 0, %s475
      %s479 = sphi 0, %s478
      %s495 = sphi 0, %s479
    $region4: #{tpu_custom_call.1} parent=1 // loop_header_branch
      %34 = sbr.rel (%p32) target = $region8
    $region5: #{tpu_custom_call.1} parent=1 // loop_body
      %s36 = ssub.s32 %s31, 1
      %s37 = ssub.s32 %s31, 2
      %s44 = sadd.s32 1, %s39
      %p45 = scmp.ge.s32.totalorder %s44, 2
      %s46 = scalar_select %p45, 0, %s44
      %s47 = sadd.s32 1, %s38
      %s48 = scalar_select %p45, %s47, %s38
      %p49 = scmp.ge.s32.totalorder %s48, 1
      %s50 = scalar_select %p49, 0, %s48
      %s51 = ssub.s32 %s38, %s50
      %p52 = scmp.eq.s32.totalorder %s51, 0
      %s54 = sadd.s32 %s53, 1
      %s55 = scalar_select %p52, %s53, %s54
      %p58 = pneg %p52
      %p59 = scmp.eq.s32.totalorder %s31, 1
      %p60 = por %p58, %p59
      %p61 = scmp.ne.s32.totalorder %s53, %s56
      %p62 = scmp.eq.s32.totalorder %s31, 0
      %p63 = por %p61, %p62
      %p64 = scmp.ne.s32.totalorder %s53, %s56
      %p65 = scmp.eq.s32.totalorder %s36, 1
      %p66 = por %p64, %p65
      %p67 = scmp.ne.s32.totalorder %s56, %s57
      %p68 = scmp.eq.s32.totalorder %s36, 0
      %p69 = por %p67, %p68
      %p70 = scmp.ne.s32.totalorder %s56, %s57
      %p71 = scmp.eq.s32.totalorder %s37, 1
      %p72 = por %p70, %p71
      %p74 = scmp.ne.s32.totalorder %s57, %s73
      %p75 = scmp.eq.s32.totalorder %s37, 0
      %p76 = por %p74, %p75
      %s78 = sadd.s32 %s77, 1
      %p81 = scmp.eq.s32.totalorder %s31, 1
      %p82 = scmp.ne.s32.totalorder %s77, %s79
      %p83 = scmp.eq.s32.totalorder %s31, 0
      %p84 = por %p82, %p83
      %p85 = scmp.ne.s32.totalorder %s77, %s79
      %p86 = scmp.eq.s32.totalorder %s36, 1
      %p87 = por %p85, %p86
      %p88 = scmp.ne.s32.totalorder %s79, %s80
      %p89 = scmp.eq.s32.totalorder %s36, 0
      %p90 = por %p88, %p89
      %p91 = scmp.ne.s32.totalorder %s79, %s80
      %p92 = scmp.eq.s32.totalorder %s37, 1
      %p93 = por %p91, %p92
      %p95 = scmp.ne.s32.totalorder %s80, %s94
      %p96 = scmp.eq.s32.totalorder %s37, 0
      %p97 = por %p95, %p96
      %s98 = ssub.s32 %s39, %s46
      %p99 = scmp.eq.s32.totalorder %s98, 0
      %s101 = sadd.s32 %s100, 1
      %s102 = scalar_select %p99, %s100, %s101
      %p105 = pneg %p99
      %p106 = scmp.eq.s32.totalorder %s31, 1
      %p107 = por %p105, %p106
      %p108 = scmp.ne.s32.totalorder %s100, %s103
      %p109 = scmp.eq.s32.totalorder %s31, 0
      %p110 = por %p108, %p109
      %p111 = scmp.ne.s32.totalorder %s100, %s103
      %p112 = scmp.eq.s32.totalorder %s36, 1
      %p113 = por %p111, %p112
      %p114 = scmp.ne.s32.totalorder %s103, %s104
      %p115 = scmp.eq.s32.totalorder %s36, 0
      %p116 = por %p114, %p115
      %p117 = scmp.ne.s32.totalorder %s103, %s104
      %p118 = scmp.eq.s32.totalorder %s37, 1
      %p119 = por %p117, %p118
      %p121 = scmp.ne.s32.totalorder %s104, %s120
      %p122 = scmp.eq.s32.totalorder %s37, 0
      %p123 = por %p121, %p122
      %s124 = ssub.s32 %s39, %s46
      %p125 = scmp.eq.s32.totalorder %s124, 0
      %s127 = sadd.s32 %s126, 1
      %s128 = scalar_select %p125, %s126, %s127
      %p131 = pneg %p125
      %p132 = scmp.eq.s32.totalorder %s31, 1
      %p133 = por %p131, %p132
      %p134 = scmp.ne.s32.totalorder %s126, %s129
      %p135 = scmp.eq.s32.totalorder %s31, 0
      %p136 = por %p134, %p135
      %p137 = scmp.ne.s32.totalorder %s126, %s129
      %p138 = scmp.eq.s32.totalorder %s36, 1
      %p139 = por %p137, %p138
      %p140 = scmp.ne.s32.totalorder %s129, %s130
      %p141 = scmp.eq.s32.totalorder %s36, 0
      %p142 = por %p140, %p141
      %p143 = scmp.ne.s32.totalorder %s129, %s130
      %p144 = scmp.eq.s32.totalorder %s37, 1
      %p145 = por %p143, %p144
      %p147 = scmp.ne.s32.totalorder %s130, %s146
      %p148 = scmp.eq.s32.totalorder %s37, 0
      %p149 = por %p147, %p148
      %s150 = ssub.s32 %s39, %s46
      %p151 = scmp.eq.s32.totalorder %s150, 0
      %s153 = sadd.s32 %s152, 1
      %s154 = scalar_select %p151, %s152, %s153
      %p157 = pneg %p151
      %p158 = scmp.eq.s32.totalorder %s31, 1
      %p159 = por %p157, %p158
      %p160 = scmp.ne.s32.totalorder %s152, %s155
      %p161 = scmp.eq.s32.totalorder %s31, 0
      %p162 = por %p160, %p161
      %p163 = scmp.ne.s32.totalorder %s152, %s155
      %p164 = scmp.eq.s32.totalorder %s36, 1
      %p165 = por %p163, %p164
      %p166 = scmp.ne.s32.totalorder %s155, %s156
      %p167 = scmp.eq.s32.totalorder %s36, 0
      %p168 = por %p166, %p167
      %p169 = scmp.ne.s32.totalorder %s155, %s156
      %p170 = scmp.eq.s32.totalorder %s37, 1
      %p171 = por %p169, %p170
      %p173 = scmp.ne.s32.totalorder %s156, %s172
      %p174 = scmp.eq.s32.totalorder %s37, 0
      %p175 = por %p173, %p174
      %s176 = ssub.s32 %s39, %s46
      %p177 = scmp.eq.s32.totalorder %s176, 0
      %s179 = sadd.s32 %s178, 1
      %s180 = scalar_select %p177, %s178, %s179
      %p183 = pneg %p177
      %p184 = scmp.eq.s32.totalorder %s31, 1
      %p185 = por %p183, %p184
      %p186 = scmp.ne.s32.totalorder %s178, %s181
      %p187 = scmp.eq.s32.totalorder %s31, 0
      %p188 = por %p186, %p187
      %p189 = scmp.ne.s32.totalorder %s178, %s181
      %p190 = scmp.eq.s32.totalorder %s36, 1
      %p191 = por %p189, %p190
      %p192 = scmp.ne.s32.totalorder %s181, %s182
      %p193 = scmp.eq.s32.totalorder %s36, 0
      %p194 = por %p192, %p193
      %p195 = scmp.ne.s32.totalorder %s181, %s182
      %p196 = scmp.eq.s32.totalorder %s37, 1
      %p197 = por %p195, %p196
      %p199 = scmp.ne.s32.totalorder %s182, %s198
      %p200 = scmp.eq.s32.totalorder %s37, 0
      %p201 = por %p199, %p200
      %s202 = ssub.s32 %s39, %s46
      %p203 = scmp.eq.s32.totalorder %s202, 0
      %s205 = sadd.s32 %s204, 1
      %s206 = scalar_select %p203, %s204, %s205
      %p209 = pneg %p203
      %p210 = scmp.eq.s32.totalorder %s31, 1
      %p211 = por %p209, %p210
      %p212 = scmp.ne.s32.totalorder %s204, %s207
      %p213 = scmp.eq.s32.totalorder %s31, 0
      %p214 = por %p212, %p213
      %p215 = scmp.ne.s32.totalorder %s204, %s207
      %p216 = scmp.eq.s32.totalorder %s36, 1
      %p217 = por %p215, %p216
      %p218 = scmp.ne.s32.totalorder %s207, %s208
      %p219 = scmp.eq.s32.totalorder %s36, 0
      %p220 = por %p218, %p219
      %p221 = scmp.ne.s32.totalorder %s207, %s208
      %p222 = scmp.eq.s32.totalorder %s37, 1
      %p223 = por %p221, %p222
      %p225 = scmp.ne.s32.totalorder %s208, %s224
      %p226 = scmp.eq.s32.totalorder %s37, 0
      %p227 = por %p225, %p226
      %s228 = ssub.s32 %s39, %s46
      %p229 = scmp.eq.s32.totalorder %s228, 0
      %s231 = sadd.s32 %s230, 1
      %s232 = scalar_select %p229, %s230, %s231
      %p235 = pneg %p229
      %p236 = scmp.eq.s32.totalorder %s31, 1
      %p237 = por %p235, %p236
      %p238 = scmp.ne.s32.totalorder %s230, %s233
      %p239 = scmp.eq.s32.totalorder %s31, 0
      %p240 = por %p238, %p239
      %p241 = scmp.ne.s32.totalorder %s230, %s233
      %p242 = scmp.eq.s32.totalorder %s36, 1
      %p243 = por %p241, %p242
      %p244 = scmp.ne.s32.totalorder %s233, %s234
      %p245 = scmp.eq.s32.totalorder %s36, 0
      %p246 = por %p244, %p245
      %p247 = scmp.ne.s32.totalorder %s233, %s234
      %p248 = scmp.eq.s32.totalorder %s37, 1
      %p249 = por %p247, %p248
      %p251 = scmp.ne.s32.totalorder %s234, %s250
      %p252 = scmp.eq.s32.totalorder %s37, 0
      %p253 = por %p251, %p252
      %s254 = ssub.s32 %s39, %s46
      %p255 = scmp.eq.s32.totalorder %s254, 0
      %s257 = sadd.s32 %s256, 1
      %s258 = scalar_select %p255, %s256, %s257
      %p261 = pneg %p255
      %p262 = scmp.eq.s32.totalorder %s31, 1
      %p263 = por %p261, %p262
      %p264 = scmp.ne.s32.totalorder %s256, %s259
      %p265 = scmp.eq.s32.totalorder %s31, 0
      %p266 = por %p264, %p265
      %p267 = scmp.ne.s32.totalorder %s256, %s259
      %p268 = scmp.eq.s32.totalorder %s36, 1
      %p269 = por %p267, %p268
      %p270 = scmp.ne.s32.totalorder %s259, %s260
      %p271 = scmp.eq.s32.totalorder %s36, 0
      %p272 = por %p270, %p271
      %p273 = scmp.ne.s32.totalorder %s259, %s260
      %p274 = scmp.eq.s32.totalorder %s37, 1
      %p275 = por %p273, %p274
      %p277 = scmp.ne.s32.totalorder %s260, %s276
      %p278 = scmp.eq.s32.totalorder %s37, 0
      %p279 = por %p277, %p278
      %s280 = ssub.s32 %s39, %s46
      %p281 = scmp.eq.s32.totalorder %s280, 0
      %s283 = sadd.s32 %s282, 1
      %s284 = scalar_select %p281, %s282, %s283
      %p287 = pneg %p281
      %p288 = scmp.eq.s32.totalorder %s31, 1
      %p289 = por %p287, %p288
      %p290 = scmp.ne.s32.totalorder %s282, %s285
      %p291 = scmp.eq.s32.totalorder %s31, 0
      %p292 = por %p290, %p291
      %p293 = scmp.ne.s32.totalorder %s282, %s285
      %p294 = scmp.eq.s32.totalorder %s36, 1
      %p295 = por %p293, %p294
      %p296 = scmp.ne.s32.totalorder %s285, %s286
      %p297 = scmp.eq.s32.totalorder %s36, 0
      %p298 = por %p296, %p297
      %p299 = scmp.ne.s32.totalorder %s285, %s286
      %p300 = scmp.eq.s32.totalorder %s37, 1
      %p301 = por %p299, %p300
      %p303 = scmp.ne.s32.totalorder %s286, %s302
      %p304 = scmp.eq.s32.totalorder %s37, 0
      %p305 = por %p303, %p304
      %s306 = ssub.s32 %s39, %s46
      %p307 = scmp.eq.s32.totalorder %s306, 0
      %s309 = sadd.s32 %s308, 1
      %s310 = scalar_select %p307, %s308, %s309
      %p313 = pneg %p307
      %p314 = scmp.eq.s32.totalorder %s31, 1
      %p315 = por %p313, %p314
      %p316 = scmp.ne.s32.totalorder %s308, %s311
      %p317 = scmp.eq.s32.totalorder %s31, 0
      %p318 = por %p316, %p317
      %p319 = scmp.ne.s32.totalorder %s308, %s311
      %p320 = scmp.eq.s32.totalorder %s36, 1
      %p321 = por %p319, %p320
      %p322 = scmp.ne.s32.totalorder %s311, %s312
      %p323 = scmp.eq.s32.totalorder %s36, 0
      %p324 = por %p322, %p323
      %p325 = scmp.ne.s32.totalorder %s311, %s312
      %p326 = scmp.eq.s32.totalorder %s37, 1
      %p327 = por %p325, %p326
      %p329 = scmp.ne.s32.totalorder %s312, %s328
      %p330 = scmp.eq.s32.totalorder %s37, 0
      %p331 = por %p329, %p330
      %s332 = ssub.s32 %s39, %s46
      %p333 = scmp.eq.s32.totalorder %s332, 0
      %s335 = sadd.s32 %s334, 1
      %s336 = scalar_select %p333, %s334, %s335
      %p339 = pneg %p333
      %p340 = scmp.eq.s32.totalorder %s31, 1
      %p341 = por %p339, %p340
      %p342 = scmp.ne.s32.totalorder %s334, %s337
      %p343 = scmp.eq.s32.totalorder %s31, 0
      %p344 = por %p342, %p343
      %p345 = scmp.ne.s32.totalorder %s334, %s337
      %p346 = scmp.eq.s32.totalorder %s36, 1
      %p347 = por %p345, %p346
      %p348 = scmp.ne.s32.totalorder %s337, %s338
      %p349 = scmp.eq.s32.totalorder %s36, 0
      %p350 = por %p348, %p349
      %p351 = scmp.ne.s32.totalorder %s337, %s338
      %p352 = scmp.eq.s32.totalorder %s37, 1
      %p353 = por %p351, %p352
      %p355 = scmp.ne.s32.totalorder %s338, %s354
      %p356 = scmp.eq.s32.totalorder %s37, 0
      %p357 = por %p355, %p356
      %s358 = ssub.s32 %s39, %s46
      %p359 = scmp.eq.s32.totalorder %s358, 0
      %s361 = sadd.s32 %s360, 1
      %s362 = scalar_select %p359, %s360, %s361
      %p365 = pneg %p359
      %p366 = scmp.eq.s32.totalorder %s31, 1
      %p367 = por %p365, %p366
      %p368 = scmp.ne.s32.totalorder %s360, %s363
      %p369 = scmp.eq.s32.totalorder %s31, 0
      %p370 = por %p368, %p369
      %p371 = scmp.ne.s32.totalorder %s360, %s363
      %p372 = scmp.eq.s32.totalorder %s36, 1
      %p373 = por %p371, %p372
      %p374 = scmp.ne.s32.totalorder %s363, %s364
      %p375 = scmp.eq.s32.totalorder %s36, 0
      %p376 = por %p374, %p375
      %p377 = scmp.ne.s32.totalorder %s363, %s364
      %p378 = scmp.eq.s32.totalorder %s37, 1
      %p379 = por %p377, %p378
      %p381 = scmp.ne.s32.totalorder %s364, %s380
      %p382 = scmp.eq.s32.totalorder %s37, 0
      %p383 = por %p381, %p382
      %s384 = ssub.s32 %s39, %s46
      %p385 = scmp.eq.s32.totalorder %s384, 0
      %s387 = sadd.s32 %s386, 1
      %s388 = scalar_select %p385, %s386, %s387
      %p391 = pneg %p385
      %p392 = scmp.eq.s32.totalorder %s31, 1
      %p393 = por %p391, %p392
      %p394 = scmp.ne.s32.totalorder %s386, %s389
      %p395 = scmp.eq.s32.totalorder %s31, 0
      %p396 = por %p394, %p395
      %p397 = scmp.ne.s32.totalorder %s386, %s389
      %p398 = scmp.eq.s32.totalorder %s36, 1
      %p399 = por %p397, %p398
      %p400 = scmp.ne.s32.totalorder %s389, %s390
      %p401 = scmp.eq.s32.totalorder %s36, 0
      %p402 = por %p400, %p401
      %p403 = scmp.ne.s32.totalorder %s389, %s390
      %p404 = scmp.eq.s32.totalorder %s37, 1
      %p405 = por %p403, %p404
      %p407 = scmp.ne.s32.totalorder %s390, %s406
      %p408 = scmp.eq.s32.totalorder %s37, 0
      %p409 = por %p407, %p408
      %s411 = sadd.s32 %s410, 1
      %p414 = scmp.eq.s32.totalorder %s31, 1
      %p415 = scmp.ne.s32.totalorder %s410, %s412
      %p416 = scmp.eq.s32.totalorder %s31, 0
      %p417 = por %p415, %p416
      %p418 = scmp.ne.s32.totalorder %s410, %s412
      %p419 = scmp.eq.s32.totalorder %s36, 1
      %p420 = por %p418, %p419
      %p421 = scmp.ne.s32.totalorder %s412, %s413
      %p422 = scmp.eq.s32.totalorder %s36, 0
      %p423 = por %p421, %p422
      %p424 = scmp.ne.s32.totalorder %s412, %s413
      %p425 = scmp.eq.s32.totalorder %s37, 1
      %p426 = por %p424, %p425
      %p428 = scmp.ne.s32.totalorder %s413, %s427
      %p429 = scmp.eq.s32.totalorder %s37, 0
      %p430 = por %p428, %p429
      %s432 = sadd.s32 %s431, 1
      %p435 = scmp.eq.s32.totalorder %s31, 1
      %p436 = scmp.ne.s32.totalorder %s431, %s433
      %p437 = scmp.eq.s32.totalorder %s31, 0
      %p438 = por %p436, %p437
      %p439 = scmp.ne.s32.totalorder %s431, %s433
      %p440 = scmp.eq.s32.totalorder %s36, 1
      %p441 = por %p439, %p440
      %p442 = scmp.ne.s32.totalorder %s433, %s434
      %p443 = scmp.eq.s32.totalorder %s36, 0
      %p444 = por %p442, %p443
      %p445 = scmp.ne.s32.totalorder %s433, %s434
      %p446 = scmp.eq.s32.totalorder %s37, 1
      %p447 = por %p445, %p446
      %p449 = scmp.ne.s32.totalorder %s434, %s448
      %p450 = scmp.eq.s32.totalorder %s37, 0
      %p451 = por %p449, %p450
      %s453 = sadd.s32 %s452, 1
      %p456 = scmp.eq.s32.totalorder %s31, 1
      %p457 = scmp.ne.s32.totalorder %s452, %s454
      %p458 = scmp.eq.s32.totalorder %s31, 0
      %p459 = por %p457, %p458
      %p460 = scmp.ne.s32.totalorder %s452, %s454
      %p461 = scmp.eq.s32.totalorder %s36, 1
      %p462 = por %p460, %p461
      %p463 = scmp.ne.s32.totalorder %s454, %s455
      %p464 = scmp.eq.s32.totalorder %s36, 0
      %p465 = por %p463, %p464
      %p466 = scmp.ne.s32.totalorder %s454, %s455
      %p467 = scmp.eq.s32.totalorder %s37, 1
      %p468 = por %p466, %p467
      %p470 = scmp.ne.s32.totalorder %s455, %s469
      %p471 = scmp.eq.s32.totalorder %s37, 0
      %p472 = por %p470, %p471
      %s473 = ssub.s32 %s38, %s50
      %p474 = scmp.eq.s32.totalorder %s473, 0
      %s476 = sadd.s32 %s475, 1
      %s477 = scalar_select %p474, %s475, %s476
      %p480 = pneg %p474
      %p481 = scmp.eq.s32.totalorder %s31, 1
      %p482 = por %p480, %p481
      %p483 = scmp.ne.s32.totalorder %s475, %s478
      %p484 = scmp.eq.s32.totalorder %s31, 0
      %p485 = por %p483, %p484
      %p486 = scmp.ne.s32.totalorder %s475, %s478
      %p487 = scmp.eq.s32.totalorder %s36, 1
      %p488 = por %p486, %p487
      %p489 = scmp.ne.s32.totalorder %s478, %s479
      %p490 = scmp.eq.s32.totalorder %s36, 0
      %p491 = por %p489, %p490
      %p492 = scmp.ne.s32.totalorder %s478, %s479
      %p493 = scmp.eq.s32.totalorder %s37, 1
      %p494 = por %p492, %p493
      %p496 = scmp.ne.s32.totalorder %s479, %s495
      %p497 = scmp.eq.s32.totalorder %s37, 0
      %p498 = por %p496, %p497
      %p499 = scmp.le.s32.totalorder 1, %s31
      %p500 = scmp.lt.s32.totalorder %s31, 3
      %p501 = pnand %p499, %p500
      %p502 = pneg %p501
      // Predicated region
      $region9: #{tpu_custom_call.1} parent=5 // pred_check
        _
      $region10: #{tpu_custom_call.1} parent=5 // pred_check_branch
        %504 = sbr.rel (%p501) target = $region12
      $region11: #{tpu_custom_call.1} parent=5 // pred_region
        %s505 = ssub.s32 %s31, 1
        // Predicated region
        $region13: #{tpu_custom_call.1} parent=11 // pred_check
          %p506 = pneg %p69
        $region14: #{tpu_custom_call.1} parent=11 // pred_check_branch
          %508 = sbr.rel (%p506) target = $region16
        $region15: #{tpu_custom_call.1} parent=11 // pred_region
          %s509 = smul.u32 2, %s40
          %p510 = scmp.lt.s32.totalorder %s509, 1
          %s511 = scalar_select %p510, %s509, 1
          %s512 = smul.addr %s511, 8
          %s513 = scalar_lea.vmem %s1, %s512
          %s514 = smul.u32 2, %s40
        $region16: #{tpu_custom_call.1} parent=11 // pred_fallthru
          _
        // Predicated region
        $region17: #{tpu_custom_call.1} parent=11 // pred_check
          %p515 = pneg %p90
        $region18: #{tpu_custom_call.1} parent=11 // pred_check_branch
          %517 = sbr.rel (%p515) target = $region20
        $region19: #{tpu_custom_call.1} parent=11 // pred_region
          _
        $region20: #{tpu_custom_call.1} parent=11 // pred_fallthru
          _
        // Predicated region
        $region21: #{tpu_custom_call.1} parent=11 // pred_check
          %p518 = pneg %p423
        $region22: #{tpu_custom_call.1} parent=11 // pred_check_branch
          %520 = sbr.rel (%p518) target = $region24
        $region23: #{tpu_custom_call.1} parent=11 // pred_region
          _
        $region24: #{tpu_custom_call.1} parent=11 // pred_fallthru
          _
        // Predicated region
        $region25: #{tpu_custom_call.1} parent=11 // pred_check
          %p521 = pneg %p444
        $region26: #{tpu_custom_call.1} parent=11 // pred_check_branch
          %523 = sbr.rel (%p521) target = $region28
        $region27: #{tpu_custom_call.1} parent=11 // pred_region
          _
        $region28: #{tpu_custom_call.1} parent=11 // pred_fallthru
          _
        // Predicated region
        $region29: #{tpu_custom_call.1} parent=11 // pred_check
          %p524 = pneg %p465
        $region30: #{tpu_custom_call.1} parent=11 // pred_check_branch
          %526 = sbr.rel (%p524) target = $region32
        $region31: #{tpu_custom_call.1} parent=11 // pred_region
          _
        $region32: #{tpu_custom_call.1} parent=11 // pred_fallthru
          _
      $region12: #{tpu_custom_call.1} parent=5 // pred_fallthru
        _
      %p527 = scmp.lt.s32.totalorder %s31, 2
      // Predicated region
      $region33: #{tpu_custom_call.1} parent=5 // pred_check
        %p528 = pneg %p527
      $region34: #{tpu_custom_call.1} parent=5 // pred_check_branch
        %530 = sbr.rel (%p528) target = $region36
      $region35: #{tpu_custom_call.1} parent=5 // pred_region
        // Predicated region
        $region37: #{tpu_custom_call.1} parent=35 // pred_check
          %p531 = pneg %p110
        $region38: #{tpu_custom_call.1} parent=35 // pred_check_branch
          %533 = sbr.rel (%p531) target = $region40
        $region39: #{tpu_custom_call.1} parent=35 // pred_region
          %p534 = scmp.lt.s32.totalorder %s39, 1
          %s535 = scalar_select %p534, %s39, 1
          %s536 = scalar_lea.vmem %s3, %s535
        $region40: #{tpu_custom_call.1} parent=35 // pred_fallthru
          _
        // Predicated region
        $region41: #{tpu_custom_call.1} parent=35 // pred_check
          %p537 = pneg %p136
        $region42: #{tpu_custom_call.1} parent=35 // pred_check_branch
          %539 = sbr.rel (%p537) target = $region44
        $region43: #{tpu_custom_call.1} parent=35 // pred_region
          %p540 = scmp.lt.s32.totalorder %s39, 1
          %s541 = scalar_select %p540, %s39, 1
          %s542 = scalar_lea.vmem %s4, %s541
        $region44: #{tpu_custom_call.1} parent=35 // pred_fallthru
          _
        // Predicated region
        $region45: #{tpu_custom_call.1} parent=35 // pred_check
          %p543 = pneg %p162
        $region46: #{tpu_custom_call.1} parent=35 // pred_check_branch
          %545 = sbr.rel (%p543) target = $region48
        $region47: #{tpu_custom_call.1} parent=35 // pred_region
          %p546 = scmp.lt.s32.totalorder %s39, 1
          %s547 = scalar_select %p546, %s39, 1
          %s548 = smul.addr %s547, 4
          %s549 = smul.addr %s548, 4
          %s550 = scalar_lea.vmem %s5, %s549
        $region48: #{tpu_custom_call.1} parent=35 // pred_fallthru
          _
        // Predicated region
        $region49: #{tpu_custom_call.1} parent=35 // pred_check
          %p551 = pneg %p188
        $region50: #{tpu_custom_call.1} parent=35 // pred_check_branch
          %553 = sbr.rel (%p551) target = $region52
        $region51: #{tpu_custom_call.1} parent=35 // pred_region
          %p554 = scmp.lt.s32.totalorder %s39, 1
          %s555 = scalar_select %p554, %s39, 1
          %s556 = scalar_lea.vmem %s6, %s555
        $region52: #{tpu_custom_call.1} parent=35 // pred_fallthru
          _
        // Predicated region
        $region53: #{tpu_custom_call.1} parent=35 // pred_check
          %p557 = pneg %p214
        $region54: #{tpu_custom_call.1} parent=35 // pred_check_branch
          %559 = sbr.rel (%p557) target = $region56
        $region55: #{tpu_custom_call.1} parent=35 // pred_region
          %p560 = scmp.lt.s32.totalorder %s39, 1
          %s561 = scalar_select %p560, %s39, 1
          %s562 = smul.addr %s561, 4
          %s563 = smul.addr %s562, 4
          %s564 = scalar_lea.vmem %s7, %s563
        $region56: #{tpu_custom_call.1} parent=35 // pred_fallthru
          _
        // Predicated region
        $region57: #{tpu_custom_call.1} parent=35 // pred_check
          %p565 = pneg %p240
        $region58: #{tpu_custom_call.1} parent=35 // pred_check_branch
          %567 = sbr.rel (%p565) target = $region60
        $region59: #{tpu_custom_call.1} parent=35 // pred_region
          %p568 = scmp.lt.s32.totalorder %s39, 1
          %s569 = scalar_select %p568, %s39, 1
          %s570 = scalar_lea.vmem %s8, %s569
        $region60: #{tpu_custom_call.1} parent=35 // pred_fallthru
          _
        // Predicated region
        $region61: #{tpu_custom_call.1} parent=35 // pred_check
          %p571 = pneg %p266
        $region62: #{tpu_custom_call.1} parent=35 // pred_check_branch
          %573 = sbr.rel (%p571) target = $region64
        $region63: #{tpu_custom_call.1} parent=35 // pred_region
          %p574 = scmp.lt.s32.totalorder %s39, 1
          %s575 = scalar_select %p574, %s39, 1
          %s576 = scalar_lea.vmem %s9, %s575
        $region64: #{tpu_custom_call.1} parent=35 // pred_fallthru
          _
        // Predicated region
        $region65: #{tpu_custom_call.1} parent=35 // pred_check
          %p577 = pneg %p292
        $region66: #{tpu_custom_call.1} parent=35 // pred_check_branch
          %579 = sbr.rel (%p577) target = $region68
        $region67: #{tpu_custom_call.1} parent=35 // pred_region
          %p580 = scmp.lt.s32.totalorder %s39, 1
          %s581 = scalar_select %p580, %s39, 1
          %s582 = scalar_lea.vmem %s10, %s581
        $region68: #{tpu_custom_call.1} parent=35 // pred_fallthru
          _
        // Predicated region
        $region69: #{tpu_custom_call.1} parent=35 // pred_check
          %p583 = pneg %p318
        $region70: #{tpu_custom_call.1} parent=35 // pred_check_branch
          %585 = sbr.rel (%p583) target = $region72
        $region71: #{tpu_custom_call.1} parent=35 // pred_region
          %p586 = scmp.lt.s32.totalorder %s39, 1
          %s587 = scalar_select %p586, %s39, 1
          %s588 = smul.addr %s587, 4
          %s589 = smul.addr %s588, 4
          %s590 = scalar_lea.vmem %s11, %s589
        $region72: #{tpu_custom_call.1} parent=35 // pred_fallthru
          _
        // Predicated region
        $region73: #{tpu_custom_call.1} parent=35 // pred_check
          %p591 = pneg %p344
        $region74: #{tpu_custom_call.1} parent=35 // pred_check_branch
          %593 = sbr.rel (%p591) target = $region76
        $region75: #{tpu_custom_call.1} parent=35 // pred_region
          %p594 = scmp.lt.s32.totalorder %s39, 1
          %s595 = scalar_select %p594, %s39, 1
          %s596 = scalar_lea.vmem %s12, %s595
        $region76: #{tpu_custom_call.1} parent=35 // pred_fallthru
          _
        // Predicated region
        $region77: #{tpu_custom_call.1} parent=35 // pred_check
          %p597 = pneg %p370
        $region78: #{tpu_custom_call.1} parent=35 // pred_check_branch
          %599 = sbr.rel (%p597) target = $region80
        $region79: #{tpu_custom_call.1} parent=35 // pred_region
          %p600 = scmp.lt.s32.totalorder %s39, 1
          %s601 = scalar_select %p600, %s39, 1
          %s602 = smul.addr %s601, 16
          %s603 = smul.addr %s602, 4
          %s604 = scalar_lea.vmem %s13, %s603
        $region80: #{tpu_custom_call.1} parent=35 // pred_fallthru
          _
        // Predicated region
        $region81: #{tpu_custom_call.1} parent=35 // pred_check
          %p605 = pneg %p396
        $region82: #{tpu_custom_call.1} parent=35 // pred_check_branch
          %607 = sbr.rel (%p605) target = $region84
        $region83: #{tpu_custom_call.1} parent=35 // pred_region
          %p608 = scmp.lt.s32.totalorder %s39, 1
          %s609 = scalar_select %p608, %s39, 1
          %s610 = scalar_lea.vmem %s14, %s609
        $region84: #{tpu_custom_call.1} parent=35 // pred_fallthru
          _
      $region36: #{tpu_custom_call.1} parent=5 // pred_fallthru
        _
      %p611 = scmp.le.s32.totalorder 1, %s31
      %p612 = scmp.lt.s32.totalorder %s31, 3
      %p613 = pnand %p611, %p612
      %p614 = pneg %p613
      // Predicated region
      $region85: #{tpu_custom_call.1} parent=5 // pred_check
        _
      $region86: #{tpu_custom_call.1} parent=5 // pred_check_branch
        %616 = sbr.rel (%p613) target = $region88
      $region87: #{tpu_custom_call.1} parent=5 // pred_region
        %s617 = ssub.s32 %s31, 1
        %s618 = smul.u32 2, %s40
        %p619 = scmp.lt.s32.totalorder %s618, 1
        %s620 = scalar_select %p619, %s618, 1
        %s621 = smul.addr %s620, 8
        %s622 = scalar_lea.vmem %s1, %s621
        %p623 = pneg %p69
        %p624 = pneg %p66
        %p625 = pneg %p90
        %p626 = pneg %p87
        %p627 = scmp.lt.s32.totalorder %s41, 1
        %s628 = scalar_select %p627, %s41, 1
        %s629 = scalar_lea.vmem %s3, %s628
        %p630 = pneg %p116
        %p631 = pneg %p113
        %p632 = scmp.lt.s32.totalorder %s41, 1
        %s633 = scalar_select %p632, %s41, 1
        %s634 = scalar_lea.vmem %s4, %s633
        %p635 = pneg %p142
        %p636 = pneg %p139
        %p637 = scmp.lt.s32.totalorder %s41, 1
        %s638 = scalar_select %p637, %s41, 1
        %s639 = smul.addr %s638, 4
        %s640 = smul.addr %s639, 4
        %s641 = scalar_lea.vmem %s5, %s640
        %p642 = pneg %p168
        %p643 = pneg %p165
        %p644 = scmp.lt.s32.totalorder %s41, 1
        %s645 = scalar_select %p644, %s41, 1
        %s646 = scalar_lea.vmem %s6, %s645
        %p647 = pneg %p194
        %p648 = pneg %p191
        %p649 = scmp.lt.s32.totalorder %s41, 1
        %s650 = scalar_select %p649, %s41, 1
        %s651 = smul.addr %s650, 4
        %s652 = smul.addr %s651, 4
        %s653 = scalar_lea.vmem %s7, %s652
        %p654 = pneg %p220
        %p655 = pneg %p217
        %p656 = scmp.lt.s32.totalorder %s41, 1
        %s657 = scalar_select %p656, %s41, 1
        %s658 = scalar_lea.vmem %s8, %s657
        %p659 = pneg %p246
        %p660 = pneg %p243
        %p661 = scmp.lt.s32.totalorder %s41, 1
        %s662 = scalar_select %p661, %s41, 1
        %s663 = scalar_lea.vmem %s9, %s662
        %p664 = pneg %p272
        %p665 = pneg %p269
        %p666 = scmp.lt.s32.totalorder %s41, 1
        %s667 = scalar_select %p666, %s41, 1
        %s668 = scalar_lea.vmem %s10, %s667
        %p669 = pneg %p298
        %p670 = pneg %p295
        %p671 = scmp.lt.s32.totalorder %s41, 1
        %s672 = scalar_select %p671, %s41, 1
        %s673 = smul.addr %s672, 4
        %s674 = smul.addr %s673, 4
        %s675 = scalar_lea.vmem %s11, %s674
        %p676 = pneg %p324
        %p677 = pneg %p321
        %p678 = scmp.lt.s32.totalorder %s41, 1
        %s679 = scalar_select %p678, %s41, 1
        %s680 = scalar_lea.vmem %s12, %s679
        %p681 = pneg %p350
        %p682 = pneg %p347
        %p683 = scmp.lt.s32.totalorder %s41, 1
        %s684 = scalar_select %p683, %s41, 1
        %s685 = smul.addr %s684, 16
        %s686 = smul.addr %s685, 4
        %s687 = scalar_lea.vmem %s13, %s686
        %p688 = pneg %p376
        %p689 = pneg %p373
        %p690 = scmp.lt.s32.totalorder %s41, 1
        %s691 = scalar_select %p690, %s41, 1
        %s692 = scalar_lea.vmem %s14, %s691
        %p693 = pneg %p402
        %p694 = pneg %p399
        %p695 = pneg %p423
        %p696 = pneg %p420
        %p697 = pneg %p444
        %p698 = pneg %p441
        %p699 = pneg %p465
        %p700 = pneg %p462
        %p701 = pneg %p491
        %p702 = pneg %p488
        %s703 = smul.u32 2, %s40
        %p704 = scmp.lt.s32.totalorder %s703, 1
        %s705 = scalar_select %p704, %s703, 1
        %s706 = smul.addr %s705, 8
        %s707 = scalar_lea.vmem %s1, %s706
        %s708 = smul.u32 2, %s40
        %p709 = scmp.lt.s32.totalorder %s41, 1
        %s710 = scalar_select %p709, %s41, 1
        %s711 = scalar_lea.vmem %s3, %s710
        %p712 = scmp.lt.s32.totalorder %s41, 1
        %s713 = scalar_select %p712, %s41, 1
        %s714 = scalar_lea.vmem %s4, %s713
        %p715 = scmp.lt.s32.totalorder %s41, 1
        %s716 = scalar_select %p715, %s41, 1
        %s717 = smul.addr %s716, 4
        %s718 = smul.addr %s717, 4
        %s719 = scalar_lea.vmem %s5, %s718
        %p720 = scmp.lt.s32.totalorder %s41, 1
        %s721 = scalar_select %p720, %s41, 1
        %s722 = scalar_lea.vmem %s6, %s721
        %p723 = scmp.lt.s32.totalorder %s41, 1
        %s724 = scalar_select %p723, %s41, 1
        %s725 = smul.addr %s724, 4
        %s726 = smul.addr %s725, 4
        %s727 = scalar_lea.vmem %s7, %s726
        %p728 = scmp.lt.s32.totalorder %s41, 1
        %s729 = scalar_select %p728, %s41, 1
        %s730 = scalar_lea.vmem %s8, %s729
        %p731 = scmp.lt.s32.totalorder %s41, 1
        %s732 = scalar_select %p731, %s41, 1
        %s733 = scalar_lea.vmem %s9, %s732
        %p734 = scmp.lt.s32.totalorder %s41, 1
        %s735 = scalar_select %p734, %s41, 1
        %s736 = scalar_lea.vmem %s10, %s735
        %p737 = scmp.lt.s32.totalorder %s41, 1
        %s738 = scalar_select %p737, %s41, 1
        %s739 = smul.addr %s738, 4
        %s740 = smul.addr %s739, 4
        %s741 = scalar_lea.vmem %s11, %s740
        %p742 = scmp.lt.s32.totalorder %s41, 1
        %s743 = scalar_select %p742, %s41, 1
        %s744 = scalar_lea.vmem %s12, %s743
        %p745 = scmp.lt.s32.totalorder %s41, 1
        %s746 = scalar_select %p745, %s41, 1
        %s747 = smul.addr %s746, 16
        %s748 = smul.addr %s747, 4
        %s749 = scalar_lea.vmem %s13, %s748
        %p750 = scmp.lt.s32.totalorder %s41, 1
        %s751 = scalar_select %p750, %s41, 1
        %s752 = scalar_lea.vmem %s14, %s751
        %s754 = smul.u32 %s40, 2
        %p755 = scmp.eq.s32.totalorder %s41, 0
        // Predicated region
        $region89: #{tpu_custom_call.1} parent=87 // pred_check
          %p756 = pneg %p755
        $region90: #{tpu_custom_call.1} parent=87 // pred_check_branch
          %758 = sbr.rel (%p756) target = $region92
        $region91: #{tpu_custom_call.1} parent=87 // pred_region
          %v759 = vld [vmem:[%s707] sm:$0xff]
          %v760 = vld [vmem:[%s707 + $0x8] sm:$0xff]
          %v761 = vld [vmem:[%s2] sm:$0xff]
          %v762 = vadd.f32 %v759, %v761
          %v763 = vadd.f32 %v760, %v761
          %vm764 = vcmask 261120
          %765 = vst.msk [vmem:[#allocation2] sm:$0xff] %vm764, %v762
          %766 = vst.msk [vmem:[#allocation2 + $0x8] sm:$0xff] %vm764, %v763
        $region92: #{tpu_custom_call.1} parent=87 // pred_fallthru
          _
        %v767 = vld [vmem:[#allocation2] sm:$0xff]
        %v768 = vld [vmem:[#allocation2 + $0x8] sm:$0xff]
        %v769 = vld [vmem:[%s711] sm:$0x1]
        %v770 = vld [vmem:[%s714] sm:$0x1]
        %vm771 = vcmask 261120
        %v772 = vsel %vm771, %v767, 0.0
        %773 = vadd.xlane.f32.xlu0 %v772
        %v774 = vpop.xlane.xlu0 %773
        %v775 = vsel %vm771, %v768, 0.0
        %776 = vadd.xlane.f32.xlu0 %v775
        %v777 = vpop.xlane.xlu0 %776
        %v778 = vrcp.pop 32.0
        %v779 = vmul.f32 %v774, %v778
        %v780 = vmul.f32 %v777, %v778
        %v781 = vsub.f32 %v767, %v779
        %v782 = vsub.f32 %v768, %v780
        %v783 = vmul.f32 %v781, %v781
        %v784 = vmul.f32 %v782, %v782
        %v785 = vsel %vm771, %v783, 0.0
        %786 = vadd.xlane.f32.xlu0 %v785
        %v787 = vpop.xlane.xlu0 %786
        %v788 = vsel %vm771, %v784, 0.0
        %789 = vadd.xlane.f32.xlu0 %v788
        %v790 = vpop.xlane.xlu0 %789
        %v791 = vmul.f32 %v787, %v778
        %v792 = vmul.f32 %v790, %v778
        %v793 = vadd.f32 %v791, 1e-05
        %v794 = vadd.f32 %v792, 1e-05
        %v795 = vrsqrt.pop %v793
        %v796 = vrsqrt.pop %v794
        %v797 = vmul.f32 %v781, %v795
        %v798 = vmul.f32 %v782, %v796
        %v800 = vlaneseq
        %v801 = vshrl.u32 %v800, 7
        %v802 = vsub.s32 0, %v801
        %v803 = vrot.slane %v769, %v802
        %v805 = vmul.f32 %v797, %v803
        %v806 = vmul.f32 %v798, %v803
        %v808 = vlaneseq
        %v809 = vshrl.u32 %v808, 7
        %v810 = vsub.s32 0, %v809
        %v811 = vrot.slane %v770, %v810
        %v813 = vadd.f32 %v805, %v811
        %v814 = vadd.f32 %v806, %v811
        %v815 = vpack.c.bf16 %v814, %v813
        %v816 = vld [vmem:[%s719] sm:$0xf]
        %v817 = vld [vmem:[%s719 + $0x4] sm:$0xf]
        %v818 = vld [vmem:[%s719 + $0x8] sm:$0xf]
        %v819 = vld [vmem:[%s719 + $0xc] sm:$0xf]
        %v820 = vld [vmem:[%s722] sm:$0x1]
        %v822 = vlaneseq
        %v823 = vshrl.u32 %v822, 7
        %v824 = vsub.s32 0, %v823
        %v825 = vrot.slane %v820, %v824
        %v831 = vunpack.c.l.b16 %v816
        %v832 = vunpack.c.l.b16 %v817
        %v833 = vunpack.c.l.b16 %v818
        %v834 = vunpack.c.l.b16 %v819
        %v835 = vpack.c.b16 %v832, %v831
        %v836 = vpack.c.b16 %v834, %v833
        %v840 = vsel %vm771, %v815, 0
        %842 = vmatprep.subr.bf16.mxu0 0
        %843 = vmatpush1.bf16.msra.mxu0 0
        %844 = vmatprep.subr.bf16.mxu0 0
        %845 = vmatpush1.bf16.msra.mxu0 0
        %846 = vmatprep.subr.bf16.mxu0 0
        %847 = vmatpush1.bf16.msra.mxu0 0
        %848 = vmatprep.subr.bf16.mxu0 0
        %849 = vmatpush1.bf16.msra.mxu0 0
        %850 = vmatprep.subr.bf16.mxu0 0
        %851 = vmatpush1.bf16.msra.mxu0 0
        %852 = vmatprep.subr.bf16.mxu0 0
        %853 = vmatpush1.bf16.msra.mxu0 0
        %854 = vmatprep.subr.bf16.mxu0 0
        %855 = vmatpush1.bf16.msra.mxu0 %v836
        %856 = vmatprep.subr.bf16.mxu0 0
        %857 = vmatpush1.bf16.msra.mxu0 %v835
        %858 = vmatprep.subr.bf16.mxu0 0
        %859 = vmatpush2.bf16.msra.mxu0 0
        %860 = vmatprep.subr.bf16.mxu0 0
        %861 = vmatpush2.bf16.msra.mxu0 0
        %862 = vmatprep.subr.bf16.mxu0 0
        %863 = vmatpush2.bf16.msra.mxu0 0
        %864 = vmatprep.subr.bf16.mxu0 0
        %865 = vmatpush2.bf16.msra.mxu0 0
        %866 = vmatprep.subr.bf16.mxu0 0
        %867 = vmatpush2.bf16.msra.mxu0 0
        %868 = vmatprep.subr.bf16.mxu0 0
        %869 = vmatpush2.bf16.msra.mxu0 0
        %870 = vmatprep.subr.bf16.mxu0 0
        %871 = vmatpush2.bf16.msra.mxu0 0
        %872 = vmatprep.subr.bf16.mxu0 0
        %873 = vmatpush2.bf16.msra.mxu0 0
        %874 = vmatprep.mubr.bf16.mxu0 0
        %875 = vmatmul.mubr.bf16.gmra.mxu0 %v840
        %v876 = vpop.f32.mrf.mxu0
        %v877 = vadd.f32 %v825, %v876
        %v878 = vpop.f32.mrf.mxu0
        %v879 = vpop.f32.mrf.mxu0
        %v880 = vadd.f32 %v825, %v879
        %v881 = vpop.f32.mrf.mxu0
        %882 = vdwg.mxu0
        %v883 = vmul.f32 %v877, 0.35355338
        %v884 = vmul.f32 %v880, 0.35355338
        %v885 = vlaneseq
        %v886 = vshrl.u32 %v885, 7
        %v887 = vlaneseq
        %v888 = vand.u32 %v887, 127
        %vm889 = vcmp.le.s32.totalorder %v888, %v886
        %v890 = vsel %vm889, 0.0, -1e+09
        %v891 = vld [vmem:[%s727] sm:$0xf]
        %v892 = vld [vmem:[%s727 + $0x4] sm:$0xf]
        %v893 = vld [vmem:[%s727 + $0x8] sm:$0xf]
        %v894 = vld [vmem:[%s727 + $0xc] sm:$0xf]
        %v895 = vpack.c.bf16 %v883, %v883
        %v896 = vpack.c.bf16 %v884, %v884
        %v897 = vpack.c.bf16 %v877, %v877
        %v898 = vpack.c.bf16 %v880, %v880
        %900 = vrot.lane.b32.xlu0 %v897, 96
        %v901 = vpop.permute.xlu0 %900
        %vm902 = vcmask 64512
        %v904 = vsel %vm902, %v895, 0
        %v907 = vsel %vm902, %v901, 0
        %909 = vmatprep.subr.bf16.mxu0 0
        %910 = vmatpush1.bf16.xpose.msra.mxu0 0
        %911 = vmatprep.subr.bf16.mxu0 0
        %912 = vmatpush1.bf16.xpose.msra.mxu0 0
        %913 = vmatprep.subr.bf16.mxu0 0
        %914 = vmatpush1.bf16.xpose.msra.mxu0 0
        %915 = vmatprep.subr.bf16.mxu0 0
        %916 = vmatpush1.bf16.xpose.msra.mxu0 0
        %917 = vmatprep.subr.bf16.mxu0 0
        %918 = vmatpush1.bf16.xpose.msra.mxu0 0
        %919 = vmatprep.subr.bf16.mxu0 0
        %920 = vmatpush1.bf16.xpose.msra.mxu0 0
        %921 = vmatprep.subr.bf16.mxu0 0
        %922 = vmatpush1.bf16.xpose.msra.mxu0 0
        %923 = vmatprep.subr.bf16.mxu0 0
        %924 = vmatpush1.bf16.xpose.msra.mxu0 %v907
        %925 = vmatprep.subr.bf16.mxu0 0
        %926 = vmatpush2.bf16.xpose.msra.mxu0 0
        %927 = vmatprep.subr.bf16.mxu0 0
        %928 = vmatpush2.bf16.xpose.msra.mxu0 0
        %929 = vmatprep.subr.bf16.mxu0 0
        %930 = vmatpush2.bf16.xpose.msra.mxu0 0
        %931 = vmatprep.subr.bf16.mxu0 0
        %932 = vmatpush2.bf16.xpose.msra.mxu0 0
        %933 = vmatprep.subr.bf16.mxu0 0
        %934 = vmatpush2.bf16.xpose.msra.mxu0 0
        %935 = vmatprep.subr.bf16.mxu0 0
        %936 = vmatpush2.bf16.xpose.msra.mxu0 0
        %937 = vmatprep.subr.bf16.mxu0 0
        %938 = vmatpush2.bf16.xpose.msra.mxu0 0
        %939 = vmatprep.subr.bf16.mxu0 0
        %940 = vmatpush2.bf16.xpose.msra.mxu0 0
        %941 = vmatprep.mubr.bf16.mxu0 0
        %942 = vmatmul.mubr.bf16.gmra.mxu0 %v904
        %v943 = vpop.f32.mrf.mxu0
        %v944 = vadd.f32 %v890, %v943
        %v945 = vpop.f32.mrf.mxu0
        %v946 = vpop.f32.mrf.mxu0
        %v947 = vpop.f32.mrf.mxu0
        %948 = vdwg.mxu0
        %950 = vrot.lane.b32.xlu0 %v898, 96
        %v951 = vpop.permute.xlu0 %950
        %v953 = vsel %vm902, %v896, 0
        %v956 = vsel %vm902, %v951, 0
        %958 = vmatprep.subr.bf16.mxu0 0
        %959 = vmatpush1.bf16.xpose.msra.mxu0 0
        %960 = vmatprep.subr.bf16.mxu0 0
        %961 = vmatpush1.bf16.xpose.msra.mxu0 0
        %962 = vmatprep.subr.bf16.mxu0 0
        %963 = vmatpush1.bf16.xpose.msra.mxu0 0
        %964 = vmatprep.subr.bf16.mxu0 0
        %965 = vmatpush1.bf16.xpose.msra.mxu0 0
        %966 = vmatprep.subr.bf16.mxu0 0
        %967 = vmatpush1.bf16.xpose.msra.mxu0 0
        %968 = vmatprep.subr.bf16.mxu0 0
        %969 = vmatpush1.bf16.xpose.msra.mxu0 0
        %970 = vmatprep.subr.bf16.mxu0 0
        %971 = vmatpush1.bf16.xpose.msra.mxu0 0
        %972 = vmatprep.subr.bf16.mxu0 0
        %973 = vmatpush1.bf16.xpose.msra.mxu0 %v956
        %974 = vmatprep.subr.bf16.mxu0 0
        %975 = vmatpush2.bf16.xpose.msra.mxu0 0
        %976 = vmatprep.subr.bf16.mxu0 0
        %977 = vmatpush2.bf16.xpose.msra.mxu0 0
        %978 = vmatprep.subr.bf16.mxu0 0
        %979 = vmatpush2.bf16.xpose.msra.mxu0 0
        %980 = vmatprep.subr.bf16.mxu0 0
        %981 = vmatpush2.bf16.xpose.msra.mxu0 0
        %982 = vmatprep.subr.bf16.mxu0 0
        %983 = vmatpush2.bf16.xpose.msra.mxu0 0
        %984 = vmatprep.subr.bf16.mxu0 0
        %985 = vmatpush2.bf16.xpose.msra.mxu0 0
        %986 = vmatprep.subr.bf16.mxu0 0
        %987 = vmatpush2.bf16.xpose.msra.mxu0 0
        %988 = vmatprep.subr.bf16.mxu0 0
        %989 = vmatpush2.bf16.xpose.msra.mxu0 0
        %990 = vmatprep.mubr.bf16.mxu0 0
        %991 = vmatmul.mubr.bf16.gmra.mxu0 %v953
        %v992 = vpop.f32.mrf.mxu0
        %v993 = vadd.f32 %v890, %v992
        %v994 = vpop.f32.mrf.mxu0
        %v995 = vpop.f32.mrf.mxu0
        %v996 = vpop.f32.mrf.mxu0
        %997 = vdwg.mxu0
        %v998 = vsel %vm902, %v944, -inf
        %999 = vmax.xlane.f32.xlu0 %v998
        %v1000 = vpop.xlane.xlu0 %999
        %v1001 = vsel %vm902, %v993, -inf
        %1002 = vmax.xlane.f32.xlu0 %v1001
        %v1003 = vpop.xlane.xlu0 %1002
        %v1004 = vsub.f32 %v944, %v1000
        %v1005 = vsub.f32 %v993, %v1003
        %v1006 = vmul.f32 %v1004, 1.442695
        %v1007 = vpow.pop %v1006
        %v1008 = vmul.f32 %v1005, 1.442695
        %v1009 = vpow.pop %v1008
        %v1010 = vsel %vm902, %v1007, 0.0
        %1011 = vadd.xlane.f32.xlu0 %v1010
        %v1012 = vpop.xlane.xlu0 %1011
        %v1013 = vsel %vm902, %v1009, 0.0
        %1014 = vadd.xlane.f32.xlu0 %v1013
        %v1015 = vpop.xlane.xlu0 %1014
        %v1016 = vrcp.pop %v1012
        %v1017 = vrcp.pop %v1015
        %v1018 = vmul.f32 %v1007, %v1016
        %v1019 = vmul.f32 %v1009, %v1017
        %v1020 = vpack.c.bf16 %v1018, %v1018
        %v1021 = vpack.c.bf16 %v1019, %v1019
        %1022 = vrot.lane.b32.xlu0 %v897, 64
        %v1023 = vpop.permute.xlu0 %1022
        %v1025 = vsel %vm902, %v1020, 0
        %vm1027 = vcmask 1043456
        %v1029 = vsel %vm1027, %v1023, 0
        %1031 = vmatprep.subr.bf16.mxu0 0
        %1032 = vmatpush1.bf16.msra.mxu0 0
        %1033 = vmatprep.subr.bf16.mxu0 0
        %1034 = vmatpush1.bf16.msra.mxu0 0
        %1035 = vmatprep.subr.bf16.mxu0 0
        %1036 = vmatpush1.bf16.msra.mxu0 0
        %1037 = vmatprep.subr.bf16.mxu0 0
        %1038 = vmatpush1.bf16.msra.mxu0 0
        %1039 = vmatprep.subr.bf16.mxu0 0
        %1040 = vmatpush1.bf16.msra.mxu0 0
        %1041 = vmatprep.subr.bf16.mxu0 0
        %1042 = vmatpush1.bf16.msra.mxu0 0
        %1043 = vmatprep.subr.bf16.mxu0 0
        %1044 = vmatpush1.bf16.msra.mxu0 0
        %1045 = vmatprep.subr.bf16.mxu0 0
        %1046 = vmatpush1.bf16.msra.mxu0 %v1029
        %1047 = vmatprep.subr.bf16.mxu0 0
        %1048 = vmatpush2.bf16.msra.mxu0 0
        %1049 = vmatprep.subr.bf16.mxu0 0
        %1050 = vmatpush2.bf16.msra.mxu0 0
        %1051 = vmatprep.subr.bf16.mxu0 0
        %1052 = vmatpush2.bf16.msra.mxu0 0
        %1053 = vmatprep.subr.bf16.mxu0 0
        %1054 = vmatpush2.bf16.msra.mxu0 0
        %1055 = vmatprep.subr.bf16.mxu0 0
        %1056 = vmatpush2.bf16.msra.mxu0 0
        %1057 = vmatprep.subr.bf16.mxu0 0
        %1058 = vmatpush2.bf16.msra.mxu0 0
        %1059 = vmatprep.subr.bf16.mxu0 0
        %1060 = vmatpush2.bf16.msra.mxu0 0
        %1061 = vmatprep.subr.bf16.mxu0 0
        %1062 = vmatpush2.bf16.msra.mxu0 0
        %1063 = vmatprep.mubr.bf16.mxu0 0
        %1064 = vmatmul.mubr.bf16.gmra.mxu0 %v1025
        %v1065 = vpop.f32.mrf.mxu0
        %v1066 = vadd.f32 0.0, %v1065
        %v1067 = vpop.f32.mrf.mxu0
        %v1068 = vpop.f32.mrf.mxu0
        %v1069 = vpop.f32.mrf.mxu0
        %1070 = vdwg.mxu0
        %1071 = vrot.lane.b32.xlu0 %v898, 64
        %v1072 = vpop.permute.xlu0 %1071
        %v1074 = vsel %vm902, %v1021, 0
        %v1077 = vsel %vm1027, %v1072, 0
        %1079 = vmatprep.subr.bf16.mxu0 0
        %1080 = vmatpush1.bf16.msra.mxu0 0
        %1081 = vmatprep.subr.bf16.mxu0 0
        %1082 = vmatpush1.bf16.msra.mxu0 0
        %1083 = vmatprep.subr.bf16.mxu0 0
        %1084 = vmatpush1.bf16.msra.mxu0 0
        %1085 = vmatprep.subr.bf16.mxu0 0
        %1086 = vmatpush1.bf16.msra.mxu0 0
        %1087 = vmatprep.subr.bf16.mxu0 0
        %1088 = vmatpush1.bf16.msra.mxu0 0
        %1089 = vmatprep.subr.bf16.mxu0 0
        %1090 = vmatpush1.bf16.msra.mxu0 0
        %1091 = vmatprep.subr.bf16.mxu0 0
        %1092 = vmatpush1.bf16.msra.mxu0 0
        %1093 = vmatprep.subr.bf16.mxu0 0
        %1094 = vmatpush1.bf16.msra.mxu0 %v1077
        %1095 = vmatprep.subr.bf16.mxu0 0
        %1096 = vmatpush2.bf16.msra.mxu0 0
        %1097 = vmatprep.subr.bf16.mxu0 0
        %1098 = vmatpush2.bf16.msra.mxu0 0
        %1099 = vmatprep.subr.bf16.mxu0 0
        %1100 = vmatpush2.bf16.msra.mxu0 0
        %1101 = vmatprep.subr.bf16.mxu0 0
        %1102 = vmatpush2.bf16.msra.mxu0 0
        %1103 = vmatprep.subr.bf16.mxu0 0
        %1104 = vmatpush2.bf16.msra.mxu0 0
        %1105 = vmatprep.subr.bf16.mxu0 0
        %1106 = vmatpush2.bf16.msra.mxu0 0
        %1107 = vmatprep.subr.bf16.mxu0 0
        %1108 = vmatpush2.bf16.msra.mxu0 0
        %1109 = vmatprep.subr.bf16.mxu0 0
        %1110 = vmatpush2.bf16.msra.mxu0 0
        %1111 = vmatprep.mubr.bf16.mxu0 0
        %1112 = vmatmul.mubr.bf16.gmra.mxu0 %v1074
        %v1113 = vpop.f32.mrf.mxu0
        %v1114 = vadd.f32 0.0, %v1113
        %v1115 = vpop.f32.mrf.mxu0
        %v1116 = vpop.f32.mrf.mxu0
        %v1117 = vpop.f32.mrf.mxu0
        %1118 = vdwg.mxu0
        %v1119 = vpack.c.bf16 %v1114, %v1066
        %1121 = vrot.lane.b32.xlu0 %v895, 120
        %v1122 = vpop.permute.xlu0 %1121
        %1123 = vrot.lane.b32.xlu0 %v897, 88
        %v1124 = vpop.permute.xlu0 %1123
        %v1126 = vsel %vm902, %v1122, 0
        %v1129 = vsel %vm902, %v1124, 0
        %1131 = vmatprep.subr.bf16.mxu0 0
        %1132 = vmatpush1.bf16.xpose.msra.mxu0 0
        %1133 = vmatprep.subr.bf16.mxu0 0
        %1134 = vmatpush1.bf16.xpose.msra.mxu0 0
        %1135 = vmatprep.subr.bf16.mxu0 0
        %1136 = vmatpush1.bf16.xpose.msra.mxu0 0
        %1137 = vmatprep.subr.bf16.mxu0 0
        %1138 = vmatpush1.bf16.xpose.msra.mxu0 0
        %1139 = vmatprep.subr.bf16.mxu0 0
        %1140 = vmatpush1.bf16.xpose.msra.mxu0 0
        %1141 = vmatprep.subr.bf16.mxu0 0
        %1142 = vmatpush1.bf16.xpose.msra.mxu0 0
        %1143 = vmatprep.subr.bf16.mxu0 0
        %1144 = vmatpush1.bf16.xpose.msra.mxu0 0
        %1145 = vmatprep.subr.bf16.mxu0 0
        %1146 = vmatpush1.bf16.xpose.msra.mxu0 %v1129
        %1147 = vmatprep.subr.bf16.mxu0 0
        %1148 = vmatpush2.bf16.xpose.msra.mxu0 0
        %1149 = vmatprep.subr.bf16.mxu0 0
        %1150 = vmatpush2.bf16.xpose.msra.mxu0 0
        %1151 = vmatprep.subr.bf16.mxu0 0
        %1152 = vmatpush2.bf16.xpose.msra.mxu0 0
        %1153 = vmatprep.subr.bf16.mxu0 0
        %1154 = vmatpush2.bf16.xpose.msra.mxu0 0
        %1155 = vmatprep.subr.bf16.mxu0 0
        %1156 = vmatpush2.bf16.xpose.msra.mxu0 0
        %1157 = vmatprep.subr.bf16.mxu0 0
        %1158 = vmatpush2.bf16.xpose.msra.mxu0 0
        %1159 = vmatprep.subr.bf16.mxu0 0
        %1160 = vmatpush2.bf16.xpose.msra.mxu0 0
        %1161 = vmatprep.subr.bf16.mxu0 0
        %1162 = vmatpush2.bf16.xpose.msra.mxu0 0
        %1163 = vmatprep.mubr.bf16.mxu0 0
        %1164 = vmatmul.mubr.bf16.gmra.mxu0 %v1126
        %v1165 = vpop.f32.mrf.mxu0
        %v1166 = vadd.f32 %v890, %v1165
        %v1167 = vpop.f32.mrf.mxu0
        %v1168 = vpop.f32.mrf.mxu0
        %v1169 = vpop.f32.mrf.mxu0
        %1170 = vdwg.mxu0
        %1172 = vrot.lane.b32.xlu0 %v896, 120
        %v1173 = vpop.permute.xlu0 %1172
        %1174 = vrot.lane.b32.xlu0 %v898, 88
        %v1175 = vpop.permute.xlu0 %1174
        %v1177 = vsel %vm902, %v1173, 0
        %v1180 = vsel %vm902, %v1175, 0
        %1182 = vmatprep.subr.bf16.mxu0 0
        %1183 = vmatpush1.bf16.xpose.msra.mxu0 0
        %1184 = vmatprep.subr.bf16.mxu0 0
        %1185 = vmatpush1.bf16.xpose.msra.mxu0 0
        %1186 = vmatprep.subr.bf16.mxu0 0
        %1187 = vmatpush1.bf16.xpose.msra.mxu0 0
        %1188 = vmatprep.subr.bf16.mxu0 0
        %1189 = vmatpush1.bf16.xpose.msra.mxu0 0
        %1190 = vmatprep.subr.bf16.mxu0 0
        %1191 = vmatpush1.bf16.xpose.msra.mxu0 0
        %1192 = vmatprep.subr.bf16.mxu0 0
        %1193 = vmatpush1.bf16.xpose.msra.mxu0 0
        %1194 = vmatprep.subr.bf16.mxu0 0
        %1195 = vmatpush1.bf16.xpose.msra.mxu0 0
        %1196 = vmatprep.subr.bf16.mxu0 0
        %1197 = vmatpush1.bf16.xpose.msra.mxu0 %v1180
        %1198 = vmatprep.subr.bf16.mxu0 0
        %1199 = vmatpush2.bf16.xpose.msra.mxu0 0
        %1200 = vmatprep.subr.bf16.mxu0 0
        %1201 = vmatpush2.bf16.xpose.msra.mxu0 0
        %1202 = vmatprep.subr.bf16.mxu0 0
        %1203 = vmatpush2.bf16.xpose.msra.mxu0 0
        %1204 = vmatprep.subr.bf16.mxu0 0
        %1205 = vmatpush2.bf16.xpose.msra.mxu0 0
        %1206 = vmatprep.subr.bf16.mxu0 0
        %1207 = vmatpush2.bf16.xpose.msra.mxu0 0
        %1208 = vmatprep.subr.bf16.mxu0 0
        %1209 = vmatpush2.bf16.xpose.msra.mxu0 0
        %1210 = vmatprep.subr.bf16.mxu0 0
        %1211 = vmatpush2.bf16.xpose.msra.mxu0 0
        %1212 = vmatprep.subr.bf16.mxu0 0
        %1213 = vmatpush2.bf16.xpose.msra.mxu0 0
        %1214 = vmatprep.mubr.bf16.mxu0 0
        %1215 = vmatmul.mubr.bf16.gmra.mxu0 %v1177
        %v1216 = vpop.f32.mrf.mxu0
        %v1217 = vadd.f32 %v890, %v1216
        %v1218 = vpop.f32.mrf.mxu0
        %v1219 = vpop.f32.mrf.mxu0
        %v1220 = vpop.f32.mrf.mxu0
        %1221 = vdwg.mxu0
        %v1222 = vsel %vm902, %v1166, -inf
        %1223 = vmax.xlane.f32.xlu0 %v1222
        %v1224 = vpop.xlane.xlu0 %1223
        %v1225 = vsel %vm902, %v1217, -inf
        %1226 = vmax.xlane.f32.xlu0 %v1225
        %v1227 = vpop.xlane.xlu0 %1226
        %v1228 = vsub.f32 %v1166, %v1224
        %v1229 = vsub.f32 %v1217, %v1227
        %v1230 = vmul.f32 %v1228, 1.442695
        %v1231 = vpow.pop %v1230
        %v1232 = vmul.f32 %v1229, 1.442695
        %v1233 = vpow.pop %v1232
        %v1234 = vsel %vm902, %v1231, 0.0
        %1235 = vadd.xlane.f32.xlu0 %v1234
        %v1236 = vpop.xlane.xlu0 %1235
        %v1237 = vsel %vm902, %v1233, 0.0
        %1238 = vadd.xlane.f32.xlu0 %v1237
        %v1239 = vpop.xlane.xlu0 %1238
        %v1240 = vrcp.pop %v1236
        %v1241 = vrcp.pop %v1239
        %v1242 = vmul.f32 %v1231, %v1240
        %v1243 = vmul.f32 %v1233, %v1241
        %v1244 = vpack.c.bf16 %v1242, %v1242
        %v1245 = vpack.c.bf16 %v1243, %v1243
        %1246 = vrot.lane.b32.xlu0 %v897, 56
        %v1247 = vpop.permute.xlu0 %1246
        %v1249 = vsel %vm902, %v1244, 0
        %v1252 = vsel %vm1027, %v1247, 0
        %1254 = vmatprep.subr.bf16.mxu0 0
        %1255 = vmatpush1.bf16.msra.mxu0 0
        %1256 = vmatprep.subr.bf16.mxu0 0
        %1257 = vmatpush1.bf16.msra.mxu0 0
        %1258 = vmatprep.subr.bf16.mxu0 0
        %1259 = vmatpush1.bf16.msra.mxu0 0
        %1260 = vmatprep.subr.bf16.mxu0 0
        %1261 = vmatpush1.bf16.msra.mxu0 0
        %1262 = vmatprep.subr.bf16.mxu0 0
        %1263 = vmatpush1.bf16.msra.mxu0 0
        %1264 = vmatprep.subr.bf16.mxu0 0
        %1265 = vmatpush1.bf16.msra.mxu0 0
        %1266 = vmatprep.subr.bf16.mxu0 0
        %1267 = vmatpush1.bf16.msra.mxu0 0
        %1268 = vmatprep.subr.bf16.mxu0 0
        %1269 = vmatpush1.bf16.msra.mxu0 %v1252
        %1270 = vmatprep.subr.bf16.mxu0 0
        %1271 = vmatpush2.bf16.msra.mxu0 0
        %1272 = vmatprep.subr.bf16.mxu0 0
        %1273 = vmatpush2.bf16.msra.mxu0 0
        %1274 = vmatprep.subr.bf16.mxu0 0
        %1275 = vmatpush2.bf16.msra.mxu0 0
        %1276 = vmatprep.subr.bf16.mxu0 0
        %1277 = vmatpush2.bf16.msra.mxu0 0
        %1278 = vmatprep.subr.bf16.mxu0 0
        %1279 = vmatpush2.bf16.msra.mxu0 0
        %1280 = vmatprep.subr.bf16.mxu0 0
        %1281 = vmatpush2.bf16.msra.mxu0 0
        %1282 = vmatprep.subr.bf16.mxu0 0
        %1283 = vmatpush2.bf16.msra.mxu0 0
        %1284 = vmatprep.subr.bf16.mxu0 0
        %1285 = vmatpush2.bf16.msra.mxu0 0
        %1286 = vmatprep.mubr.bf16.mxu0 0
        %1287 = vmatmul.mubr.bf16.gmra.mxu0 %v1249
        %v1288 = vpop.f32.mrf.mxu0
        %v1289 = vadd.f32 0.0, %v1288
        %v1290 = vpop.f32.mrf.mxu0
        %v1291 = vpop.f32.mrf.mxu0
        %v1292 = vpop.f32.mrf.mxu0
        %1293 = vdwg.mxu0
        %1294 = vrot.lane.b32.xlu0 %v898, 56
        %v1295 = vpop.permute.xlu0 %1294
        %v1297 = vsel %vm902, %v1245, 0
        %v1300 = vsel %vm1027, %v1295, 0
        %1302 = vmatprep.subr.bf16.mxu0 0
        %1303 = vmatpush1.bf16.msra.mxu0 0
        %1304 = vmatprep.subr.bf16.mxu0 0
        %1305 = vmatpush1.bf16.msra.mxu0 0
        %1306 = vmatprep.subr.bf16.mxu0 0
        %1307 = vmatpush1.bf16.msra.mxu0 0
        %1308 = vmatprep.subr.bf16.mxu0 0
        %1309 = vmatpush1.bf16.msra.mxu0 0
        %1310 = vmatprep.subr.bf16.mxu0 0
        %1311 = vmatpush1.bf16.msra.mxu0 0
        %1312 = vmatprep.subr.bf16.mxu0 0
        %1313 = vmatpush1.bf16.msra.mxu0 0
        %1314 = vmatprep.subr.bf16.mxu0 0
        %1315 = vmatpush1.bf16.msra.mxu0 0
        %1316 = vmatprep.subr.bf16.mxu0 0
        %1317 = vmatpush1.bf16.msra.mxu0 %v1300
        %1318 = vmatprep.subr.bf16.mxu0 0
        %1319 = vmatpush2.bf16.msra.mxu0 0
        %1320 = vmatprep.subr.bf16.mxu0 0
        %1321 = vmatpush2.bf16.msra.mxu0 0
        %1322 = vmatprep.subr.bf16.mxu0 0
        %1323 = vmatpush2.bf16.msra.mxu0 0
        %1324 = vmatprep.subr.bf16.mxu0 0
        %1325 = vmatpush2.bf16.msra.mxu0 0
        %1326 = vmatprep.subr.bf16.mxu0 0
        %1327 = vmatpush2.bf16.msra.mxu0 0
        %1328 = vmatprep.subr.bf16.mxu0 0
        %1329 = vmatpush2.bf16.msra.mxu0 0
        %1330 = vmatprep.subr.bf16.mxu0 0
        %1331 = vmatpush2.bf16.msra.mxu0 0
        %1332 = vmatprep.subr.bf16.mxu0 0
        %1333 = vmatpush2.bf16.msra.mxu0 0
        %1334 = vmatprep.mubr.bf16.mxu0 0
        %1335 = vmatmul.mubr.bf16.gmra.mxu0 %v1297
        %v1336 = vpop.f32.mrf.mxu0
        %v1337 = vadd.f32 0.0, %v1336
        %v1338 = vpop.f32.mrf.mxu0
        %v1339 = vpop.f32.mrf.mxu0
        %v1340 = vpop.f32.mrf.mxu0
        %1341 = vdwg.mxu0
        %v1342 = vpack.c.bf16 %v1337, %v1289
        %v1344 = vsel %vm902, %v1342, 0
        %v1347 = vsel %vm1027, %v892, 0
        %1349 = vmatprep.subr.bf16.mxu0 0
        %1350 = vmatpush1.bf16.msra.mxu0 0
        %1351 = vmatprep.subr.bf16.mxu0 0
        %1352 = vmatpush1.bf16.msra.mxu0 0
        %1353 = vmatprep.subr.bf16.mxu0 0
        %1354 = vmatpush1.bf16.msra.mxu0 0
        %1355 = vmatprep.subr.bf16.mxu0 0
        %1356 = vmatpush1.bf16.msra.mxu0 0
        %1357 = vmatprep.subr.bf16.mxu0 0
        %1358 = vmatpush1.bf16.msra.mxu0 0
        %1359 = vmatprep.subr.bf16.mxu0 0
        %1360 = vmatpush1.bf16.msra.mxu0 0
        %1361 = vmatprep.subr.bf16.mxu0 0
        %1362 = vmatpush1.bf16.msra.mxu0 0
        %1363 = vmatprep.subr.bf16.mxu0 0
        %1364 = vmatpush1.bf16.msra.mxu0 %v1347
        %1365 = vmatprep.subr.bf16.mxu0 0
        %1366 = vmatpush2.bf16.msra.mxu0 0
        %1367 = vmatprep.subr.bf16.mxu0 0
        %1368 = vmatpush2.bf16.msra.mxu0 0
        %1369 = vmatprep.subr.bf16.mxu0 0
        %1370 = vmatpush2.bf16.msra.mxu0 0
        %1371 = vmatprep.subr.bf16.mxu0 0
        %1372 = vmatpush2.bf16.msra.mxu0 0
        %1373 = vmatprep.subr.bf16.mxu0 0
        %1374 = vmatpush2.bf16.msra.mxu0 0
        %1375 = vmatprep.subr.bf16.mxu0 0
        %1376 = vmatpush2.bf16.msra.mxu0 0
        %1377 = vmatprep.subr.bf16.mxu0 0
        %1378 = vmatpush2.bf16.msra.mxu0 0
        %1379 = vmatprep.subr.bf16.mxu0 0
        %1380 = vmatpush2.bf16.msra.mxu0 0
        %1381 = vmatprep.mubr.bf16.mxu0 0
        %1382 = vmatmul.mubr.bf16.gmra.mxu0 %v1344
        %v1383 = vpop.f32.mrf.mxu0
        %v1384 = vadd.f32 0.0, %v1383
        %v1385 = vpop.f32.mrf.mxu0
        %v1386 = vpop.f32.mrf.mxu0
        %v1387 = vadd.f32 0.0, %v1386
        %v1388 = vpop.f32.mrf.mxu0
        %1389 = vdwg.mxu0
        %v1391 = vsel %vm902, %v1119, 0
        %v1394 = vsel %vm1027, %v891, 0
        %1396 = vmatprep.subr.bf16.mxu0 0
        %1397 = vmatpush1.bf16.msra.mxu0 0
        %1398 = vmatprep.subr.bf16.mxu0 0
        %1399 = vmatpush1.bf16.msra.mxu0 0
        %1400 = vmatprep.subr.bf16.mxu0 0
        %1401 = vmatpush1.bf16.msra.mxu0 0
        %1402 = vmatprep.subr.bf16.mxu0 0
        %1403 = vmatpush1.bf16.msra.mxu0 0
        %1404 = vmatprep.subr.bf16.mxu0 0
        %1405 = vmatpush1.bf16.msra.mxu0 0
        %1406 = vmatprep.subr.bf16.mxu0 0
        %1407 = vmatpush1.bf16.msra.mxu0 0
        %1408 = vmatprep.subr.bf16.mxu0 0
        %1409 = vmatpush1.bf16.msra.mxu0 0
        %1410 = vmatprep.subr.bf16.mxu0 0
        %1411 = vmatpush1.bf16.msra.mxu0 %v1394
        %1412 = vmatprep.subr.bf16.mxu0 0
        %1413 = vmatpush2.bf16.msra.mxu0 0
        %1414 = vmatprep.subr.bf16.mxu0 0
        %1415 = vmatpush2.bf16.msra.mxu0 0
        %1416 = vmatprep.subr.bf16.mxu0 0
        %1417 = vmatpush2.bf16.msra.mxu0 0
        %1418 = vmatprep.subr.bf16.mxu0 0
        %1419 = vmatpush2.bf16.msra.mxu0 0
        %1420 = vmatprep.subr.bf16.mxu0 0
        %1421 = vmatpush2.bf16.msra.mxu0 0
        %1422 = vmatprep.subr.bf16.mxu0 0
        %1423 = vmatpush2.bf16.msra.mxu0 0
        %1424 = vmatprep.subr.bf16.mxu0 0
        %1425 = vmatpush2.bf16.msra.mxu0 0
        %1426 = vmatprep.subr.bf16.mxu0 0
        %1427 = vmatpush2.bf16.msra.mxu0 0
        %1428 = vmatprep.mubr.bf16.mxu0 0
        %1429 = vmatmul.mubr.bf16.gmra.mxu0 %v1391
        %v1430 = vpop.f32.mrf.mxu0
        %v1431 = vadd.f32 %v1384, %v1430
        %v1432 = vpop.f32.mrf.mxu0
        %v1433 = vpop.f32.mrf.mxu0
        %v1434 = vadd.f32 %v1387, %v1433
        %v1435 = vpop.f32.mrf.mxu0
        %1436 = vdwg.mxu0
        %1437 = vrot.lane.b32.xlu0 %v895, 112
        %v1438 = vpop.permute.xlu0 %1437
        %1439 = vrot.lane.b32.xlu0 %v897, 80
        %v1440 = vpop.permute.xlu0 %1439
        %v1442 = vsel %vm902, %v1438, 0
        %v1445 = vsel %vm902, %v1440, 0
        %1447 = vmatprep.subr.bf16.mxu0 0
        %1448 = vmatpush1.bf16.xpose.msra.mxu0 0
        %1449 = vmatprep.subr.bf16.mxu0 0
        %1450 = vmatpush1.bf16.xpose.msra.mxu0 0
        %1451 = vmatprep.subr.bf16.mxu0 0
        %1452 = vmatpush1.bf16.xpose.msra.mxu0 0
        %1453 = vmatprep.subr.bf16.mxu0 0
        %1454 = vmatpush1.bf16.xpose.msra.mxu0 0
        %1455 = vmatprep.subr.bf16.mxu0 0
        %1456 = vmatpush1.bf16.xpose.msra.mxu0 0
        %1457 = vmatprep.subr.bf16.mxu0 0
        %1458 = vmatpush1.bf16.xpose.msra.mxu0 0
        %1459 = vmatprep.subr.bf16.mxu0 0
        %1460 = vmatpush1.bf16.xpose.msra.mxu0 0
        %1461 = vmatprep.subr.bf16.mxu0 0
        %1462 = vmatpush1.bf16.xpose.msra.mxu0 %v1445
        %1463 = vmatprep.subr.bf16.mxu0 0
        %1464 = vmatpush2.bf16.xpose.msra.mxu0 0
        %1465 = vmatprep.subr.bf16.mxu0 0
        %1466 = vmatpush2.bf16.xpose.msra.mxu0 0
        %1467 = vmatprep.subr.bf16.mxu0 0
        %1468 = vmatpush2.bf16.xpose.msra.mxu0 0
        %1469 = vmatprep.subr.bf16.mxu0 0
        %1470 = vmatpush2.bf16.xpose.msra.mxu0 0
        %1471 = vmatprep.subr.bf16.mxu0 0
        %1472 = vmatpush2.bf16.xpose.msra.mxu0 0
        %1473 = vmatprep.subr.bf16.mxu0 0
        %1474 = vmatpush2.bf16.xpose.msra.mxu0 0
        %1475 = vmatprep.subr.bf16.mxu0 0
        %1476 = vmatpush2.bf16.xpose.msra.mxu0 0
        %1477 = vmatprep.subr.bf16.mxu0 0
        %1478 = vmatpush2.bf16.xpose.msra.mxu0 0
        %1479 = vmatprep.mubr.bf16.mxu0 0
        %1480 = vmatmul.mubr.bf16.gmra.mxu0 %v1442
        %v1481 = vpop.f32.mrf.mxu0
        %v1482 = vadd.f32 %v890, %v1481
        %v1483 = vpop.f32.mrf.mxu0
        %v1484 = vpop.f32.mrf.mxu0
        %v1485 = vpop.f32.mrf.mxu0
        %1486 = vdwg.mxu0
        %1487 = vrot.lane.b32.xlu0 %v896, 112
        %v1488 = vpop.permute.xlu0 %1487
        %1489 = vrot.lane.b32.xlu0 %v898, 80
        %v1490 = vpop.permute.xlu0 %1489
        %v1492 = vsel %vm902, %v1488, 0
        %v1495 = vsel %vm902, %v1490, 0
        %1497 = vmatprep.subr.bf16.mxu0 0
        %1498 = vmatpush1.bf16.xpose.msra.mxu0 0
        %1499 = vmatprep.subr.bf16.mxu0 0
        %1500 = vmatpush1.bf16.xpose.msra.mxu0 0
        %1501 = vmatprep.subr.bf16.mxu0 0
        %1502 = vmatpush1.bf16.xpose.msra.mxu0 0
        %1503 = vmatprep.subr.bf16.mxu0 0
        %1504 = vmatpush1.bf16.xpose.msra.mxu0 0
        %1505 = vmatprep.subr.bf16.mxu0 0
        %1506 = vmatpush1.bf16.xpose.msra.mxu0 0
        %1507 = vmatprep.subr.bf16.mxu0 0
        %1508 = vmatpush1.bf16.xpose.msra.mxu0 0
        %1509 = vmatprep.subr.bf16.mxu0 0
        %1510 = vmatpush1.bf16.xpose.msra.mxu0 0
        %1511 = vmatprep.subr.bf16.mxu0 0
        %1512 = vmatpush1.bf16.xpose.msra.mxu0 %v1495
        %1513 = vmatprep.subr.bf16.mxu0 0
        %1514 = vmatpush2.bf16.xpose.msra.mxu0 0
        %1515 = vmatprep.subr.bf16.mxu0 0
        %1516 = vmatpush2.bf16.xpose.msra.mxu0 0
        %1517 = vmatprep.subr.bf16.mxu0 0
        %1518 = vmatpush2.bf16.xpose.msra.mxu0 0
        %1519 = vmatprep.subr.bf16.mxu0 0
        %1520 = vmatpush2.bf16.xpose.msra.mxu0 0
        %1521 = vmatprep.subr.bf16.mxu0 0
        %1522 = vmatpush2.bf16.xpose.msra.mxu0 0
        %1523 = vmatprep.subr.bf16.mxu0 0
        %1524 = vmatpush2.bf16.xpose.msra.mxu0 0
        %1525 = vmatprep.subr.bf16.mxu0 0
        %1526 = vmatpush2.bf16.xpose.msra.mxu0 0
        %1527 = vmatprep.subr.bf16.mxu0 0
        %1528 = vmatpush2.bf16.xpose.msra.mxu0 0
        %1529 = vmatprep.mubr.bf16.mxu0 0
        %1530 = vmatmul.mubr.bf16.gmra.mxu0 %v1492
        %v1531 = vpop.f32.mrf.mxu0
        %v1532 = vadd.f32 %v890, %v1531
        %v1533 = vpop.f32.mrf.mxu0
        %v1534 = vpop.f32.mrf.mxu0
        %v1535 = vpop.f32.mrf.mxu0
        %1536 = vdwg.mxu0
        %v1537 = vsel %vm902, %v1482, -inf
        %1538 = vmax.xlane.f32.xlu0 %v1537
        %v1539 = vpop.xlane.xlu0 %1538
        %v1540 = vsel %vm902, %v1532, -inf
        %1541 = vmax.xlane.f32.xlu0 %v1540
        %v1542 = vpop.xlane.xlu0 %1541
        %v1543 = vsub.f32 %v1482, %v1539
        %v1544 = vsub.f32 %v1532, %v1542
        %v1545 = vmul.f32 %v1543, 1.442695
        %v1546 = vpow.pop %v1545
        %v1547 = vmul.f32 %v1544, 1.442695
        %v1548 = vpow.pop %v1547
        %v1549 = vsel %vm902, %v1546, 0.0
        %1550 = vadd.xlane.f32.xlu0 %v1549
        %v1551 = vpop.xlane.xlu0 %1550
        %v1552 = vsel %vm902, %v1548, 0.0
        %1553 = vadd.xlane.f32.xlu0 %v1552
        %v1554 = vpop.xlane.xlu0 %1553
        %v1555 = vrcp.pop %v1551
        %v1556 = vrcp.pop %v1554
        %v1557 = vmul.f32 %v1546, %v1555
        %v1558 = vmul.f32 %v1548, %v1556
        %v1559 = vpack.c.bf16 %v1557, %v1557
        %v1560 = vpack.c.bf16 %v1558, %v1558
        %1561 = vrot.lane.b32.xlu0 %v897, 48
        %v1562 = vpop.permute.xlu0 %1561
        %v1564 = vsel %vm902, %v1559, 0
        %v1567 = vsel %vm1027, %v1562, 0
        %1569 = vmatprep.subr.bf16.mxu0 0
        %1570 = vmatpush1.bf16.msra.mxu0 0
        %1571 = vmatprep.subr.bf16.mxu0 0
        %1572 = vmatpush1.bf16.msra.mxu0 0
        %1573 = vmatprep.subr.bf16.mxu0 0
        %1574 = vmatpush1.bf16.msra.mxu0 0
        %1575 = vmatprep.subr.bf16.mxu0 0
        %1576 = vmatpush1.bf16.msra.mxu0 0
        %1577 = vmatprep.subr.bf16.mxu0 0
        %1578 = vmatpush1.bf16.msra.mxu0 0
        %1579 = vmatprep.subr.bf16.mxu0 0
        %1580 = vmatpush1.bf16.msra.mxu0 0
        %1581 = vmatprep.subr.bf16.mxu0 0
        %1582 = vmatpush1.bf16.msra.mxu0 0
        %1583 = vmatprep.subr.bf16.mxu0 0
        %1584 = vmatpush1.bf16.msra.mxu0 %v1567
        %1585 = vmatprep.subr.bf16.mxu0 0
        %1586 = vmatpush2.bf16.msra.mxu0 0
        %1587 = vmatprep.subr.bf16.mxu0 0
        %1588 = vmatpush2.bf16.msra.mxu0 0
        %1589 = vmatprep.subr.bf16.mxu0 0
        %1590 = vmatpush2.bf16.msra.mxu0 0
        %1591 = vmatprep.subr.bf16.mxu0 0
        %1592 = vmatpush2.bf16.msra.mxu0 0
        %1593 = vmatprep.subr.bf16.mxu0 0
        %1594 = vmatpush2.bf16.msra.mxu0 0
        %1595 = vmatprep.subr.bf16.mxu0 0
        %1596 = vmatpush2.bf16.msra.mxu0 0
        %1597 = vmatprep.subr.bf16.mxu0 0
        %1598 = vmatpush2.bf16.msra.mxu0 0
        %1599 = vmatprep.subr.bf16.mxu0 0
        %1600 = vmatpush2.bf16.msra.mxu0 0
        %1601 = vmatprep.mubr.bf16.mxu0 0
        %1602 = vmatmul.mubr.bf16.gmra.mxu0 %v1564
        %v1603 = vpop.f32.mrf.mxu0
        %v1604 = vadd.f32 0.0, %v1603
        %v1605 = vpop.f32.mrf.mxu0
        %v1606 = vpop.f32.mrf.mxu0
        %v1607 = vpop.f32.mrf.mxu0
        %1608 = vdwg.mxu0
        %1609 = vrot.lane.b32.xlu0 %v898, 48
        %v1610 = vpop.permute.xlu0 %1609
        %v1612 = vsel %vm902, %v1560, 0
        %v1615 = vsel %vm1027, %v1610, 0
        %1617 = vmatprep.subr.bf16.mxu0 0
        %1618 = vmatpush1.bf16.msra.mxu0 0
        %1619 = vmatprep.subr.bf16.mxu0 0
        %1620 = vmatpush1.bf16.msra.mxu0 0
        %1621 = vmatprep.subr.bf16.mxu0 0
        %1622 = vmatpush1.bf16.msra.mxu0 0
        %1623 = vmatprep.subr.bf16.mxu0 0
        %1624 = vmatpush1.bf16.msra.mxu0 0
        %1625 = vmatprep.subr.bf16.mxu0 0
        %1626 = vmatpush1.bf16.msra.mxu0 0
        %1627 = vmatprep.subr.bf16.mxu0 0
        %1628 = vmatpush1.bf16.msra.mxu0 0
        %1629 = vmatprep.subr.bf16.mxu0 0
        %1630 = vmatpush1.bf16.msra.mxu0 0
        %1631 = vmatprep.subr.bf16.mxu0 0
        %1632 = vmatpush1.bf16.msra.mxu0 %v1615
        %1633 = vmatprep.subr.bf16.mxu0 0
        %1634 = vmatpush2.bf16.msra.mxu0 0
        %1635 = vmatprep.subr.bf16.mxu0 0
        %1636 = vmatpush2.bf16.msra.mxu0 0
        %1637 = vmatprep.subr.bf16.mxu0 0
        %1638 = vmatpush2.bf16.msra.mxu0 0
        %1639 = vmatprep.subr.bf16.mxu0 0
        %1640 = vmatpush2.bf16.msra.mxu0 0
        %1641 = vmatprep.subr.bf16.mxu0 0
        %1642 = vmatpush2.bf16.msra.mxu0 0
        %1643 = vmatprep.subr.bf16.mxu0 0
        %1644 = vmatpush2.bf16.msra.mxu0 0
        %1645 = vmatprep.subr.bf16.mxu0 0
        %1646 = vmatpush2.bf16.msra.mxu0 0
        %1647 = vmatprep.subr.bf16.mxu0 0
        %1648 = vmatpush2.bf16.msra.mxu0 0
        %1649 = vmatprep.mubr.bf16.mxu0 0
        %1650 = vmatmul.mubr.bf16.gmra.mxu0 %v1612
        %v1651 = vpop.f32.mrf.mxu0
        %v1652 = vadd.f32 0.0, %v1651
        %v1653 = vpop.f32.mrf.mxu0
        %v1654 = vpop.f32.mrf.mxu0
        %v1655 = vpop.f32.mrf.mxu0
        %1656 = vdwg.mxu0
        %v1657 = vpack.c.bf16 %v1652, %v1604
        %v1659 = vsel %vm902, %v1657, 0
        %v1662 = vsel %vm1027, %v893, 0
        %1664 = vmatprep.subr.bf16.mxu0 0
        %1665 = vmatpush1.bf16.msra.mxu0 0
        %1666 = vmatprep.subr.bf16.mxu0 0
        %1667 = vmatpush1.bf16.msra.mxu0 0
        %1668 = vmatprep.subr.bf16.mxu0 0
        %1669 = vmatpush1.bf16.msra.mxu0 0
        %1670 = vmatprep.subr.bf16.mxu0 0
        %1671 = vmatpush1.bf16.msra.mxu0 0
        %1672 = vmatprep.subr.bf16.mxu0 0
        %1673 = vmatpush1.bf16.msra.mxu0 0
        %1674 = vmatprep.subr.bf16.mxu0 0
        %1675 = vmatpush1.bf16.msra.mxu0 0
        %1676 = vmatprep.subr.bf16.mxu0 0
        %1677 = vmatpush1.bf16.msra.mxu0 0
        %1678 = vmatprep.subr.bf16.mxu0 0
        %1679 = vmatpush1.bf16.msra.mxu0 %v1662
        %1680 = vmatprep.subr.bf16.mxu0 0
        %1681 = vmatpush2.bf16.msra.mxu0 0
        %1682 = vmatprep.subr.bf16.mxu0 0
        %1683 = vmatpush2.bf16.msra.mxu0 0
        %1684 = vmatprep.subr.bf16.mxu0 0
        %1685 = vmatpush2.bf16.msra.mxu0 0
        %1686 = vmatprep.subr.bf16.mxu0 0
        %1687 = vmatpush2.bf16.msra.mxu0 0
        %1688 = vmatprep.subr.bf16.mxu0 0
        %1689 = vmatpush2.bf16.msra.mxu0 0
        %1690 = vmatprep.subr.bf16.mxu0 0
        %1691 = vmatpush2.bf16.msra.mxu0 0
        %1692 = vmatprep.subr.bf16.mxu0 0
        %1693 = vmatpush2.bf16.msra.mxu0 0
        %1694 = vmatprep.subr.bf16.mxu0 0
        %1695 = vmatpush2.bf16.msra.mxu0 0
        %1696 = vmatprep.mubr.bf16.mxu0 0
        %1697 = vmatmul.mubr.bf16.gmra.mxu0 %v1659
        %v1698 = vpop.f32.mrf.mxu0
        %v1699 = vadd.f32 0.0, %v1698
        %v1700 = vpop.f32.mrf.mxu0
        %v1701 = vpop.f32.mrf.mxu0
        %v1702 = vadd.f32 0.0, %v1701
        %v1703 = vpop.f32.mrf.mxu0
        %1704 = vdwg.mxu0
        %v1705 = vadd.f32 %v1431, %v1699
        %v1706 = vadd.f32 %v1434, %v1702
        %1707 = vrot.lane.b32.xlu0 %v895, 104
        %v1708 = vpop.permute.xlu0 %1707
        %1709 = vrot.lane.b32.xlu0 %v897, 72
        %v1710 = vpop.permute.xlu0 %1709
        %v1712 = vsel %vm902, %v1708, 0
        %v1715 = vsel %vm902, %v1710, 0
        %1717 = vmatprep.subr.bf16.mxu0 0
        %1718 = vmatpush1.bf16.xpose.msra.mxu0 0
        %1719 = vmatprep.subr.bf16.mxu0 0
        %1720 = vmatpush1.bf16.xpose.msra.mxu0 0
        %1721 = vmatprep.subr.bf16.mxu0 0
        %1722 = vmatpush1.bf16.xpose.msra.mxu0 0
        %1723 = vmatprep.subr.bf16.mxu0 0
        %1724 = vmatpush1.bf16.xpose.msra.mxu0 0
        %1725 = vmatprep.subr.bf16.mxu0 0
        %1726 = vmatpush1.bf16.xpose.msra.mxu0 0
        %1727 = vmatprep.subr.bf16.mxu0 0
        %1728 = vmatpush1.bf16.xpose.msra.mxu0 0
        %1729 = vmatprep.subr.bf16.mxu0 0
        %1730 = vmatpush1.bf16.xpose.msra.mxu0 0
        %1731 = vmatprep.subr.bf16.mxu0 0
        %1732 = vmatpush1.bf16.xpose.msra.mxu0 %v1715
        %1733 = vmatprep.subr.bf16.mxu0 0
        %1734 = vmatpush2.bf16.xpose.msra.mxu0 0
        %1735 = vmatprep.subr.bf16.mxu0 0
        %1736 = vmatpush2.bf16.xpose.msra.mxu0 0
        %1737 = vmatprep.subr.bf16.mxu0 0
        %1738 = vmatpush2.bf16.xpose.msra.mxu0 0
        %1739 = vmatprep.subr.bf16.mxu0 0
        %1740 = vmatpush2.bf16.xpose.msra.mxu0 0
        %1741 = vmatprep.subr.bf16.mxu0 0
        %1742 = vmatpush2.bf16.xpose.msra.mxu0 0
        %1743 = vmatprep.subr.bf16.mxu0 0
        %1744 = vmatpush2.bf16.xpose.msra.mxu0 0
        %1745 = vmatprep.subr.bf16.mxu0 0
        %1746 = vmatpush2.bf16.xpose.msra.mxu0 0
        %1747 = vmatprep.subr.bf16.mxu0 0
        %1748 = vmatpush2.bf16.xpose.msra.mxu0 0
        %1749 = vmatprep.mubr.bf16.mxu0 0
        %1750 = vmatmul.mubr.bf16.gmra.mxu0 %v1712
        %v1751 = vpop.f32.mrf.mxu0
        %v1752 = vadd.f32 %v890, %v1751
        %v1753 = vpop.f32.mrf.mxu0
        %v1754 = vpop.f32.mrf.mxu0
        %v1755 = vpop.f32.mrf.mxu0
        %1756 = vdwg.mxu0
        %1757 = vrot.lane.b32.xlu0 %v896, 104
        %v1758 = vpop.permute.xlu0 %1757
        %1759 = vrot.lane.b32.xlu0 %v898, 72
        %v1760 = vpop.permute.xlu0 %1759
        %v1762 = vsel %vm902, %v1758, 0
        %v1765 = vsel %vm902, %v1760, 0
        %1767 = vmatprep.subr.bf16.mxu0 0
        %1768 = vmatpush1.bf16.xpose.msra.mxu0 0
        %1769 = vmatprep.subr.bf16.mxu0 0
        %1770 = vmatpush1.bf16.xpose.msra.mxu0 0
        %1771 = vmatprep.subr.bf16.mxu0 0
        %1772 = vmatpush1.bf16.xpose.msra.mxu0 0
        %1773 = vmatprep.subr.bf16.mxu0 0
        %1774 = vmatpush1.bf16.xpose.msra.mxu0 0
        %1775 = vmatprep.subr.bf16.mxu0 0
        %1776 = vmatpush1.bf16.xpose.msra.mxu0 0
        %1777 = vmatprep.subr.bf16.mxu0 0
        %1778 = vmatpush1.bf16.xpose.msra.mxu0 0
        %1779 = vmatprep.subr.bf16.mxu0 0
        %1780 = vmatpush1.bf16.xpose.msra.mxu0 0
        %1781 = vmatprep.subr.bf16.mxu0 0
        %1782 = vmatpush1.bf16.xpose.msra.mxu0 %v1765
        %1783 = vmatprep.subr.bf16.mxu0 0
        %1784 = vmatpush2.bf16.xpose.msra.mxu0 0
        %1785 = vmatprep.subr.bf16.mxu0 0
        %1786 = vmatpush2.bf16.xpose.msra.mxu0 0
        %1787 = vmatprep.subr.bf16.mxu0 0
        %1788 = vmatpush2.bf16.xpose.msra.mxu0 0
        %1789 = vmatprep.subr.bf16.mxu0 0
        %1790 = vmatpush2.bf16.xpose.msra.mxu0 0
        %1791 = vmatprep.subr.bf16.mxu0 0
        %1792 = vmatpush2.bf16.xpose.msra.mxu0 0
        %1793 = vmatprep.subr.bf16.mxu0 0
        %1794 = vmatpush2.bf16.xpose.msra.mxu0 0
        %1795 = vmatprep.subr.bf16.mxu0 0
        %1796 = vmatpush2.bf16.xpose.msra.mxu0 0
        %1797 = vmatprep.subr.bf16.mxu0 0
        %1798 = vmatpush2.bf16.xpose.msra.mxu0 0
        %1799 = vmatprep.mubr.bf16.mxu0 0
        %1800 = vmatmul.mubr.bf16.gmra.mxu0 %v1762
        %v1801 = vpop.f32.mrf.mxu0
        %v1802 = vadd.f32 %v890, %v1801
        %v1803 = vpop.f32.mrf.mxu0
        %v1804 = vpop.f32.mrf.mxu0
        %v1805 = vpop.f32.mrf.mxu0
        %1806 = vdwg.mxu0
        %v1807 = vsel %vm902, %v1752, -inf
        %1808 = vmax.xlane.f32.xlu0 %v1807
        %v1809 = vpop.xlane.xlu0 %1808
        %v1810 = vsel %vm902, %v1802, -inf
        %1811 = vmax.xlane.f32.xlu0 %v1810
        %v1812 = vpop.xlane.xlu0 %1811
        %v1813 = vsub.f32 %v1752, %v1809
        %v1814 = vsub.f32 %v1802, %v1812
        %v1815 = vmul.f32 %v1813, 1.442695
        %v1816 = vpow.pop %v1815
        %v1817 = vmul.f32 %v1814, 1.442695
        %v1818 = vpow.pop %v1817
        %v1819 = vsel %vm902, %v1816, 0.0
        %1820 = vadd.xlane.f32.xlu0 %v1819
        %v1821 = vpop.xlane.xlu0 %1820
        %v1822 = vsel %vm902, %v1818, 0.0
        %1823 = vadd.xlane.f32.xlu0 %v1822
        %v1824 = vpop.xlane.xlu0 %1823
        %v1825 = vrcp.pop %v1821
        %v1826 = vrcp.pop %v1824
        %v1827 = vmul.f32 %v1816, %v1825
        %v1828 = vmul.f32 %v1818, %v1826
        %v1829 = vpack.c.bf16 %v1827, %v1827
        %v1830 = vpack.c.bf16 %v1828, %v1828
        %1831 = vrot.lane.b32.xlu0 %v897, 40
        %v1832 = vpop.permute.xlu0 %1831
        %v1834 = vsel %vm902, %v1829, 0
        %v1837 = vsel %vm1027, %v1832, 0
        %1839 = vmatprep.subr.bf16.mxu0 0
        %1840 = vmatpush1.bf16.msra.mxu0 0
        %1841 = vmatprep.subr.bf16.mxu0 0
        %1842 = vmatpush1.bf16.msra.mxu0 0
        %1843 = vmatprep.subr.bf16.mxu0 0
        %1844 = vmatpush1.bf16.msra.mxu0 0
        %1845 = vmatprep.subr.bf16.mxu0 0
        %1846 = vmatpush1.bf16.msra.mxu0 0
        %1847 = vmatprep.subr.bf16.mxu0 0
        %1848 = vmatpush1.bf16.msra.mxu0 0
        %1849 = vmatprep.subr.bf16.mxu0 0
        %1850 = vmatpush1.bf16.msra.mxu0 0
        %1851 = vmatprep.subr.bf16.mxu0 0
        %1852 = vmatpush1.bf16.msra.mxu0 0
        %1853 = vmatprep.subr.bf16.mxu0 0
        %1854 = vmatpush1.bf16.msra.mxu0 %v1837
        %1855 = vmatprep.subr.bf16.mxu0 0
        %1856 = vmatpush2.bf16.msra.mxu0 0
        %1857 = vmatprep.subr.bf16.mxu0 0
        %1858 = vmatpush2.bf16.msra.mxu0 0
        %1859 = vmatprep.subr.bf16.mxu0 0
        %1860 = vmatpush2.bf16.msra.mxu0 0
        %1861 = vmatprep.subr.bf16.mxu0 0
        %1862 = vmatpush2.bf16.msra.mxu0 0
        %1863 = vmatprep.subr.bf16.mxu0 0
        %1864 = vmatpush2.bf16.msra.mxu0 0
        %1865 = vmatprep.subr.bf16.mxu0 0
        %1866 = vmatpush2.bf16.msra.mxu0 0
        %1867 = vmatprep.subr.bf16.mxu0 0
        %1868 = vmatpush2.bf16.msra.mxu0 0
        %1869 = vmatprep.subr.bf16.mxu0 0
        %1870 = vmatpush2.bf16.msra.mxu0 0
        %1871 = vmatprep.mubr.bf16.mxu0 0
        %1872 = vmatmul.mubr.bf16.gmra.mxu0 %v1834
        %v1873 = vpop.f32.mrf.mxu0
        %v1874 = vadd.f32 0.0, %v1873
        %v1875 = vpop.f32.mrf.mxu0
        %v1876 = vpop.f32.mrf.mxu0
        %v1877 = vpop.f32.mrf.mxu0
        %1878 = vdwg.mxu0
        %1879 = vrot.lane.b32.xlu0 %v898, 40
        %v1880 = vpop.permute.xlu0 %1879
        %v1882 = vsel %vm902, %v1830, 0
        %v1885 = vsel %vm1027, %v1880, 0
        %1887 = vmatprep.subr.bf16.mxu0 0
        %1888 = vmatpush1.bf16.msra.mxu0 0
        %1889 = vmatprep.subr.bf16.mxu0 0
        %1890 = vmatpush1.bf16.msra.mxu0 0
        %1891 = vmatprep.subr.bf16.mxu0 0
        %1892 = vmatpush1.bf16.msra.mxu0 0
        %1893 = vmatprep.subr.bf16.mxu0 0
        %1894 = vmatpush1.bf16.msra.mxu0 0
        %1895 = vmatprep.subr.bf16.mxu0 0
        %1896 = vmatpush1.bf16.msra.mxu0 0
        %1897 = vmatprep.subr.bf16.mxu0 0
        %1898 = vmatpush1.bf16.msra.mxu0 0
        %1899 = vmatprep.subr.bf16.mxu0 0
        %1900 = vmatpush1.bf16.msra.mxu0 0
        %1901 = vmatprep.subr.bf16.mxu0 0
        %1902 = vmatpush1.bf16.msra.mxu0 %v1885
        %1903 = vmatprep.subr.bf16.mxu0 0
        %1904 = vmatpush2.bf16.msra.mxu0 0
        %1905 = vmatprep.subr.bf16.mxu0 0
        %1906 = vmatpush2.bf16.msra.mxu0 0
        %1907 = vmatprep.subr.bf16.mxu0 0
        %1908 = vmatpush2.bf16.msra.mxu0 0
        %1909 = vmatprep.subr.bf16.mxu0 0
        %1910 = vmatpush2.bf16.msra.mxu0 0
        %1911 = vmatprep.subr.bf16.mxu0 0
        %1912 = vmatpush2.bf16.msra.mxu0 0
        %1913 = vmatprep.subr.bf16.mxu0 0
        %1914 = vmatpush2.bf16.msra.mxu0 0
        %1915 = vmatprep.subr.bf16.mxu0 0
        %1916 = vmatpush2.bf16.msra.mxu0 0
        %1917 = vmatprep.subr.bf16.mxu0 0
        %1918 = vmatpush2.bf16.msra.mxu0 0
        %1919 = vmatprep.mubr.bf16.mxu0 0
        %1920 = vmatmul.mubr.bf16.gmra.mxu0 %v1882
        %v1921 = vpop.f32.mrf.mxu0
        %v1922 = vadd.f32 0.0, %v1921
        %v1923 = vpop.f32.mrf.mxu0
        %v1924 = vpop.f32.mrf.mxu0
        %v1925 = vpop.f32.mrf.mxu0
        %1926 = vdwg.mxu0
        %v1927 = vpack.c.bf16 %v1922, %v1874
        %v1929 = vsel %vm902, %v1927, 0
        %v1932 = vsel %vm1027, %v894, 0
        %1934 = vmatprep.subr.bf16.mxu0 0
        %1935 = vmatpush1.bf16.msra.mxu0 0
        %1936 = vmatprep.subr.bf16.mxu0 0
        %1937 = vmatpush1.bf16.msra.mxu0 0
        %1938 = vmatprep.subr.bf16.mxu0 0
        %1939 = vmatpush1.bf16.msra.mxu0 0
        %1940 = vmatprep.subr.bf16.mxu0 0
        %1941 = vmatpush1.bf16.msra.mxu0 0
        %1942 = vmatprep.subr.bf16.mxu0 0
        %1943 = vmatpush1.bf16.msra.mxu0 0
        %1944 = vmatprep.subr.bf16.mxu0 0
        %1945 = vmatpush1.bf16.msra.mxu0 0
        %1946 = vmatprep.subr.bf16.mxu0 0
        %1947 = vmatpush1.bf16.msra.mxu0 0
        %1948 = vmatprep.subr.bf16.mxu0 0
        %1949 = vmatpush1.bf16.msra.mxu0 %v1932
        %1950 = vmatprep.subr.bf16.mxu0 0
        %1951 = vmatpush2.bf16.msra.mxu0 0
        %1952 = vmatprep.subr.bf16.mxu0 0
        %1953 = vmatpush2.bf16.msra.mxu0 0
        %1954 = vmatprep.subr.bf16.mxu0 0
        %1955 = vmatpush2.bf16.msra.mxu0 0
        %1956 = vmatprep.subr.bf16.mxu0 0
        %1957 = vmatpush2.bf16.msra.mxu0 0
        %1958 = vmatprep.subr.bf16.mxu0 0
        %1959 = vmatpush2.bf16.msra.mxu0 0
        %1960 = vmatprep.subr.bf16.mxu0 0
        %1961 = vmatpush2.bf16.msra.mxu0 0
        %1962 = vmatprep.subr.bf16.mxu0 0
        %1963 = vmatpush2.bf16.msra.mxu0 0
        %1964 = vmatprep.subr.bf16.mxu0 0
        %1965 = vmatpush2.bf16.msra.mxu0 0
        %1966 = vmatprep.mubr.bf16.mxu0 0
        %1967 = vmatmul.mubr.bf16.gmra.mxu0 %v1929
        %v1968 = vpop.f32.mrf.mxu0
        %v1969 = vadd.f32 0.0, %v1968
        %v1970 = vpop.f32.mrf.mxu0
        %v1971 = vpop.f32.mrf.mxu0
        %v1972 = vadd.f32 0.0, %v1971
        %v1973 = vpop.f32.mrf.mxu0
        %1974 = vdwg.mxu0
        %v1975 = vadd.f32 %v1705, %v1969
        %v1976 = vadd.f32 %v1706, %v1972
        %v1977 = vld [vmem:[%s730] sm:$0x1]
        %v1979 = vlaneseq
        %v1980 = vshrl.u32 %v1979, 7
        %v1981 = vsub.s32 0, %v1980
        %v1982 = vrot.slane %v1977, %v1981
        %v1984 = vadd.f32 %v1975, %v1982
        %v1985 = vadd.f32 %v1976, %v1982
        %v1986 = vadd.f32 %v767, %v1984
        %v1987 = vadd.f32 %v768, %v1985
        %v1988 = vld [vmem:[%s733] sm:$0x1]
        %v1989 = vld [vmem:[%s736] sm:$0x1]
        %v1990 = vsel %vm771, %v1986, 0.0
        %1991 = vadd.xlane.f32.xlu0 %v1990
        %v1992 = vpop.xlane.xlu0 %1991
        %v1993 = vsel %vm771, %v1987, 0.0
        %1994 = vadd.xlane.f32.xlu0 %v1993
        %v1995 = vpop.xlane.xlu0 %1994
        %v1996 = vmul.f32 %v1992, %v778
        %v1997 = vmul.f32 %v1995, %v778
        %v1998 = vsub.f32 %v1986, %v1996
        %v1999 = vsub.f32 %v1987, %v1997
        %v2000 = vmul.f32 %v1998, %v1998
        %v2001 = vmul.f32 %v1999, %v1999
        %v2002 = vsel %vm771, %v2000, 0.0
        %2003 = vadd.xlane.f32.xlu0 %v2002
        %v2004 = vpop.xlane.xlu0 %2003
        %v2005 = vsel %vm771, %v2001, 0.0
        %2006 = vadd.xlane.f32.xlu0 %v2005
        %v2007 = vpop.xlane.xlu0 %2006
        %v2008 = vmul.f32 %v2004, %v778
        %v2009 = vmul.f32 %v2007, %v778
        %v2010 = vadd.f32 %v2008, 1e-05
        %v2011 = vadd.f32 %v2009, 1e-05
        %v2012 = vrsqrt.pop %v2010
        %v2013 = vrsqrt.pop %v2011
        %v2014 = vmul.f32 %v1998, %v2012
        %v2015 = vmul.f32 %v1999, %v2013
        %v2017 = vlaneseq
        %v2018 = vshrl.u32 %v2017, 7
        %v2019 = vsub.s32 0, %v2018
        %v2020 = vrot.slane %v1988, %v2019
        %v2022 = vmul.f32 %v2014, %v2020
        %v2023 = vmul.f32 %v2015, %v2020
        %v2025 = vlaneseq
        %v2026 = vshrl.u32 %v2025, 7
        %v2027 = vsub.s32 0, %v2026
        %v2028 = vrot.slane %v1989, %v2027
        %v2030 = vadd.f32 %v2022, %v2028
        %v2031 = vadd.f32 %v2023, %v2028
        %v2032 = vpack.c.bf16 %v2031, %v2030
        %v2033 = vld [vmem:[%s741] sm:$0xf]
        %v2034 = vld [vmem:[%s741 + $0x4] sm:$0xf]
        %v2035 = vld [vmem:[%s741 + $0x8] sm:$0xf]
        %v2036 = vld [vmem:[%s741 + $0xc] sm:$0xf]
        %v2037 = vld [vmem:[%s744] sm:$0x1]
        %v2039 = vlaneseq
        %v2040 = vshrl.u32 %v2039, 7
        %v2041 = vsub.s32 0, %v2040
        %v2042 = vrot.slane %v2037, %v2041
        %v2048 = vunpack.c.l.b16 %v2033
        %v2049 = vunpack.c.l.b16 %v2034
        %v2050 = vunpack.c.l.b16 %v2035
        %v2051 = vunpack.c.l.b16 %v2036
        %v2052 = vpack.c.b16 %v2049, %v2048
        %v2053 = vpack.c.b16 %v2051, %v2050
        %v2057 = vsel %vm771, %v2032, 0
        %2059 = vmatprep.subr.bf16.mxu0 0
        %2060 = vmatpush1.bf16.msra.mxu0 0
        %2061 = vmatprep.subr.bf16.mxu0 0
        %2062 = vmatpush1.bf16.msra.mxu0 0
        %2063 = vmatprep.subr.bf16.mxu0 0
        %2064 = vmatpush1.bf16.msra.mxu0 0
        %2065 = vmatprep.subr.bf16.mxu0 0
        %2066 = vmatpush1.bf16.msra.mxu0 0
        %2067 = vmatprep.subr.bf16.mxu0 0
        %2068 = vmatpush1.bf16.msra.mxu0 0
        %2069 = vmatprep.subr.bf16.mxu0 0
        %2070 = vmatpush1.bf16.msra.mxu0 0
        %2071 = vmatprep.subr.bf16.mxu0 0
        %2072 = vmatpush1.bf16.msra.mxu0 %v2053
        %2073 = vmatprep.subr.bf16.mxu0 0
        %2074 = vmatpush1.bf16.msra.mxu0 %v2052
        %2075 = vmatprep.subr.bf16.mxu0 0
        %2076 = vmatpush2.bf16.msra.mxu0 0
        %2077 = vmatprep.subr.bf16.mxu0 0
        %2078 = vmatpush2.bf16.msra.mxu0 0
        %2079 = vmatprep.subr.bf16.mxu0 0
        %2080 = vmatpush2.bf16.msra.mxu0 0
        %2081 = vmatprep.subr.bf16.mxu0 0
        %2082 = vmatpush2.bf16.msra.mxu0 0
        %2083 = vmatprep.subr.bf16.mxu0 0
        %2084 = vmatpush2.bf16.msra.mxu0 0
        %2085 = vmatprep.subr.bf16.mxu0 0
        %2086 = vmatpush2.bf16.msra.mxu0 0
        %2087 = vmatprep.subr.bf16.mxu0 0
        %2088 = vmatpush2.bf16.msra.mxu0 0
        %2089 = vmatprep.subr.bf16.mxu0 0
        %2090 = vmatpush2.bf16.msra.mxu0 0
        %2091 = vmatprep.mubr.bf16.mxu0 0
        %2092 = vmatmul.mubr.bf16.gmra.mxu0 %v2057
        %v2093 = vpop.f32.mrf.mxu0
        %v2094 = vadd.f32 %v2042, %v2093
        %v2095 = vpop.f32.mrf.mxu0
        %v2096 = vpop.f32.mrf.mxu0
        %v2097 = vadd.f32 %v2042, %v2096
        %v2098 = vpop.f32.mrf.mxu0
        %2099 = vdwg.mxu0
        %v2100 = vmul.f32 %v2094, 1.702
        %v2101 = vmul.f32 %v2097, 1.702
        %v2102 = vxor.u32 %v2100, 2147483648
        %v2103 = vxor.u32 %v2101, 2147483648
        %v2104 = vmul.f32 %v2102, 1.442695
        %v2105 = vpow.pop %v2104
        %v2106 = vmul.f32 %v2103, 1.442695
        %v2107 = vpow.pop %v2106
        %v2108 = vadd.f32 %v2105, 1.0
        %v2109 = vadd.f32 %v2107, 1.0
        %v2110 = vrcp.pop %v2108
        %v2111 = vmul.f32 1.0, %v2110
        %v2112 = vrcp.pop %v2109
        %v2113 = vmul.f32 1.0, %v2112
        %v2114 = vmul.f32 %v2094, %v2111
        %v2115 = vmul.f32 %v2097, %v2113
        %v2116 = vpack.c.bf16 %v2115, %v2114
        %v2117 = vld [vmem:[%s749] sm:$0xf]
        %v2118 = vld [vmem:[%s749 + $0x4] sm:$0xf]
        %v2119 = vld [vmem:[%s749 + $0x8] sm:$0xf]
        %v2120 = vld [vmem:[%s749 + $0xc] sm:$0xf]
        %v2121 = vld [vmem:[%s749 + $0x10] sm:$0xf]
        %v2122 = vld [vmem:[%s749 + $0x14] sm:$0xf]
        %v2123 = vld [vmem:[%s749 + $0x18] sm:$0xf]
        %v2124 = vld [vmem:[%s749 + $0x1c] sm:$0xf]
        %v2125 = vld [vmem:[%s749 + $0x20] sm:$0xf]
        %v2126 = vld [vmem:[%s749 + $0x24] sm:$0xf]
        %v2127 = vld [vmem:[%s749 + $0x28] sm:$0xf]
        %v2128 = vld [vmem:[%s749 + $0x2c] sm:$0xf]
        %v2129 = vld [vmem:[%s749 + $0x30] sm:$0xf]
        %v2130 = vld [vmem:[%s749 + $0x34] sm:$0xf]
        %v2131 = vld [vmem:[%s749 + $0x38] sm:$0xf]
        %v2132 = vld [vmem:[%s749 + $0x3c] sm:$0xf]
        %v2133 = vld [vmem:[%s752] sm:$0x1]
        %v2135 = vlaneseq
        %v2136 = vshrl.u32 %v2135, 7
        %v2137 = vsub.s32 0, %v2136
        %v2138 = vrot.slane %v2133, %v2137
        %v2156 = vunpack.c.l.b16 %v2117
        %v2157 = vunpack.c.l.b16 %v2118
        %v2158 = vunpack.c.l.b16 %v2119
        %v2159 = vunpack.c.l.b16 %v2120
        %v2160 = vunpack.c.l.b16 %v2121
        %v2161 = vunpack.c.l.b16 %v2122
        %v2162 = vunpack.c.l.b16 %v2123
        %v2163 = vunpack.c.l.b16 %v2124
        %v2164 = vunpack.c.l.b16 %v2125
        %v2165 = vunpack.c.l.b16 %v2126
        %v2166 = vunpack.c.l.b16 %v2127
        %v2167 = vunpack.c.l.b16 %v2128
        %v2168 = vunpack.c.l.b16 %v2129
        %v2169 = vunpack.c.l.b16 %v2130
        %v2170 = vunpack.c.l.b16 %v2131
        %v2171 = vunpack.c.l.b16 %v2132
        %v2172 = vpack.c.b16 %v2157, %v2156
        %v2173 = vpack.c.b16 %v2159, %v2158
        %v2174 = vpack.c.b16 %v2161, %v2160
        %v2175 = vpack.c.b16 %v2163, %v2162
        %v2176 = vpack.c.b16 %v2165, %v2164
        %v2177 = vpack.c.b16 %v2167, %v2166
        %v2178 = vpack.c.b16 %v2169, %v2168
        %v2179 = vpack.c.b16 %v2171, %v2170
        %2188 = vmatprep.subr.bf16.mxu0 0
        %2189 = vmatpush1.bf16.msra.mxu0 %v2179
        %2190 = vmatprep.subr.bf16.mxu0 0
        %2191 = vmatpush1.bf16.msra.mxu0 %v2178
        %2192 = vmatprep.subr.bf16.mxu0 0
        %2193 = vmatpush1.bf16.msra.mxu0 %v2177
        %2194 = vmatprep.subr.bf16.mxu0 0
        %2195 = vmatpush1.bf16.msra.mxu0 %v2176
        %2196 = vmatprep.subr.bf16.mxu0 0
        %2197 = vmatpush1.bf16.msra.mxu0 %v2175
        %2198 = vmatprep.subr.bf16.mxu0 0
        %2199 = vmatpush1.bf16.msra.mxu0 %v2174
        %2200 = vmatprep.subr.bf16.mxu0 0
        %2201 = vmatpush1.bf16.msra.mxu0 %v2173
        %2202 = vmatprep.subr.bf16.mxu0 0
        %2203 = vmatpush1.bf16.msra.mxu0 %v2172
        %2204 = vmatprep.subr.bf16.mxu0 0
        %2205 = vmatpush2.bf16.msra.mxu0 0
        %2206 = vmatprep.subr.bf16.mxu0 0
        %2207 = vmatpush2.bf16.msra.mxu0 0
        %2208 = vmatprep.subr.bf16.mxu0 0
        %2209 = vmatpush2.bf16.msra.mxu0 0
        %2210 = vmatprep.subr.bf16.mxu0 0
        %2211 = vmatpush2.bf16.msra.mxu0 0
        %2212 = vmatprep.subr.bf16.mxu0 0
        %2213 = vmatpush2.bf16.msra.mxu0 0
        %2214 = vmatprep.subr.bf16.mxu0 0
        %2215 = vmatpush2.bf16.msra.mxu0 0
        %2216 = vmatprep.subr.bf16.mxu0 0
        %2217 = vmatpush2.bf16.msra.mxu0 0
        %2218 = vmatprep.subr.bf16.mxu0 0
        %2219 = vmatpush2.bf16.msra.mxu0 0
        %2220 = vmatprep.mubr.bf16.mxu0 0
        %2221 = vmatmul.mubr.bf16.gmra.mxu0 %v2116
        %v2222 = vpop.f32.mrf.mxu0
        %v2223 = vadd.f32 %v2138, %v2222
        %v2224 = vpop.f32.mrf.mxu0
        %v2225 = vpop.f32.mrf.mxu0
        %v2226 = vadd.f32 %v2138, %v2225
        %v2227 = vpop.f32.mrf.mxu0
        %2228 = vdwg.mxu0
        %v2229 = vadd.f32 %v1986, %v2223
        %v2230 = vadd.f32 %v1987, %v2226
        %2231 = vst.msk [vmem:[#allocation2] sm:$0xff] %vm771, %v2229
        %2232 = vst.msk [vmem:[#allocation2 + $0x8] sm:$0xff] %vm771, %v2230
        %p2233 = scmp.eq.s32.totalorder %s41, 1
        // Predicated region
        $region93: #{tpu_custom_call.1} parent=87 // pred_check
          %p2234 = pneg %p2233
        $region94: #{tpu_custom_call.1} parent=87 // pred_check_branch
          %2236 = sbr.rel (%p2234) target = $region96
        $region95: #{tpu_custom_call.1} parent=87 // pred_region
          %s2237 = sld [smem:[#allocation4 + %s754]]
          %v2238 = vstv %s2237
          %vm2239 = vcmp.eq.s32.totalorder %v886, %v2238
          %v2240 = vsel %vm2239, 1, 0
          %vm2241 = vcmp.eq.s32.totalorder %v2240, 1
          %v2242 = vsel %vm2241, %v2229, 0.0
          %v2243 = vsel %vm771, %v2242, 0.0
          %v2244 = vrot.slane %v2243, 4
          %v2245 = vadd.f32 %v2243, %v2244
          %v2246 = vrot.slane %v2245, 2
          %v2247 = vadd.f32 %v2245, %v2246
          %v2248 = vrot.slane %v2247, 1
          %v2249 = vadd.f32 %v2247, %v2248
          %s2250 = sadd.s32 %s754, 1
          %s2251 = sld [smem:[#allocation4 + %s2250]]
          %v2252 = vstv %s2251
          %vm2253 = vcmp.eq.s32.totalorder %v886, %v2252
          %v2254 = vsel %vm2253, 1, 0
          %vm2255 = vcmp.eq.s32.totalorder %v2254, 1
          %v2256 = vsel %vm2255, %v2230, 0.0
          %v2257 = vsel %vm771, %v2256, 0.0
          %v2258 = vrot.slane %v2257, 4
          %v2259 = vadd.f32 %v2257, %v2258
          %v2260 = vrot.slane %v2259, 2
          %v2261 = vadd.f32 %v2259, %v2260
          %v2262 = vrot.slane %v2261, 1
          %v2263 = vadd.f32 %v2261, %v2262
          %vm2264 = vcmask 1040384
          %v2265 = vsel %vm2264, %v2249, %v2263
          %v2266 = vld [vmem:[%s15] sm:$0x1]
          %v2267 = vld [vmem:[%s16] sm:$0x1]
          %vm2268 = vcmask 254976
          %v2269 = vsel %vm2268, %v2265, 0.0
          %2270 = vadd.xlane.f32.xlu0 %v2269
          %v2271 = vpop.xlane.xlu0 %2270
          %v2272 = vmul.f32 %v2271, %v778
          %v2273 = vsub.f32 %v2265, %v2272
          %v2274 = vmul.f32 %v2273, %v2273
          %v2275 = vsel %vm2268, %v2274, 0.0
          %2276 = vadd.xlane.f32.xlu0 %v2275
          %v2277 = vpop.xlane.xlu0 %2276
          %v2278 = vmul.f32 %v2277, %v778
          %v2279 = vadd.f32 %v2278, 1e-05
          %v2280 = vrsqrt.pop %v2279
          %v2281 = vmul.f32 %v2273, %v2280
          %v2283 = vlaneseq
          %v2284 = vshrl.u32 %v2283, 7
          %v2285 = vsub.s32 0, %v2284
          %v2286 = vrot.slane %v2266, %v2285
          %v2288 = vmul.f32 %v2281, %v2286
          %v2290 = vlaneseq
          %v2291 = vshrl.u32 %v2290, 7
          %v2292 = vsub.s32 0, %v2291
          %v2293 = vrot.slane %v2267, %v2292
          %v2295 = vadd.f32 %v2288, %v2293
          %v2296 = vpack.c.bf16 %v2295, %v2295
          %v2297 = vld [vmem:[%s17] sm:$0xf]
          %v2298 = vld [vmem:[%s17 + $0x4] sm:$0xf]
          %v2299 = vld [vmem:[%s17 + $0x8] sm:$0xf]
          %v2300 = vld [vmem:[%s17 + $0xc] sm:$0xf]
          %v2305 = vunpack.c.l.b16 %v2297
          %v2306 = vunpack.c.l.b16 %v2298
          %v2307 = vunpack.c.l.b16 %v2299
          %v2308 = vunpack.c.l.b16 %v2300
          %v2309 = vpack.c.b16 %v2306, %v2305
          %v2310 = vpack.c.b16 %v2308, %v2307
          %v2314 = vsel %vm771, %v2296, 0
          %2316 = vmatprep.subr.bf16.mxu0 0
          %2317 = vmatpush1.bf16.msra.mxu0 0
          %2318 = vmatprep.subr.bf16.mxu0 0
          %2319 = vmatpush1.bf16.msra.mxu0 0
          %2320 = vmatprep.subr.bf16.mxu0 0
          %2321 = vmatpush1.bf16.msra.mxu0 0
          %2322 = vmatprep.subr.bf16.mxu0 0
          %2323 = vmatpush1.bf16.msra.mxu0 0
          %2324 = vmatprep.subr.bf16.mxu0 0
          %2325 = vmatpush1.bf16.msra.mxu0 0
          %2326 = vmatprep.subr.bf16.mxu0 0
          %2327 = vmatpush1.bf16.msra.mxu0 0
          %2328 = vmatprep.subr.bf16.mxu0 0
          %2329 = vmatpush1.bf16.msra.mxu0 %v2310
          %2330 = vmatprep.subr.bf16.mxu0 0
          %2331 = vmatpush1.bf16.msra.mxu0 %v2309
          %2332 = vmatprep.subr.bf16.mxu0 0
          %2333 = vmatpush2.bf16.msra.mxu0 0
          %2334 = vmatprep.subr.bf16.mxu0 0
          %2335 = vmatpush2.bf16.msra.mxu0 0
          %2336 = vmatprep.subr.bf16.mxu0 0
          %2337 = vmatpush2.bf16.msra.mxu0 0
          %2338 = vmatprep.subr.bf16.mxu0 0
          %2339 = vmatpush2.bf16.msra.mxu0 0
          %2340 = vmatprep.subr.bf16.mxu0 0
          %2341 = vmatpush2.bf16.msra.mxu0 0
          %2342 = vmatprep.subr.bf16.mxu0 0
          %2343 = vmatpush2.bf16.msra.mxu0 0
          %2344 = vmatprep.subr.bf16.mxu0 0
          %2345 = vmatpush2.bf16.msra.mxu0 0
          %2346 = vmatprep.subr.bf16.mxu0 0
          %2347 = vmatpush2.bf16.msra.mxu0 0
          %2348 = vmatprep.mubr.bf16.mxu0 0
          %2349 = vmatmul.mubr.bf16.gmra.mxu0 %v2314
          %v2350 = vpop.f32.mrf.mxu0
          %v2351 = vadd.f32 0.0, %v2350
          %v2352 = vpop.f32.mrf.mxu0
          %v2353 = vpop.f32.mrf.mxu0
          %v2354 = vpop.f32.mrf.mxu0
          %2355 = vdwg.mxu0
          %2356 = vst.msk [vmem:[#allocation5] sm:$0x3] %vm2268, %v2351
        $region96: #{tpu_custom_call.1} parent=87 // pred_fallthru
          _
        // Predicated region
        $region97: #{tpu_custom_call.1} parent=87 // pred_check
          %p2357 = pneg %p488
        $region98: #{tpu_custom_call.1} parent=87 // pred_check_branch
          %2359 = sbr.rel (%p2357) target = $region100
        $region99: #{tpu_custom_call.1} parent=87 // pred_region
          %s2361 = ssub.s32 32, 32
          %2362 = vsyncadd [#allocation6], %s2361
          %s2363 = smul.addr %s40, 32
          %s2364 = scalar_lea.hbm %s18, %s2363
          %s2366 = sshll.u32 [#allocation5], 4
          %s2367 = int_to_ptr.vmem [resolvable:$true] %s2366
          %2369 = dma.vmem_to_hbm [thread:$0]  %s2367, 32, %s2364, [#allocation6]
        $region100: #{tpu_custom_call.1} parent=87 // pred_fallthru
          _
        // Predicated region
        $region101: #{tpu_custom_call.1} parent=87 // pred_check
          %p2370 = pneg %p488
        $region102: #{tpu_custom_call.1} parent=87 // pred_check_branch
          %2372 = sbr.rel (%p2370) target = $region104
        $region103: #{tpu_custom_call.1} parent=87 // pred_region
          %2373 = dma.done [#allocation6], 32
        $region104: #{tpu_custom_call.1} parent=87 // pred_fallthru
          _
      $region88: #{tpu_custom_call.1} parent=5 // pred_fallthru
        _
      %p2374 = scmp.le.s32.totalorder 2, %s31
      // Predicated region
      $region105: #{tpu_custom_call.1} parent=5 // pred_check
        %p2375 = pneg %p2374
      $region106: #{tpu_custom_call.1} parent=5 // pred_check_branch
        %2377 = sbr.rel (%p2375) target = $region108
      $region107: #{tpu_custom_call.1} parent=5 // pred_region
        %s2378 = ssub.s32 %s31, 2
      $region108: #{tpu_custom_call.1} parent=5 // pred_fallthru
        _
    $region6: #{tpu_custom_call.1} parent=1 // loop_footer
      %s35 = sadd.s32 1, %s31
    $region7: #{tpu_custom_call.1} parent=1 // loop_footer_branch
      %30 = sbr.rel target = $region3
    $region8: #{tpu_custom_call.1} parent=1 // loop_exit
      _
    %2379 = vsyncpa [#allocation6], 1
    %s2380 = scalar_lea.sflag [#allocation6], 1
    %2381 = vsyncpa %s2380, 1

</llo_original>
